<compile_context>
chip_gen: v5e
topology: v5e:2x2
jax: 0.10.0
libtpu: 0.0.40
codegen_flags: <defaults>
</compile_context>

<pallas_src>
import functools

import jax
import jax.numpy as jnp
from jax.experimental import pallas as pl
from jax.experimental.pallas import tpu as pltpu


def _round_up(x, m):
    return ((x + m - 1) // m) * m


# ----------------------------------------------------------------------------
# Pallas kernel: one batch element x one lane tile of the flattened output.
# ----------------------------------------------------------------------------
def _se3_conv_kernel(x_ref, w_ref, o_ref, p_ref, *, k, c_in_pad, hw, wdim,
                     t_s, win, k_rows, k_pad):
    """x_ref: (1, C_in_pad, S_in_pad) flattened, halo+channel padded input (bf16)
       w_ref: (C_out, K_pad)          matmul-layout SE3 kernel (bf16, resident)
       o_ref: (1, C_out, t_s)         lane-dense output tile (f32)
       p_ref: (K_pad, t_s)            VMEM scratch: in-kernel im2col block (bf16)
    """
    base = pl.multiple_of(pl.program_id(1) * t_s, 128)
    # One lane-aligned dynamic load of the window this tile needs; every tap
    # below is a *static* lane-shifted slice of this value (XLU rotates).
    xwin = x_ref[0, :, pl.ds(base, win)]                 # (C_in_pad, win) bf16

    # Build the (K_pad, t_s) patch block entirely in VMEM (never in HBM).
    # C_in_pad == 16 (bf16 sublane packing), so each tap is one full-width,
    # 16-row-aligned, unmasked store — no read-modify-write.
    t = 0
    for kd in range(k):
        for kh in range(k):
            for kw in range(k):
                off = kd * hw + kh * wdim + kw
                p_ref[t * c_in_pad:(t + 1) * c_in_pad, :] = \
                    xwin[:, off:off + t_s]
                t += 1
    if k_rows < k_pad:
        # zero the K-alignment padding rows (scratch is uninitialized per core;
        # "parallel" megacore splitting means we cannot rely on step 0).
        p_ref[k_rows:, :] = jnp.zeros((k_pad - k_rows, t_s), p_ref.dtype)

    # Single lane-dense MXU matmul: (C_out, K_pad) @ (K_pad, t_s), f32 acc.
    o_ref[0] = jnp.dot(w_ref[...], p_ref[...],
                       preferred_element_type=jnp.float32).astype(o_ref.dtype)


# ----------------------------------------------------------------------------
# conv3d (stride 1, no padding -- torch.nn.functional.conv3d defaults).
# w_odhwi: assembled SE3 kernel in (C_out, kd, kh, kw, C_in) layout.
# ----------------------------------------------------------------------------
def se3_conv3d(x, w_odhwi, k):
    n, c_in, d, h, w = x.shape
    c_out = w_odhwi.shape[0]
    assert w_odhwi.shape == (c_out, k, k, k, c_in)
    do, ho, wo = d - k + 1, h - k + 1, w - k + 1
    assert do > 0 and ho > 0 and wo > 0
    hw = h * w

    # Flattened "full (H,W) frame" outputs for valid depths; invalid (h, w)
    # positions are computed into harmless lanes and cropped afterwards.
    s_out = do * hw
    t_s = min(512, _round_up(s_out, 128))          # lane tile (>=128, mult 128)
    s_out_pad = _round_up(s_out, t_s)
    smax = (k - 1) * (hw + w + 1)                  # largest flat tap shift
    halo = _round_up(smax, 128)
    win = t_s + halo
    s_in_pad = s_out_pad + halo                    # >= D*H*W always

    # bf16 sublane packing is 16 rows: pad C_in so each im2col tap write is a
    # full, aligned tile store inside the kernel.
    c_in_pad = _round_up(c_in, 16)
    k_rows = k ** 3 * c_in_pad
    k_pad = _round_up(k_rows, 128)                 # 2000 -> 2048 for the example

    # Glue: flatten spatial, zero-pad halo + channels, cast bf16 (input-sized).
    x_flat = x.reshape(n, c_in, d * hw).astype(jnp.bfloat16)
    x_flat = jnp.pad(x_flat, ((0, 0), (0, c_in_pad - c_in),
                              (0, s_in_pad - d * hw)))

    # Matmul-layout weight: W[o, ((kd*k+kh)*k+kw)*C_in_pad + i] = kern[o,i,kd,kh,kw]
    w_mat = jnp.pad(w_odhwi, ((0, 0), (0, 0), (0, 0), (0, 0),
                              (0, c_in_pad - c_in)))
    w_mat = w_mat.reshape(c_out, k_rows)
    w_mat = jnp.pad(w_mat, ((0, 0), (0, k_pad - k_rows))).astype(jnp.bfloat16)

    kern_fn = functools.partial(_se3_conv_kernel, k=k, c_in_pad=c_in_pad,
                                hw=hw, wdim=w, t_s=t_s, win=win,
                                k_rows=k_rows, k_pad=k_pad)

    out = pl.pallas_call(
        kern_fn,
        out_shape=jax.ShapeDtypeStruct((n, c_out, s_out_pad), jnp.float32),
        grid=(n, s_out_pad // t_s),
        in_specs=[
            # full flattened input for batch b, resident across spatial tiles
            pl.BlockSpec((1, c_in_pad, s_in_pad), lambda b, s: (b, 0, 0)),
            # tiny weight, constant index_map -> fetched once, stays resident
            pl.BlockSpec((c_out, k_pad), lambda b, s: (0, 0)),
        ],
        out_specs=pl.BlockSpec((1, c_out, t_s), lambda b, s: (b, 0, s)),
        scratch_shapes=[pltpu.VMEM((k_pad, t_s), jnp.bfloat16)],
        compiler_params=pltpu.CompilerParams(
            dimension_semantics=("parallel", "parallel")),
    )(x_flat, w_mat)

    # Glue: crop the full-frame flattened output back to the valid conv region.
    out = out[:, :, :s_out].reshape(n, c_out, do, h, w)[:, :, :, :ho, :wo]
    return out                                      # (N, C_out, Do, Ho, Wo)


# ----------------------------------------------------------------------------
# SE3Kernel (restricted to scalar l=0 representations): isotropic gaussian
# radial basis combined with learned weights, as in gaussian_window_wrapper.
# ----------------------------------------------------------------------------
def gaussian_radial_basis(size, sigma=0.6):
    c = (size - 1) / 2.0
    ax = jnp.arange(size, dtype=jnp.float32) - c
    z, y, xg = jnp.meshgrid(ax, ax, ax, indexing="ij")
    r = jnp.sqrt(xg ** 2 + y ** 2 + z ** 2)
    radii = jnp.arange(size // 2 + 1, dtype=jnp.float32)
    basis = jnp.exp(-0.5 * ((r[None] - radii[:, None, None, None]) / sigma) ** 2)
    basis = basis / jnp.sqrt(
        jnp.sum(basis ** 2, axis=(1, 2, 3), keepdims=True))
    return basis  # (n_basis, size, size, size)


class SE3ConvolutionPallas:
    """forward(input) = conv3d(input, self.kernel())  (stride=1, no padding)."""

    def __init__(self, Rs_in, Rs_out, size, key):
        assert all(l == 0 for _, l in Rs_in) and all(l == 0 for _, l in Rs_out)
        # TODO(synk): the full SE3Kernel angular basis (spherical harmonics x
        # Clebsch-Gordan for l>0 fields) and the conv3d **kwargs (stride,
        # padding, dilation, groups) are not replicated; only the l=0
        # (isotropic gaussian radial window), default-kwargs path is built.
        self.c_in = sum(m * (2 * l + 1) for m, l in Rs_in)
        self.c_out = sum(m * (2 * l + 1) for m, l in Rs_out)
        self.size = size
        self.basis = gaussian_radial_basis(size)      # (nb, s, s, s)
        nb = self.basis.shape[0]
        w = jax.random.normal(key, (self.c_out, self.c_in, nb), jnp.float32)
        self.weight = w / jnp.sqrt(float(self.c_in * nb))

    def assembled_kernel(self):
        # standard OIDHW SE3 kernel (used only for the reference check)
        return jnp.einsum("oib,bdhw->oidhw", self.weight, self.basis)

    def matmul_layout_kernel(self):
        # (C_out, kd, kh, kw, C_in) layout built directly from weight x basis
        # (no reshape(...).T of the assembled OIDHW kernel).
        return jnp.einsum("oib,bdhw->odhwi", self.weight, self.basis)

    def __call__(self, x):
        return se3_conv3d(x, self.matmul_layout_kernel(), self.size)


# ----------------------------------------------------------------------------
if __name__ == "__main__":
    key = jax.random.PRNGKey(0)
    k_w, k_x = jax.random.split(key)

    Rs_in = [(4, 0)]    # 4 scalar fields  -> C_in  = 4
    Rs_out = [(8, 0)]   # 8 scalar fields  -> C_out = 8
    size = 5

    conv = SE3ConvolutionPallas(Rs_in, Rs_out, size, k_w)

    # input: (N, C_in, D, H, W) = (2, 4, 8, 8, 8)  -> output (2, 8, 4, 4, 4)
    x = jax.random.normal(k_x, (2, 4, 8, 8, 8), jnp.float32)

    fwd = jax.jit(lambda inp: conv(inp))
    out = jax.block_until_ready(fwd(x))

    # reference: XLA conv3d with the assembled f32 SE3 kernel.  The Pallas path
    # uses bf16 operands (f32 accumulation), so tolerances are bf16-scale.
    ref = jax.lax.conv_general_dilated(
        x, conv.assembled_kernel(), window_strides=(1, 1, 1), padding="VALID",
        dimension_numbers=("NCDHW", "OIDHW", "NCDHW"))
    assert out.shape == ref.shape == (2, 8, 4, 4, 4)
    assert jnp.allclose(out, ref, atol=3e-2, rtol=3e-2), (
        float(jnp.max(jnp.abs(out - ref))))

    print("KERNEL_OK")
</pallas_src>

<mosaic_0001>
module attributes {stable_mosaic.version = 11 : i64} {
  func.func @_se3_conv_kernel(%arg0: i32, %arg1: i32, %arg2: memref<1x16x640xbf16, #tpu.memory_space<vmem>>, %arg3: memref<8x2048xbf16, #tpu.memory_space<vmem>>, %arg4: memref<1x8x256xf32, #tpu.memory_space<vmem>>, %arg5: memref<2048x256xbf16, #tpu.memory_space<vmem>>) attributes {dimension_semantics = [#tpu.dimension_semantics<parallel>, #tpu.dimension_semantics<parallel>], iteration_bounds = array<i64: 2, 1>, scalar_prefetch = 0 : i64, scratch_operands = 1 : i64, tpu.core_type = #tpu.core_type<tc>, window_params = [{transform_indices = @transform_0, window_bounds = array<i64: 1, 16, 640>}, {pipeline_mode = #tpu.pipeline_mode<synchronous>, transform_indices = @transform_1, window_bounds = array<i64: 8, 2048>}, {transform_indices = @transform_2, window_bounds = array<i64: 1, 8, 256>}]} {
    %c256_i32 = arith.constant 256 : i32
    %0 = arith.muli %arg1, %c256_i32 : i32
    %1 = tpu.assume_multiple %0, 128 : i32
    %c0 = arith.constant 0 : index
    %c0_0 = arith.constant 0 : index
    %2 = arith.index_cast %1 : i32 to index
    %3 = vector.load %arg2[%c0, %c0_0, %2] : memref<1x16x640xbf16, #tpu.memory_space<vmem>>, vector<1x16x640xbf16>
    %4 = vector.shape_cast %3 : vector<1x16x640xbf16> to vector<16x640xbf16>
    %5 = vector.extract_strided_slice %4 {offsets = [0, 0], sizes = [16, 256], strides = [1, 1]} : vector<16x640xbf16> to vector<16x256xbf16>
    %c0_1 = arith.constant 0 : index
    %c0_2 = arith.constant 0 : index
    %6 = vector.load %arg5[%c0_1, %c0_2] : memref<2048x256xbf16, #tpu.memory_space<vmem>>, vector<16x256xbf16>
    tpu.vector_store %arg5[%c0_1, %c0_2], %5 {strides = array<i32>} : memref<2048x256xbf16, #tpu.memory_space<vmem>>, vector<16x256xbf16>,
    %7 = vector.extract_strided_slice %4 {offsets = [0, 1], sizes = [16, 256], strides = [1, 1]} : vector<16x640xbf16> to vector<16x256xbf16>
    %c16 = arith.constant 16 : index
    %c0_3 = arith.constant 0 : index
    %8 = vector.load %arg5[%c16, %c0_3] : memref<2048x256xbf16, #tpu.memory_space<vmem>>, vector<16x256xbf16>
    tpu.vector_store %arg5[%c16, %c0_3], %7 {strides = array<i32>} : memref<2048x256xbf16, #tpu.memory_space<vmem>>, vector<16x256xbf16>,
    %9 = vector.extract_strided_slice %4 {offsets = [0, 2], sizes = [16, 256], strides = [1, 1]} : vector<16x640xbf16> to vector<16x256xbf16>
    %c32 = arith.constant 32 : index
    %c0_4 = arith.constant 0 : index
    %10 = vector.load %arg5[%c32, %c0_4] : memref<2048x256xbf16, #tpu.memory_space<vmem>>, vector<16x256xbf16>
    tpu.vector_store %arg5[%c32, %c0_4], %9 {strides = array<i32>} : memref<2048x256xbf16, #tpu.memory_space<vmem>>, vector<16x256xbf16>,
    %11 = vector.extract_strided_slice %4 {offsets = [0, 3], sizes = [16, 256], strides = [1, 1]} : vector<16x640xbf16> to vector<16x256xbf16>
    %c48 = arith.constant 48 : index
    %c0_5 = arith.constant 0 : index
    %12 = vector.load %arg5[%c48, %c0_5] : memref<2048x256xbf16, #tpu.memory_space<vmem>>, vector<16x256xbf16>
    tpu.vector_store %arg5[%c48, %c0_5], %11 {strides = array<i32>} : memref<2048x256xbf16, #tpu.memory_space<vmem>>, vector<16x256xbf16>,
    %13 = vector.extract_strided_slice %4 {offsets = [0, 4], sizes = [16, 256], strides = [1, 1]} : vector<16x640xbf16> to vector<16x256xbf16>
    %c64 = arith.constant 64 : index
    %c0_6 = arith.constant 0 : index
    %14 = vector.load %arg5[%c64, %c0_6] : memref<2048x256xbf16, #tpu.memory_space<vmem>>, vector<16x256xbf16>
    tpu.vector_store %arg5[%c64, %c0_6], %13 {strides = array<i32>} : memref<2048x256xbf16, #tpu.memory_space<vmem>>, vector<16x256xbf16>,
    %15 = vector.extract_strided_slice %4 {offsets = [0, 8], sizes = [16, 256], strides = [1, 1]} : vector<16x640xbf16> to vector<16x256xbf16>
    %c80 = arith.constant 80 : index
    %c0_7 = arith.constant 0 : index
    %16 = vector.load %arg5[%c80, %c0_7] : memref<2048x256xbf16, #tpu.memory_space<vmem>>, vector<16x256xbf16>
    tpu.vector_store %arg5[%c80, %c0_7], %15 {strides = array<i32>} : memref<2048x256xbf16, #tpu.memory_space<vmem>>, vector<16x256xbf16>,
    %17 = vector.extract_strided_slice %4 {offsets = [0, 9], sizes = [16, 256], strides = [1, 1]} : vector<16x640xbf16> to vector<16x256xbf16>
    %c96 = arith.constant 96 : index
    %c0_8 = arith.constant 0 : index
    %18 = vector.load %arg5[%c96, %c0_8] : memref<2048x256xbf16, #tpu.memory_space<vmem>>, vector<16x256xbf16>
    tpu.vector_store %arg5[%c96, %c0_8], %17 {strides = array<i32>} : memref<2048x256xbf16, #tpu.memory_space<vmem>>, vector<16x256xbf16>,
    %19 = vector.extract_strided_slice %4 {offsets = [0, 10], sizes = [16, 256], strides = [1, 1]} : vector<16x640xbf16> to vector<16x256xbf16>
    %c112 = arith.constant 112 : index
    %c0_9 = arith.constant 0 : index
    %20 = vector.load %arg5[%c112, %c0_9] : memref<2048x256xbf16, #tpu.memory_space<vmem>>, vector<16x256xbf16>
    tpu.vector_store %arg5[%c112, %c0_9], %19 {strides = array<i32>} : memref<2048x256xbf16, #tpu.memory_space<vmem>>, vector<16x256xbf16>,
    %21 = vector.extract_strided_slice %4 {offsets = [0, 11], sizes = [16, 256], strides = [1, 1]} : vector<16x640xbf16> to vector<16x256xbf16>
    %c128 = arith.constant 128 : index
    %c0_10 = arith.constant 0 : index
    %22 = vector.load %arg5[%c128, %c0_10] : memref<2048x256xbf16, #tpu.memory_space<vmem>>, vector<16x256xbf16>
    tpu.vector_store %arg5[%c128, %c0_10], %21 {strides = array<i32>} : memref<2048x256xbf16, #tpu.memory_space<vmem>>, vector<16x256xbf16>,
    %23 = vector.extract_strided_slice %4 {offsets = [0, 12], sizes = [16, 256], strides = [1, 1]} : vector<16x640xbf16> to vector<16x256xbf16>
    %c144 = arith.constant 144 : index
    %c0_11 = arith.constant 0 : index
    %24 = vector.load %arg5[%c144, %c0_11] : memref<2048x256xbf16, #tpu.memory_space<vmem>>, vector<16x256xbf16>
    tpu.vector_store %arg5[%c144, %c0_11], %23 {strides = array<i32>} : memref<2048x256xbf16, #tpu.memory_space<vmem>>, vector<16x256xbf16>,
    %25 = vector.extract_strided_slice %4 {offsets = [0, 16], sizes = [16, 256], strides = [1, 1]} : vector<16x640xbf16> to vector<16x256xbf16>
    %c160 = arith.constant 160 : index
    %c0_12 = arith.constant 0 : index
    %26 = vector.load %arg5[%c160, %c0_12] : memref<2048x256xbf16, #tpu.memory_space<vmem>>, vector<16x256xbf16>
    tpu.vector_store %arg5[%c160, %c0_12], %25 {strides = array<i32>} : memref<2048x256xbf16, #tpu.memory_space<vmem>>, vector<16x256xbf16>,
    %27 = vector.extract_strided_slice %4 {offsets = [0, 17], sizes = [16, 256], strides = [1, 1]} : vector<16x640xbf16> to vector<16x256xbf16>
    %c176 = arith.constant 176 : index
    %c0_13 = arith.constant 0 : index
    %28 = vector.load %arg5[%c176, %c0_13] : memref<2048x256xbf16, #tpu.memory_space<vmem>>, vector<16x256xbf16>
    tpu.vector_store %arg5[%c176, %c0_13], %27 {strides = array<i32>} : memref<2048x256xbf16, #tpu.memory_space<vmem>>, vector<16x256xbf16>,
    %29 = vector.extract_strided_slice %4 {offsets = [0, 18], sizes = [16, 256], strides = [1, 1]} : vector<16x640xbf16> to vector<16x256xbf16>
    %c192 = arith.constant 192 : index
    %c0_14 = arith.constant 0 : index
    %30 = vector.load %arg5[%c192, %c0_14] : memref<2048x256xbf16, #tpu.memory_space<vmem>>, vector<16x256xbf16>
    tpu.vector_store %arg5[%c192, %c0_14], %29 {strides = array<i32>} : memref<2048x256xbf16, #tpu.memory_space<vmem>>, vector<16x256xbf16>,
    %31 = vector.extract_strided_slice %4 {offsets = [0, 19], sizes = [16, 256], strides = [1, 1]} : vector<16x640xbf16> to vector<16x256xbf16>
    %c208 = arith.constant 208 : index
    %c0_15 = arith.constant 0 : index
    %32 = vector.load %arg5[%c208, %c0_15] : memref<2048x256xbf16, #tpu.memory_space<vmem>>, vector<16x256xbf16>
    tpu.vector_store %arg5[%c208, %c0_15], %31 {strides = array<i32>} : memref<2048x256xbf16, #tpu.memory_space<vmem>>, vector<16x256xbf16>,
    %33 = vector.extract_strided_slice %4 {offsets = [0, 20], sizes = [16, 256], strides = [1, 1]} : vector<16x640xbf16> to vector<16x256xbf16>
    %c224 = arith.constant 224 : index
    %c0_16 = arith.constant 0 : index
    %34 = vector.load %arg5[%c224, %c0_16] : memref<2048x256xbf16, #tpu.memory_space<vmem>>, vector<16x256xbf16>
    tpu.vector_store %arg5[%c224, %c0_16], %33 {strides = array<i32>} : memref<2048x256xbf16, #tpu.memory_space<vmem>>, vector<16x256xbf16>,
    %35 = vector.extract_strided_slice %4 {offsets = [0, 24], sizes = [16, 256], strides = [1, 1]} : vector<16x640xbf16> to vector<16x256xbf16>
    %c240 = arith.constant 240 : index
    %c0_17 = arith.constant 0 : index
    %36 = vector.load %arg5[%c240, %c0_17] : memref<2048x256xbf16, #tpu.memory_space<vmem>>, vector<16x256xbf16>
    tpu.vector_store %arg5[%c240, %c0_17], %35 {strides = array<i32>} : memref<2048x256xbf16, #tpu.memory_space<vmem>>, vector<16x256xbf16>,
    %37 = vector.extract_strided_slice %4 {offsets = [0, 25], sizes = [16, 256], strides = [1, 1]} : vector<16x640xbf16> to vector<16x256xbf16>
    %c256 = arith.constant 256 : index
    %c0_18 = arith.constant 0 : index
    %38 = vector.load %arg5[%c256, %c0_18] : memref<2048x256xbf16, #tpu.memory_space<vmem>>, vector<16x256xbf16>
    tpu.vector_store %arg5[%c256, %c0_18], %37 {strides = array<i32>} : memref<2048x256xbf16, #tpu.memory_space<vmem>>, vector<16x256xbf16>,
    %39 = vector.extract_strided_slice %4 {offsets = [0, 26], sizes = [16, 256], strides = [1, 1]} : vector<16x640xbf16> to vector<16x256xbf16>
    %c272 = arith.constant 272 : index
    %c0_19 = arith.constant 0 : index
    %40 = vector.load %arg5[%c272, %c0_19] : memref<2048x256xbf16, #tpu.memory_space<vmem>>, vector<16x256xbf16>
    tpu.vector_store %arg5[%c272, %c0_19], %39 {strides = array<i32>} : memref<2048x256xbf16, #tpu.memory_space<vmem>>, vector<16x256xbf16>,
    %41 = vector.extract_strided_slice %4 {offsets = [0, 27], sizes = [16, 256], strides = [1, 1]} : vector<16x640xbf16> to vector<16x256xbf16>
    %c288 = arith.constant 288 : index
    %c0_20 = arith.constant 0 : index
    %42 = vector.load %arg5[%c288, %c0_20] : memref<2048x256xbf16, #tpu.memory_space<vmem>>, vector<16x256xbf16>
    tpu.vector_store %arg5[%c288, %c0_20], %41 {strides = array<i32>} : memref<2048x256xbf16, #tpu.memory_space<vmem>>, vector<16x256xbf16>,
    %43 = vector.extract_strided_slice %4 {offsets = [0, 28], sizes = [16, 256], strides = [1, 1]} : vector<16x640xbf16> to vector<16x256xbf16>
    %c304 = arith.constant 304 : index
    %c0_21 = arith.constant 0 : index
    %44 = vector.load %arg5[%c304, %c0_21] : memref<2048x256xbf16, #tpu.memory_space<vmem>>, vector<16x256xbf16>
    tpu.vector_store %arg5[%c304, %c0_21], %43 {strides = array<i32>} : memref<2048x256xbf16, #tpu.memory_space<vmem>>, vector<16x256xbf16>,
    %45 = vector.extract_strided_slice %4 {offsets = [0, 32], sizes = [16, 256], strides = [1, 1]} : vector<16x640xbf16> to vector<16x256xbf16>
    %c320 = arith.constant 320 : index
    %c0_22 = arith.constant 0 : index
    %46 = vector.load %arg5[%c320, %c0_22] : memref<2048x256xbf16, #tpu.memory_space<vmem>>, vector<16x256xbf16>
    tpu.vector_store %arg5[%c320, %c0_22], %45 {strides = array<i32>} : memref<2048x256xbf16, #tpu.memory_space<vmem>>, vector<16x256xbf16>,
    %47 = vector.extract_strided_slice %4 {offsets = [0, 33], sizes = [16, 256], strides = [1, 1]} : vector<16x640xbf16> to vector<16x256xbf16>
    %c336 = arith.constant 336 : index
    %c0_23 = arith.constant 0 : index
    %48 = vector.load %arg5[%c336, %c0_23] : memref<2048x256xbf16, #tpu.memory_space<vmem>>, vector<16x256xbf16>
    tpu.vector_store %arg5[%c336, %c0_23], %47 {strides = array<i32>} : memref<2048x256xbf16, #tpu.memory_space<vmem>>, vector<16x256xbf16>,
    %49 = vector.extract_strided_slice %4 {offsets = [0, 34], sizes = [16, 256], strides = [1, 1]} : vector<16x640xbf16> to vector<16x256xbf16>
    %c352 = arith.constant 352 : index
    %c0_24 = arith.constant 0 : index
    %50 = vector.load %arg5[%c352, %c0_24] : memref<2048x256xbf16, #tpu.memory_space<vmem>>, vector<16x256xbf16>
    tpu.vector_store %arg5[%c352, %c0_24], %49 {strides = array<i32>} : memref<2048x256xbf16, #tpu.memory_space<vmem>>, vector<16x256xbf16>,
    %51 = vector.extract_strided_slice %4 {offsets = [0, 35], sizes = [16, 256], strides = [1, 1]} : vector<16x640xbf16> to vector<16x256xbf16>
    %c368 = arith.constant 368 : index
    %c0_25 = arith.constant 0 : index
    %52 = vector.load %arg5[%c368, %c0_25] : memref<2048x256xbf16, #tpu.memory_space<vmem>>, vector<16x256xbf16>
    tpu.vector_store %arg5[%c368, %c0_25], %51 {strides = array<i32>} : memref<2048x256xbf16, #tpu.memory_space<vmem>>, vector<16x256xbf16>,
    %53 = vector.extract_strided_slice %4 {offsets = [0, 36], sizes = [16, 256], strides = [1, 1]} : vector<16x640xbf16> to vector<16x256xbf16>
    %c384 = arith.constant 384 : index
    %c0_26 = arith.constant 0 : index
    %54 = vector.load %arg5[%c384, %c0_26] : memref<2048x256xbf16, #tpu.memory_space<vmem>>, vector<16x256xbf16>
    tpu.vector_store %arg5[%c384, %c0_26], %53 {strides = array<i32>} : memref<2048x256xbf16, #tpu.memory_space<vmem>>, vector<16x256xbf16>,
    %55 = vector.extract_strided_slice %4 {offsets = [0, 64], sizes = [16, 256], strides = [1, 1]} : vector<16x640xbf16> to vector<16x256xbf16>
    %c400 = arith.constant 400 : index
    %c0_27 = arith.constant 0 : index
    %56 = vector.load %arg5[%c400, %c0_27] : memref<2048x256xbf16, #tpu.memory_space<vmem>>, vector<16x256xbf16>
    tpu.vector_store %arg5[%c400, %c0_27], %55 {strides = array<i32>} : memref<2048x256xbf16, #tpu.memory_space<vmem>>, vector<16x256xbf16>,
    %57 = vector.extract_strided_slice %4 {offsets = [0, 65], sizes = [16, 256], strides = [1, 1]} : vector<16x640xbf16> to vector<16x256xbf16>
    %c416 = arith.constant 416 : index
    %c0_28 = arith.constant 0 : index
    %58 = vector.load %arg5[%c416, %c0_28] : memref<2048x256xbf16, #tpu.memory_space<vmem>>, vector<16x256xbf16>
    tpu.vector_store %arg5[%c416, %c0_28], %57 {strides = array<i32>} : memref<2048x256xbf16, #tpu.memory_space<vmem>>, vector<16x256xbf16>,
    %59 = vector.extract_strided_slice %4 {offsets = [0, 66], sizes = [16, 256], strides = [1, 1]} : vector<16x640xbf16> to vector<16x256xbf16>
    %c432 = arith.constant 432 : index
    %c0_29 = arith.constant 0 : index
    %60 = vector.load %arg5[%c432, %c0_29] : memref<2048x256xbf16, #tpu.memory_space<vmem>>, vector<16x256xbf16>
    tpu.vector_store %arg5[%c432, %c0_29], %59 {strides = array<i32>} : memref<2048x256xbf16, #tpu.memory_space<vmem>>, vector<16x256xbf16>,
    %61 = vector.extract_strided_slice %4 {offsets = [0, 67], sizes = [16, 256], strides = [1, 1]} : vector<16x640xbf16> to vector<16x256xbf16>
    %c448 = arith.constant 448 : index
    %c0_30 = arith.constant 0 : index
    %62 = vector.load %arg5[%c448, %c0_30] : memref<2048x256xbf16, #tpu.memory_space<vmem>>, vector<16x256xbf16>
    tpu.vector_store %arg5[%c448, %c0_30], %61 {strides = array<i32>} : memref<2048x256xbf16, #tpu.memory_space<vmem>>, vector<16x256xbf16>,
    %63 = vector.extract_strided_slice %4 {offsets = [0, 68], sizes = [16, 256], strides = [1, 1]} : vector<16x640xbf16> to vector<16x256xbf16>
    %c464 = arith.constant 464 : index
    %c0_31 = arith.constant 0 : index
    %64 = vector.load %arg5[%c464, %c0_31] : memref<2048x256xbf16, #tpu.memory_space<vmem>>, vector<16x256xbf16>
    tpu.vector_store %arg5[%c464, %c0_31], %63 {strides = array<i32>} : memref<2048x256xbf16, #tpu.memory_space<vmem>>, vector<16x256xbf16>,
    %65 = vector.extract_strided_slice %4 {offsets = [0, 72], sizes = [16, 256], strides = [1, 1]} : vector<16x640xbf16> to vector<16x256xbf16>
    %c480 = arith.constant 480 : index
    %c0_32 = arith.constant 0 : index
    %66 = vector.load %arg5[%c480, %c0_32] : memref<2048x256xbf16, #tpu.memory_space<vmem>>, vector<16x256xbf16>
    tpu.vector_store %arg5[%c480, %c0_32], %65 {strides = array<i32>} : memref<2048x256xbf16, #tpu.memory_space<vmem>>, vector<16x256xbf16>,
    %67 = vector.extract_strided_slice %4 {offsets = [0, 73], sizes = [16, 256], strides = [1, 1]} : vector<16x640xbf16> to vector<16x256xbf16>
    %c496 = arith.constant 496 : index
    %c0_33 = arith.constant 0 : index
    %68 = vector.load %arg5[%c496, %c0_33] : memref<2048x256xbf16, #tpu.memory_space<vmem>>, vector<16x256xbf16>
    tpu.vector_store %arg5[%c496, %c0_33], %67 {strides = array<i32>} : memref<2048x256xbf16, #tpu.memory_space<vmem>>, vector<16x256xbf16>,
    %69 = vector.extract_strided_slice %4 {offsets = [0, 74], sizes = [16, 256], strides = [1, 1]} : vector<16x640xbf16> to vector<16x256xbf16>
    %c512 = arith.constant 512 : index
    %c0_34 = arith.constant 0 : index
    %70 = vector.load %arg5[%c512, %c0_34] : memref<2048x256xbf16, #tpu.memory_space<vmem>>, vector<16x256xbf16>
    tpu.vector_store %arg5[%c512, %c0_34], %69 {strides = array<i32>} : memref<2048x256xbf16, #tpu.memory_space<vmem>>, vector<16x256xbf16>,
    %71 = vector.extract_strided_slice %4 {offsets = [0, 75], sizes = [16, 256], strides = [1, 1]} : vector<16x640xbf16> to vector<16x256xbf16>
    %c528 = arith.constant 528 : index
    %c0_35 = arith.constant 0 : index
    %72 = vector.load %arg5[%c528, %c0_35] : memref<2048x256xbf16, #tpu.memory_space<vmem>>, vector<16x256xbf16>
    tpu.vector_store %arg5[%c528, %c0_35], %71 {strides = array<i32>} : memref<2048x256xbf16, #tpu.memory_space<vmem>>, vector<16x256xbf16>,
    %73 = vector.extract_strided_slice %4 {offsets = [0, 76], sizes = [16, 256], strides = [1, 1]} : vector<16x640xbf16> to vector<16x256xbf16>
    %c544 = arith.constant 544 : index
    %c0_36 = arith.constant 0 : index
    %74 = vector.load %arg5[%c544, %c0_36] : memref<2048x256xbf16, #tpu.memory_space<vmem>>, vector<16x256xbf16>
    tpu.vector_store %arg5[%c544, %c0_36], %73 {strides = array<i32>} : memref<2048x256xbf16, #tpu.memory_space<vmem>>, vector<16x256xbf16>,
    %75 = vector.extract_strided_slice %4 {offsets = [0, 80], sizes = [16, 256], strides = [1, 1]} : vector<16x640xbf16> to vector<16x256xbf16>
    %c560 = arith.constant 560 : index
    %c0_37 = arith.constant 0 : index
    %76 = vector.load %arg5[%c560, %c0_37] : memref<2048x256xbf16, #tpu.memory_space<vmem>>, vector<16x256xbf16>
    tpu.vector_store %arg5[%c560, %c0_37], %75 {strides = array<i32>} : memref<2048x256xbf16, #tpu.memory_space<vmem>>, vector<16x256xbf16>,
    %77 = vector.extract_strided_slice %4 {offsets = [0, 81], sizes = [16, 256], strides = [1, 1]} : vector<16x640xbf16> to vector<16x256xbf16>
    %c576 = arith.constant 576 : index
    %c0_38 = arith.constant 0 : index
    %78 = vector.load %arg5[%c576, %c0_38] : memref<2048x256xbf16, #tpu.memory_space<vmem>>, vector<16x256xbf16>
    tpu.vector_store %arg5[%c576, %c0_38], %77 {strides = array<i32>} : memref<2048x256xbf16, #tpu.memory_space<vmem>>, vector<16x256xbf16>,
    %79 = vector.extract_strided_slice %4 {offsets = [0, 82], sizes = [16, 256], strides = [1, 1]} : vector<16x640xbf16> to vector<16x256xbf16>
    %c592 = arith.constant 592 : index
    %c0_39 = arith.constant 0 : index
    %80 = vector.load %arg5[%c592, %c0_39] : memref<2048x256xbf16, #tpu.memory_space<vmem>>, vector<16x256xbf16>
    tpu.vector_store %arg5[%c592, %c0_39], %79 {strides = array<i32>} : memref<2048x256xbf16, #tpu.memory_space<vmem>>, vector<16x256xbf16>,
    %81 = vector.extract_strided_slice %4 {offsets = [0, 83], sizes = [16, 256], strides = [1, 1]} : vector<16x640xbf16> to vector<16x256xbf16>
    %c608 = arith.constant 608 : index
    %c0_40 = arith.constant 0 : index
    %82 = vector.load %arg5[%c608, %c0_40] : memref<2048x256xbf16, #tpu.memory_space<vmem>>, vector<16x256xbf16>
    tpu.vector_store %arg5[%c608, %c0_40], %81 {strides = array<i32>} : memref<2048x256xbf16, #tpu.memory_space<vmem>>, vector<16x256xbf16>,
    %83 = vector.extract_strided_slice %4 {offsets = [0, 84], sizes = [16, 256], strides = [1, 1]} : vector<16x640xbf16> to vector<16x256xbf16>
    %c624 = arith.constant 624 : index
    %c0_41 = arith.constant 0 : index
    %84 = vector.load %arg5[%c624, %c0_41] : memref<2048x256xbf16, #tpu.memory_space<vmem>>, vector<16x256xbf16>
    tpu.vector_store %arg5[%c624, %c0_41], %83 {strides = array<i32>} : memref<2048x256xbf16, #tpu.memory_space<vmem>>, vector<16x256xbf16>,
    %85 = vector.extract_strided_slice %4 {offsets = [0, 88], sizes = [16, 256], strides = [1, 1]} : vector<16x640xbf16> to vector<16x256xbf16>
    %c640 = arith.constant 640 : index
    %c0_42 = arith.constant 0 : index
    %86 = vector.load %arg5[%c640, %c0_42] : memref<2048x256xbf16, #tpu.memory_space<vmem>>, vector<16x256xbf16>
    tpu.vector_store %arg5[%c640, %c0_42], %85 {strides = array<i32>} : memref<2048x256xbf16, #tpu.memory_space<vmem>>, vector<16x256xbf16>,
    %87 = vector.extract_strided_slice %4 {offsets = [0, 89], sizes = [16, 256], strides = [1, 1]} : vector<16x640xbf16> to vector<16x256xbf16>
    %c656 = arith.constant 656 : index
    %c0_43 = arith.constant 0 : index
    %88 = vector.load %arg5[%c656, %c0_43] : memref<2048x256xbf16, #tpu.memory_space<vmem>>, vector<16x256xbf16>
    tpu.vector_store %arg5[%c656, %c0_43], %87 {strides = array<i32>} : memref<2048x256xbf16, #tpu.memory_space<vmem>>, vector<16x256xbf16>,
    %89 = vector.extract_strided_slice %4 {offsets = [0, 90], sizes = [16, 256], strides = [1, 1]} : vector<16x640xbf16> to vector<16x256xbf16>
    %c672 = arith.constant 672 : index
    %c0_44 = arith.constant 0 : index
    %90 = vector.load %arg5[%c672, %c0_44] : memref<2048x256xbf16, #tpu.memory_space<vmem>>, vector<16x256xbf16>
    tpu.vector_store %arg5[%c672, %c0_44], %89 {strides = array<i32>} : memref<2048x256xbf16, #tpu.memory_space<vmem>>, vector<16x256xbf16>,
    %91 = vector.extract_strided_slice %4 {offsets = [0, 91], sizes = [16, 256], strides = [1, 1]} : vector<16x640xbf16> to vector<16x256xbf16>
    %c688 = arith.constant 688 : index
    %c0_45 = arith.constant 0 : index
    %92 = vector.load %arg5[%c688, %c0_45] : memref<2048x256xbf16, #tpu.memory_space<vmem>>, vector<16x256xbf16>
    tpu.vector_store %arg5[%c688, %c0_45], %91 {strides = array<i32>} : memref<2048x256xbf16, #tpu.memory_space<vmem>>, vector<16x256xbf16>,
    %93 = vector.extract_strided_slice %4 {offsets = [0, 92], sizes = [16, 256], strides = [1, 1]} : vector<16x640xbf16> to vector<16x256xbf16>
    %c704 = arith.constant 704 : index
    %c0_46 = arith.constant 0 : index
    %94 = vector.load %arg5[%c704, %c0_46] : memref<2048x256xbf16, #tpu.memory_space<vmem>>, vector<16x256xbf16>
    tpu.vector_store %arg5[%c704, %c0_46], %93 {strides = array<i32>} : memref<2048x256xbf16, #tpu.memory_space<vmem>>, vector<16x256xbf16>,
    %95 = vector.extract_strided_slice %4 {offsets = [0, 96], sizes = [16, 256], strides = [1, 1]} : vector<16x640xbf16> to vector<16x256xbf16>
    %c720 = arith.constant 720 : index
    %c0_47 = arith.constant 0 : index
    %96 = vector.load %arg5[%c720, %c0_47] : memref<2048x256xbf16, #tpu.memory_space<vmem>>, vector<16x256xbf16>
    tpu.vector_store %arg5[%c720, %c0_47], %95 {strides = array<i32>} : memref<2048x256xbf16, #tpu.memory_space<vmem>>, vector<16x256xbf16>,
    %97 = vector.extract_strided_slice %4 {offsets = [0, 97], sizes = [16, 256], strides = [1, 1]} : vector<16x640xbf16> to vector<16x256xbf16>
    %c736 = arith.constant 736 : index
    %c0_48 = arith.constant 0 : index
    %98 = vector.load %arg5[%c736, %c0_48] : memref<2048x256xbf16, #tpu.memory_space<vmem>>, vector<16x256xbf16>
    tpu.vector_store %arg5[%c736, %c0_48], %97 {strides = array<i32>} : memref<2048x256xbf16, #tpu.memory_space<vmem>>, vector<16x256xbf16>,
    %99 = vector.extract_strided_slice %4 {offsets = [0, 98], sizes = [16, 256], strides = [1, 1]} : vector<16x640xbf16> to vector<16x256xbf16>
    %c752 = arith.constant 752 : index
    %c0_49 = arith.constant 0 : index
    %100 = vector.load %arg5[%c752, %c0_49] : memref<2048x256xbf16, #tpu.memory_space<vmem>>, vector<16x256xbf16>
    tpu.vector_store %arg5[%c752, %c0_49], %99 {strides = array<i32>} : memref<2048x256xbf16, #tpu.memory_space<vmem>>, vector<16x256xbf16>,
    %101 = vector.extract_strided_slice %4 {offsets = [0, 99], sizes = [16, 256], strides = [1, 1]} : vector<16x640xbf16> to vector<16x256xbf16>
    %c768 = arith.constant 768 : index
    %c0_50 = arith.constant 0 : index
    %102 = vector.load %arg5[%c768, %c0_50] : memref<2048x256xbf16, #tpu.memory_space<vmem>>, vector<16x256xbf16>
    tpu.vector_store %arg5[%c768, %c0_50], %101 {strides = array<i32>} : memref<2048x256xbf16, #tpu.memory_space<vmem>>, vector<16x256xbf16>,
    %103 = vector.extract_strided_slice %4 {offsets = [0, 100], sizes = [16, 256], strides = [1, 1]} : vector<16x640xbf16> to vector<16x256xbf16>
    %c784 = arith.constant 784 : index
    %c0_51 = arith.constant 0 : index
    %104 = vector.load %arg5[%c784, %c0_51] : memref<2048x256xbf16, #tpu.memory_space<vmem>>, vector<16x256xbf16>
    tpu.vector_store %arg5[%c784, %c0_51], %103 {strides = array<i32>} : memref<2048x256xbf16, #tpu.memory_space<vmem>>, vector<16x256xbf16>,
    %105 = vector.extract_strided_slice %4 {offsets = [0, 128], sizes = [16, 256], strides = [1, 1]} : vector<16x640xbf16> to vector<16x256xbf16>
    %c800 = arith.constant 800 : index
    %c0_52 = arith.constant 0 : index
    %106 = vector.load %arg5[%c800, %c0_52] : memref<2048x256xbf16, #tpu.memory_space<vmem>>, vector<16x256xbf16>
    tpu.vector_store %arg5[%c800, %c0_52], %105 {strides = array<i32>} : memref<2048x256xbf16, #tpu.memory_space<vmem>>, vector<16x256xbf16>,
    %107 = vector.extract_strided_slice %4 {offsets = [0, 129], sizes = [16, 256], strides = [1, 1]} : vector<16x640xbf16> to vector<16x256xbf16>
    %c816 = arith.constant 816 : index
    %c0_53 = arith.constant 0 : index
    %108 = vector.load %arg5[%c816, %c0_53] : memref<2048x256xbf16, #tpu.memory_space<vmem>>, vector<16x256xbf16>
    tpu.vector_store %arg5[%c816, %c0_53], %107 {strides = array<i32>} : memref<2048x256xbf16, #tpu.memory_space<vmem>>, vector<16x256xbf16>,
    %109 = vector.extract_strided_slice %4 {offsets = [0, 130], sizes = [16, 256], strides = [1, 1]} : vector<16x640xbf16> to vector<16x256xbf16>
    %c832 = arith.constant 832 : index
    %c0_54 = arith.constant 0 : index
    %110 = vector.load %arg5[%c832, %c0_54] : memref<2048x256xbf16, #tpu.memory_space<vmem>>, vector<16x256xbf16>
    tpu.vector_store %arg5[%c832, %c0_54], %109 {strides = array<i32>} : memref<2048x256xbf16, #tpu.memory_space<vmem>>, vector<16x256xbf16>,
    %111 = vector.extract_strided_slice %4 {offsets = [0, 131], sizes = [16, 256], strides = [1, 1]} : vector<16x640xbf16> to vector<16x256xbf16>
    %c848 = arith.constant 848 : index
    %c0_55 = arith.constant 0 : index
    %112 = vector.load %arg5[%c848, %c0_55] : memref<2048x256xbf16, #tpu.memory_space<vmem>>, vector<16x256xbf16>
    tpu.vector_store %arg5[%c848, %c0_55], %111 {strides = array<i32>} : memref<2048x256xbf16, #tpu.memory_space<vmem>>, vector<16x256xbf16>,
    %113 = vector.extract_strided_slice %4 {offsets = [0, 132], sizes = [16, 256], strides = [1, 1]} : vector<16x640xbf16> to vector<16x256xbf16>
    %c864 = arith.constant 864 : index
    %c0_56 = arith.constant 0 : index
    %114 = vector.load %arg5[%c864, %c0_56] : memref<2048x256xbf16, #tpu.memory_space<vmem>>, vector<16x256xbf16>
    tpu.vector_store %arg5[%c864, %c0_56], %113 {strides = array<i32>} : memref<2048x256xbf16, #tpu.memory_space<vmem>>, vector<16x256xbf16>,
    %115 = vector.extract_strided_slice %4 {offsets = [0, 136], sizes = [16, 256], strides = [1, 1]} : vector<16x640xbf16> to vector<16x256xbf16>
    %c880 = arith.constant 880 : index
    %c0_57 = arith.constant 0 : index
    %116 = vector.load %arg5[%c880, %c0_57] : memref<2048x256xbf16, #tpu.memory_space<vmem>>, vector<16x256xbf16>
    tpu.vector_store %arg5[%c880, %c0_57], %115 {strides = array<i32>} : memref<2048x256xbf16, #tpu.memory_space<vmem>>, vector<16x256xbf16>,
    %117 = vector.extract_strided_slice %4 {offsets = [0, 137], sizes = [16, 256], strides = [1, 1]} : vector<16x640xbf16> to vector<16x256xbf16>
    %c896 = arith.constant 896 : index
    %c0_58 = arith.constant 0 : index
    %118 = vector.load %arg5[%c896, %c0_58] : memref<2048x256xbf16, #tpu.memory_space<vmem>>, vector<16x256xbf16>
    tpu.vector_store %arg5[%c896, %c0_58], %117 {strides = array<i32>} : memref<2048x256xbf16, #tpu.memory_space<vmem>>, vector<16x256xbf16>,
    %119 = vector.extract_strided_slice %4 {offsets = [0, 138], sizes = [16, 256], strides = [1, 1]} : vector<16x640xbf16> to vector<16x256xbf16>
    %c912 = arith.constant 912 : index
    %c0_59 = arith.constant 0 : index
    %120 = vector.load %arg5[%c912, %c0_59] : memref<2048x256xbf16, #tpu.memory_space<vmem>>, vector<16x256xbf16>
    tpu.vector_store %arg5[%c912, %c0_59], %119 {strides = array<i32>} : memref<2048x256xbf16, #tpu.memory_space<vmem>>, vector<16x256xbf16>,
    %121 = vector.extract_strided_slice %4 {offsets = [0, 139], sizes = [16, 256], strides = [1, 1]} : vector<16x640xbf16> to vector<16x256xbf16>
    %c928 = arith.constant 928 : index
    %c0_60 = arith.constant 0 : index
    %122 = vector.load %arg5[%c928, %c0_60] : memref<2048x256xbf16, #tpu.memory_space<vmem>>, vector<16x256xbf16>
    tpu.vector_store %arg5[%c928, %c0_60], %121 {strides = array<i32>} : memref<2048x256xbf16, #tpu.memory_space<vmem>>, vector<16x256xbf16>,
    %123 = vector.extract_strided_slice %4 {offsets = [0, 140], sizes = [16, 256], strides = [1, 1]} : vector<16x640xbf16> to vector<16x256xbf16>
    %c944 = arith.constant 944 : index
    %c0_61 = arith.constant 0 : index
    %124 = vector.load %arg5[%c944, %c0_61] : memref<2048x256xbf16, #tpu.memory_space<vmem>>, vector<16x256xbf16>
    tpu.vector_store %arg5[%c944, %c0_61], %123 {strides = array<i32>} : memref<2048x256xbf16, #tpu.memory_space<vmem>>, vector<16x256xbf16>,
    %125 = vector.extract_strided_slice %4 {offsets = [0, 144], sizes = [16, 256], strides = [1, 1]} : vector<16x640xbf16> to vector<16x256xbf16>
    %c960 = arith.constant 960 : index
    %c0_62 = arith.constant 0 : index
    %126 = vector.load %arg5[%c960, %c0_62] : memref<2048x256xbf16, #tpu.memory_space<vmem>>, vector<16x256xbf16>
    tpu.vector_store %arg5[%c960, %c0_62], %125 {strides = array<i32>} : memref<2048x256xbf16, #tpu.memory_space<vmem>>, vector<16x256xbf16>,
    %127 = vector.extract_strided_slice %4 {offsets = [0, 145], sizes = [16, 256], strides = [1, 1]} : vector<16x640xbf16> to vector<16x256xbf16>
    %c976 = arith.constant 976 : index
    %c0_63 = arith.constant 0 : index
    %128 = vector.load %arg5[%c976, %c0_63] : memref<2048x256xbf16, #tpu.memory_space<vmem>>, vector<16x256xbf16>
    tpu.vector_store %arg5[%c976, %c0_63], %127 {strides = array<i32>} : memref<2048x256xbf16, #tpu.memory_space<vmem>>, vector<16x256xbf16>,
    %129 = vector.extract_strided_slice %4 {offsets = [0, 146], sizes = [16, 256], strides = [1, 1]} : vector<16x640xbf16> to vector<16x256xbf16>
    %c992 = arith.constant 992 : index
    %c0_64 = arith.constant 0 : index
    %130 = vector.load %arg5[%c992, %c0_64] : memref<2048x256xbf16, #tpu.memory_space<vmem>>, vector<16x256xbf16>
    tpu.vector_store %arg5[%c992, %c0_64], %129 {strides = array<i32>} : memref<2048x256xbf16, #tpu.memory_space<vmem>>, vector<16x256xbf16>,
    %131 = vector.extract_strided_slice %4 {offsets = [0, 147], sizes = [16, 256], strides = [1, 1]} : vector<16x640xbf16> to vector<16x256xbf16>
    %c1008 = arith.constant 1008 : index
    %c0_65 = arith.constant 0 : index
    %132 = vector.load %arg5[%c1008, %c0_65] : memref<2048x256xbf16, #tpu.memory_space<vmem>>, vector<16x256xbf16>
    tpu.vector_store %arg5[%c1008, %c0_65], %131 {strides = array<i32>} : memref<2048x256xbf16, #tpu.memory_space<vmem>>, vector<16x256xbf16>,
    %133 = vector.extract_strided_slice %4 {offsets = [0, 148], sizes = [16, 256], strides = [1, 1]} : vector<16x640xbf16> to vector<16x256xbf16>
    %c1024 = arith.constant 1024 : index
    %c0_66 = arith.constant 0 : index
    %134 = vector.load %arg5[%c1024, %c0_66] : memref<2048x256xbf16, #tpu.memory_space<vmem>>, vector<16x256xbf16>
    tpu.vector_store %arg5[%c1024, %c0_66], %133 {strides = array<i32>} : memref<2048x256xbf16, #tpu.memory_space<vmem>>, vector<16x256xbf16>,
    %135 = vector.extract_strided_slice %4 {offsets = [0, 152], sizes = [16, 256], strides = [1, 1]} : vector<16x640xbf16> to vector<16x256xbf16>
    %c1040 = arith.constant 1040 : index
    %c0_67 = arith.constant 0 : index
    %136 = vector.load %arg5[%c1040, %c0_67] : memref<2048x256xbf16, #tpu.memory_space<vmem>>, vector<16x256xbf16>
    tpu.vector_store %arg5[%c1040, %c0_67], %135 {strides = array<i32>} : memref<2048x256xbf16, #tpu.memory_space<vmem>>, vector<16x256xbf16>,
    %137 = vector.extract_strided_slice %4 {offsets = [0, 153], sizes = [16, 256], strides = [1, 1]} : vector<16x640xbf16> to vector<16x256xbf16>
    %c1056 = arith.constant 1056 : index
    %c0_68 = arith.constant 0 : index
    %138 = vector.load %arg5[%c1056, %c0_68] : memref<2048x256xbf16, #tpu.memory_space<vmem>>, vector<16x256xbf16>
    tpu.vector_store %arg5[%c1056, %c0_68], %137 {strides = array<i32>} : memref<2048x256xbf16, #tpu.memory_space<vmem>>, vector<16x256xbf16>,
    %139 = vector.extract_strided_slice %4 {offsets = [0, 154], sizes = [16, 256], strides = [1, 1]} : vector<16x640xbf16> to vector<16x256xbf16>
    %c1072 = arith.constant 1072 : index
    %c0_69 = arith.constant 0 : index
    %140 = vector.load %arg5[%c1072, %c0_69] : memref<2048x256xbf16, #tpu.memory_space<vmem>>, vector<16x256xbf16>
    tpu.vector_store %arg5[%c1072, %c0_69], %139 {strides = array<i32>} : memref<2048x256xbf16, #tpu.memory_space<vmem>>, vector<16x256xbf16>,
    %141 = vector.extract_strided_slice %4 {offsets = [0, 155], sizes = [16, 256], strides = [1, 1]} : vector<16x640xbf16> to vector<16x256xbf16>
    %c1088 = arith.constant 1088 : index
    %c0_70 = arith.constant 0 : index
    %142 = vector.load %arg5[%c1088, %c0_70] : memref<2048x256xbf16, #tpu.memory_space<vmem>>, vector<16x256xbf16>
    tpu.vector_store %arg5[%c1088, %c0_70], %141 {strides = array<i32>} : memref<2048x256xbf16, #tpu.memory_space<vmem>>, vector<16x256xbf16>,
    %143 = vector.extract_strided_slice %4 {offsets = [0, 156], sizes = [16, 256], strides = [1, 1]} : vector<16x640xbf16> to vector<16x256xbf16>
    %c1104 = arith.constant 1104 : index
    %c0_71 = arith.constant 0 : index
    %144 = vector.load %arg5[%c1104, %c0_71] : memref<2048x256xbf16, #tpu.memory_space<vmem>>, vector<16x256xbf16>
    tpu.vector_store %arg5[%c1104, %c0_71], %143 {strides = array<i32>} : memref<2048x256xbf16, #tpu.memory_space<vmem>>, vector<16x256xbf16>,
    %145 = vector.extract_strided_slice %4 {offsets = [0, 160], sizes = [16, 256], strides = [1, 1]} : vector<16x640xbf16> to vector<16x256xbf16>
    %c1120 = arith.constant 1120 : index
    %c0_72 = arith.constant 0 : index
    %146 = vector.load %arg5[%c1120, %c0_72] : memref<2048x256xbf16, #tpu.memory_space<vmem>>, vector<16x256xbf16>
    tpu.vector_store %arg5[%c1120, %c0_72], %145 {strides = array<i32>} : memref<2048x256xbf16, #tpu.memory_space<vmem>>, vector<16x256xbf16>,
    %147 = vector.extract_strided_slice %4 {offsets = [0, 161], sizes = [16, 256], strides = [1, 1]} : vector<16x640xbf16> to vector<16x256xbf16>
    %c1136 = arith.constant 1136 : index
    %c0_73 = arith.constant 0 : index
    %148 = vector.load %arg5[%c1136, %c0_73] : memref<2048x256xbf16, #tpu.memory_space<vmem>>, vector<16x256xbf16>
    tpu.vector_store %arg5[%c1136, %c0_73], %147 {strides = array<i32>} : memref<2048x256xbf16, #tpu.memory_space<vmem>>, vector<16x256xbf16>,
    %149 = vector.extract_strided_slice %4 {offsets = [0, 162], sizes = [16, 256], strides = [1, 1]} : vector<16x640xbf16> to vector<16x256xbf16>
    %c1152 = arith.constant 1152 : index
    %c0_74 = arith.constant 0 : index
    %150 = vector.load %arg5[%c1152, %c0_74] : memref<2048x256xbf16, #tpu.memory_space<vmem>>, vector<16x256xbf16>
    tpu.vector_store %arg5[%c1152, %c0_74], %149 {strides = array<i32>} : memref<2048x256xbf16, #tpu.memory_space<vmem>>, vector<16x256xbf16>,
    %151 = vector.extract_strided_slice %4 {offsets = [0, 163], sizes = [16, 256], strides = [1, 1]} : vector<16x640xbf16> to vector<16x256xbf16>
    %c1168 = arith.constant 1168 : index
    %c0_75 = arith.constant 0 : index
    %152 = vector.load %arg5[%c1168, %c0_75] : memref<2048x256xbf16, #tpu.memory_space<vmem>>, vector<16x256xbf16>
    tpu.vector_store %arg5[%c1168, %c0_75], %151 {strides = array<i32>} : memref<2048x256xbf16, #tpu.memory_space<vmem>>, vector<16x256xbf16>,
    %153 = vector.extract_strided_slice %4 {offsets = [0, 164], sizes = [16, 256], strides = [1, 1]} : vector<16x640xbf16> to vector<16x256xbf16>
    %c1184 = arith.constant 1184 : index
    %c0_76 = arith.constant 0 : index
    %154 = vector.load %arg5[%c1184, %c0_76] : memref<2048x256xbf16, #tpu.memory_space<vmem>>, vector<16x256xbf16>
    tpu.vector_store %arg5[%c1184, %c0_76], %153 {strides = array<i32>} : memref<2048x256xbf16, #tpu.memory_space<vmem>>, vector<16x256xbf16>,
    %155 = vector.extract_strided_slice %4 {offsets = [0, 192], sizes = [16, 256], strides = [1, 1]} : vector<16x640xbf16> to vector<16x256xbf16>
    %c1200 = arith.constant 1200 : index
    %c0_77 = arith.constant 0 : index
    %156 = vector.load %arg5[%c1200, %c0_77] : memref<2048x256xbf16, #tpu.memory_space<vmem>>, vector<16x256xbf16>
    tpu.vector_store %arg5[%c1200, %c0_77], %155 {strides = array<i32>} : memref<2048x256xbf16, #tpu.memory_space<vmem>>, vector<16x256xbf16>,
    %157 = vector.extract_strided_slice %4 {offsets = [0, 193], sizes = [16, 256], strides = [1, 1]} : vector<16x640xbf16> to vector<16x256xbf16>
    %c1216 = arith.constant 1216 : index
    %c0_78 = arith.constant 0 : index
    %158 = vector.load %arg5[%c1216, %c0_78] : memref<2048x256xbf16, #tpu.memory_space<vmem>>, vector<16x256xbf16>
    tpu.vector_store %arg5[%c1216, %c0_78], %157 {strides = array<i32>} : memref<2048x256xbf16, #tpu.memory_space<vmem>>, vector<16x256xbf16>,
    %159 = vector.extract_strided_slice %4 {offsets = [0, 194], sizes = [16, 256], strides = [1, 1]} : vector<16x640xbf16> to vector<16x256xbf16>
    %c1232 = arith.constant 1232 : index
    %c0_79 = arith.constant 0 : index
    %160 = vector.load %arg5[%c1232, %c0_79] : memref<2048x256xbf16, #tpu.memory_space<vmem>>, vector<16x256xbf16>
    tpu.vector_store %arg5[%c1232, %c0_79], %159 {strides = array<i32>} : memref<2048x256xbf16, #tpu.memory_space<vmem>>, vector<16x256xbf16>,
    %161 = vector.extract_strided_slice %4 {offsets = [0, 195], sizes = [16, 256], strides = [1, 1]} : vector<16x640xbf16> to vector<16x256xbf16>
    %c1248 = arith.constant 1248 : index
    %c0_80 = arith.constant 0 : index
    %162 = vector.load %arg5[%c1248, %c0_80] : memref<2048x256xbf16, #tpu.memory_space<vmem>>, vector<16x256xbf16>
    tpu.vector_store %arg5[%c1248, %c0_80], %161 {strides = array<i32>} : memref<2048x256xbf16, #tpu.memory_space<vmem>>, vector<16x256xbf16>,
    %163 = vector.extract_strided_slice %4 {offsets = [0, 196], sizes = [16, 256], strides = [1, 1]} : vector<16x640xbf16> to vector<16x256xbf16>
    %c1264 = arith.constant 1264 : index
    %c0_81 = arith.constant 0 : index
    %164 = vector.load %arg5[%c1264, %c0_81] : memref<2048x256xbf16, #tpu.memory_space<vmem>>, vector<16x256xbf16>
    tpu.vector_store %arg5[%c1264, %c0_81], %163 {strides = array<i32>} : memref<2048x256xbf16, #tpu.memory_space<vmem>>, vector<16x256xbf16>,
    %165 = vector.extract_strided_slice %4 {offsets = [0, 200], sizes = [16, 256], strides = [1, 1]} : vector<16x640xbf16> to vector<16x256xbf16>
    %c1280 = arith.constant 1280 : index
    %c0_82 = arith.constant 0 : index
    %166 = vector.load %arg5[%c1280, %c0_82] : memref<2048x256xbf16, #tpu.memory_space<vmem>>, vector<16x256xbf16>
    tpu.vector_store %arg5[%c1280, %c0_82], %165 {strides = array<i32>} : memref<2048x256xbf16, #tpu.memory_space<vmem>>, vector<16x256xbf16>,
    %167 = vector.extract_strided_slice %4 {offsets = [0, 201], sizes = [16, 256], strides = [1, 1]} : vector<16x640xbf16> to vector<16x256xbf16>
    %c1296 = arith.constant 1296 : index
    %c0_83 = arith.constant 0 : index
    %168 = vector.load %arg5[%c1296, %c0_83] : memref<2048x256xbf16, #tpu.memory_space<vmem>>, vector<16x256xbf16>
    tpu.vector_store %arg5[%c1296, %c0_83], %167 {strides = array<i32>} : memref<2048x256xbf16, #tpu.memory_space<vmem>>, vector<16x256xbf16>,
    %169 = vector.extract_strided_slice %4 {offsets = [0, 202], sizes = [16, 256], strides = [1, 1]} : vector<16x640xbf16> to vector<16x256xbf16>
    %c1312 = arith.constant 1312 : index
    %c0_84 = arith.constant 0 : index
    %170 = vector.load %arg5[%c1312, %c0_84] : memref<2048x256xbf16, #tpu.memory_space<vmem>>, vector<16x256xbf16>
    tpu.vector_store %arg5[%c1312, %c0_84], %169 {strides = array<i32>} : memref<2048x256xbf16, #tpu.memory_space<vmem>>, vector<16x256xbf16>,
    %171 = vector.extract_strided_slice %4 {offsets = [0, 203], sizes = [16, 256], strides = [1, 1]} : vector<16x640xbf16> to vector<16x256xbf16>
    %c1328 = arith.constant 1328 : index
    %c0_85 = arith.constant 0 : index
    %172 = vector.load %arg5[%c1328, %c0_85] : memref<2048x256xbf16, #tpu.memory_space<vmem>>, vector<16x256xbf16>
    tpu.vector_store %arg5[%c1328, %c0_85], %171 {strides = array<i32>} : memref<2048x256xbf16, #tpu.memory_space<vmem>>, vector<16x256xbf16>,
    %173 = vector.extract_strided_slice %4 {offsets = [0, 204], sizes = [16, 256], strides = [1, 1]} : vector<16x640xbf16> to vector<16x256xbf16>
    %c1344 = arith.constant 1344 : index
    %c0_86 = arith.constant 0 : index
    %174 = vector.load %arg5[%c1344, %c0_86] : memref<2048x256xbf16, #tpu.memory_space<vmem>>, vector<16x256xbf16>
    tpu.vector_store %arg5[%c1344, %c0_86], %173 {strides = array<i32>} : memref<2048x256xbf16, #tpu.memory_space<vmem>>, vector<16x256xbf16>,
    %175 = vector.extract_strided_slice %4 {offsets = [0, 208], sizes = [16, 256], strides = [1, 1]} : vector<16x640xbf16> to vector<16x256xbf16>
    %c1360 = arith.constant 1360 : index
    %c0_87 = arith.constant 0 : index
    %176 = vector.load %arg5[%c1360, %c0_87] : memref<2048x256xbf16, #tpu.memory_space<vmem>>, vector<16x256xbf16>
    tpu.vector_store %arg5[%c1360, %c0_87], %175 {strides = array<i32>} : memref<2048x256xbf16, #tpu.memory_space<vmem>>, vector<16x256xbf16>,
    %177 = vector.extract_strided_slice %4 {offsets = [0, 209], sizes = [16, 256], strides = [1, 1]} : vector<16x640xbf16> to vector<16x256xbf16>
    %c1376 = arith.constant 1376 : index
    %c0_88 = arith.constant 0 : index
    %178 = vector.load %arg5[%c1376, %c0_88] : memref<2048x256xbf16, #tpu.memory_space<vmem>>, vector<16x256xbf16>
    tpu.vector_store %arg5[%c1376, %c0_88], %177 {strides = array<i32>} : memref<2048x256xbf16, #tpu.memory_space<vmem>>, vector<16x256xbf16>,
    %179 = vector.extract_strided_slice %4 {offsets = [0, 210], sizes = [16, 256], strides = [1, 1]} : vector<16x640xbf16> to vector<16x256xbf16>
    %c1392 = arith.constant 1392 : index
    %c0_89 = arith.constant 0 : index
    %180 = vector.load %arg5[%c1392, %c0_89] : memref<2048x256xbf16, #tpu.memory_space<vmem>>, vector<16x256xbf16>
    tpu.vector_store %arg5[%c1392, %c0_89], %179 {strides = array<i32>} : memref<2048x256xbf16, #tpu.memory_space<vmem>>, vector<16x256xbf16>,
    %181 = vector.extract_strided_slice %4 {offsets = [0, 211], sizes = [16, 256], strides = [1, 1]} : vector<16x640xbf16> to vector<16x256xbf16>
    %c1408 = arith.constant 1408 : index
    %c0_90 = arith.constant 0 : index
    %182 = vector.load %arg5[%c1408, %c0_90] : memref<2048x256xbf16, #tpu.memory_space<vmem>>, vector<16x256xbf16>
    tpu.vector_store %arg5[%c1408, %c0_90], %181 {strides = array<i32>} : memref<2048x256xbf16, #tpu.memory_space<vmem>>, vector<16x256xbf16>,
    %183 = vector.extract_strided_slice %4 {offsets = [0, 212], sizes = [16, 256], strides = [1, 1]} : vector<16x640xbf16> to vector<16x256xbf16>
    %c1424 = arith.constant 1424 : index
    %c0_91 = arith.constant 0 : index
    %184 = vector.load %arg5[%c1424, %c0_91] : memref<2048x256xbf16, #tpu.memory_space<vmem>>, vector<16x256xbf16>
    tpu.vector_store %arg5[%c1424, %c0_91], %183 {strides = array<i32>} : memref<2048x256xbf16, #tpu.memory_space<vmem>>, vector<16x256xbf16>,
    %185 = vector.extract_strided_slice %4 {offsets = [0, 216], sizes = [16, 256], strides = [1, 1]} : vector<16x640xbf16> to vector<16x256xbf16>
    %c1440 = arith.constant 1440 : index
    %c0_92 = arith.constant 0 : index
    %186 = vector.load %arg5[%c1440, %c0_92] : memref<2048x256xbf16, #tpu.memory_space<vmem>>, vector<16x256xbf16>
    tpu.vector_store %arg5[%c1440, %c0_92], %185 {strides = array<i32>} : memref<2048x256xbf16, #tpu.memory_space<vmem>>, vector<16x256xbf16>,
    %187 = vector.extract_strided_slice %4 {offsets = [0, 217], sizes = [16, 256], strides = [1, 1]} : vector<16x640xbf16> to vector<16x256xbf16>
    %c1456 = arith.constant 1456 : index
    %c0_93 = arith.constant 0 : index
    %188 = vector.load %arg5[%c1456, %c0_93] : memref<2048x256xbf16, #tpu.memory_space<vmem>>, vector<16x256xbf16>
    tpu.vector_store %arg5[%c1456, %c0_93], %187 {strides = array<i32>} : memref<2048x256xbf16, #tpu.memory_space<vmem>>, vector<16x256xbf16>,
    %189 = vector.extract_strided_slice %4 {offsets = [0, 218], sizes = [16, 256], strides = [1, 1]} : vector<16x640xbf16> to vector<16x256xbf16>
    %c1472 = arith.constant 1472 : index
    %c0_94 = arith.constant 0 : index
    %190 = vector.load %arg5[%c1472, %c0_94] : memref<2048x256xbf16, #tpu.memory_space<vmem>>, vector<16x256xbf16>
    tpu.vector_store %arg5[%c1472, %c0_94], %189 {strides = array<i32>} : memref<2048x256xbf16, #tpu.memory_space<vmem>>, vector<16x256xbf16>,
    %191 = vector.extract_strided_slice %4 {offsets = [0, 219], sizes = [16, 256], strides = [1, 1]} : vector<16x640xbf16> to vector<16x256xbf16>
    %c1488 = arith.constant 1488 : index
    %c0_95 = arith.constant 0 : index
    %192 = vector.load %arg5[%c1488, %c0_95] : memref<2048x256xbf16, #tpu.memory_space<vmem>>, vector<16x256xbf16>
    tpu.vector_store %arg5[%c1488, %c0_95], %191 {strides = array<i32>} : memref<2048x256xbf16, #tpu.memory_space<vmem>>, vector<16x256xbf16>,
    %193 = vector.extract_strided_slice %4 {offsets = [0, 220], sizes = [16, 256], strides = [1, 1]} : vector<16x640xbf16> to vector<16x256xbf16>
    %c1504 = arith.constant 1504 : index
    %c0_96 = arith.constant 0 : index
    %194 = vector.load %arg5[%c1504, %c0_96] : memref<2048x256xbf16, #tpu.memory_space<vmem>>, vector<16x256xbf16>
    tpu.vector_store %arg5[%c1504, %c0_96], %193 {strides = array<i32>} : memref<2048x256xbf16, #tpu.memory_space<vmem>>, vector<16x256xbf16>,
    %195 = vector.extract_strided_slice %4 {offsets = [0, 224], sizes = [16, 256], strides = [1, 1]} : vector<16x640xbf16> to vector<16x256xbf16>
    %c1520 = arith.constant 1520 : index
    %c0_97 = arith.constant 0 : index
    %196 = vector.load %arg5[%c1520, %c0_97] : memref<2048x256xbf16, #tpu.memory_space<vmem>>, vector<16x256xbf16>
    tpu.vector_store %arg5[%c1520, %c0_97], %195 {strides = array<i32>} : memref<2048x256xbf16, #tpu.memory_space<vmem>>, vector<16x256xbf16>,
    %197 = vector.extract_strided_slice %4 {offsets = [0, 225], sizes = [16, 256], strides = [1, 1]} : vector<16x640xbf16> to vector<16x256xbf16>
    %c1536 = arith.constant 1536 : index
    %c0_98 = arith.constant 0 : index
    %198 = vector.load %arg5[%c1536, %c0_98] : memref<2048x256xbf16, #tpu.memory_space<vmem>>, vector<16x256xbf16>
    tpu.vector_store %arg5[%c1536, %c0_98], %197 {strides = array<i32>} : memref<2048x256xbf16, #tpu.memory_space<vmem>>, vector<16x256xbf16>,
    %199 = vector.extract_strided_slice %4 {offsets = [0, 226], sizes = [16, 256], strides = [1, 1]} : vector<16x640xbf16> to vector<16x256xbf16>
    %c1552 = arith.constant 1552 : index
    %c0_99 = arith.constant 0 : index
    %200 = vector.load %arg5[%c1552, %c0_99] : memref<2048x256xbf16, #tpu.memory_space<vmem>>, vector<16x256xbf16>
    tpu.vector_store %arg5[%c1552, %c0_99], %199 {strides = array<i32>} : memref<2048x256xbf16, #tpu.memory_space<vmem>>, vector<16x256xbf16>,
    %201 = vector.extract_strided_slice %4 {offsets = [0, 227], sizes = [16, 256], strides = [1, 1]} : vector<16x640xbf16> to vector<16x256xbf16>
    %c1568 = arith.constant 1568 : index
    %c0_100 = arith.constant 0 : index
    %202 = vector.load %arg5[%c1568, %c0_100] : memref<2048x256xbf16, #tpu.memory_space<vmem>>, vector<16x256xbf16>
    tpu.vector_store %arg5[%c1568, %c0_100], %201 {strides = array<i32>} : memref<2048x256xbf16, #tpu.memory_space<vmem>>, vector<16x256xbf16>,
    %203 = vector.extract_strided_slice %4 {offsets = [0, 228], sizes = [16, 256], strides = [1, 1]} : vector<16x640xbf16> to vector<16x256xbf16>
    %c1584 = arith.constant 1584 : index
    %c0_101 = arith.constant 0 : index
    %204 = vector.load %arg5[%c1584, %c0_101] : memref<2048x256xbf16, #tpu.memory_space<vmem>>, vector<16x256xbf16>
    tpu.vector_store %arg5[%c1584, %c0_101], %203 {strides = array<i32>} : memref<2048x256xbf16, #tpu.memory_space<vmem>>, vector<16x256xbf16>,
    %205 = vector.extract_strided_slice %4 {offsets = [0, 256], sizes = [16, 256], strides = [1, 1]} : vector<16x640xbf16> to vector<16x256xbf16>
    %c1600 = arith.constant 1600 : index
    %c0_102 = arith.constant 0 : index
    %206 = vector.load %arg5[%c1600, %c0_102] : memref<2048x256xbf16, #tpu.memory_space<vmem>>, vector<16x256xbf16>
    tpu.vector_store %arg5[%c1600, %c0_102], %205 {strides = array<i32>} : memref<2048x256xbf16, #tpu.memory_space<vmem>>, vector<16x256xbf16>,
    %207 = vector.extract_strided_slice %4 {offsets = [0, 257], sizes = [16, 256], strides = [1, 1]} : vector<16x640xbf16> to vector<16x256xbf16>
    %c1616 = arith.constant 1616 : index
    %c0_103 = arith.constant 0 : index
    %208 = vector.load %arg5[%c1616, %c0_103] : memref<2048x256xbf16, #tpu.memory_space<vmem>>, vector<16x256xbf16>
    tpu.vector_store %arg5[%c1616, %c0_103], %207 {strides = array<i32>} : memref<2048x256xbf16, #tpu.memory_space<vmem>>, vector<16x256xbf16>,
    %209 = vector.extract_strided_slice %4 {offsets = [0, 258], sizes = [16, 256], strides = [1, 1]} : vector<16x640xbf16> to vector<16x256xbf16>
    %c1632 = arith.constant 1632 : index
    %c0_104 = arith.constant 0 : index
    %210 = vector.load %arg5[%c1632, %c0_104] : memref<2048x256xbf16, #tpu.memory_space<vmem>>, vector<16x256xbf16>
    tpu.vector_store %arg5[%c1632, %c0_104], %209 {strides = array<i32>} : memref<2048x256xbf16, #tpu.memory_space<vmem>>, vector<16x256xbf16>,
    %211 = vector.extract_strided_slice %4 {offsets = [0, 259], sizes = [16, 256], strides = [1, 1]} : vector<16x640xbf16> to vector<16x256xbf16>
    %c1648 = arith.constant 1648 : index
    %c0_105 = arith.constant 0 : index
    %212 = vector.load %arg5[%c1648, %c0_105] : memref<2048x256xbf16, #tpu.memory_space<vmem>>, vector<16x256xbf16>
    tpu.vector_store %arg5[%c1648, %c0_105], %211 {strides = array<i32>} : memref<2048x256xbf16, #tpu.memory_space<vmem>>, vector<16x256xbf16>,
    %213 = vector.extract_strided_slice %4 {offsets = [0, 260], sizes = [16, 256], strides = [1, 1]} : vector<16x640xbf16> to vector<16x256xbf16>
    %c1664 = arith.constant 1664 : index
    %c0_106 = arith.constant 0 : index
    %214 = vector.load %arg5[%c1664, %c0_106] : memref<2048x256xbf16, #tpu.memory_space<vmem>>, vector<16x256xbf16>
    tpu.vector_store %arg5[%c1664, %c0_106], %213 {strides = array<i32>} : memref<2048x256xbf16, #tpu.memory_space<vmem>>, vector<16x256xbf16>,
    %215 = vector.extract_strided_slice %4 {offsets = [0, 264], sizes = [16, 256], strides = [1, 1]} : vector<16x640xbf16> to vector<16x256xbf16>
    %c1680 = arith.constant 1680 : index
    %c0_107 = arith.constant 0 : index
    %216 = vector.load %arg5[%c1680, %c0_107] : memref<2048x256xbf16, #tpu.memory_space<vmem>>, vector<16x256xbf16>
    tpu.vector_store %arg5[%c1680, %c0_107], %215 {strides = array<i32>} : memref<2048x256xbf16, #tpu.memory_space<vmem>>, vector<16x256xbf16>,
    %217 = vector.extract_strided_slice %4 {offsets = [0, 265], sizes = [16, 256], strides = [1, 1]} : vector<16x640xbf16> to vector<16x256xbf16>
    %c1696 = arith.constant 1696 : index
    %c0_108 = arith.constant 0 : index
    %218 = vector.load %arg5[%c1696, %c0_108] : memref<2048x256xbf16, #tpu.memory_space<vmem>>, vector<16x256xbf16>
    tpu.vector_store %arg5[%c1696, %c0_108], %217 {strides = array<i32>} : memref<2048x256xbf16, #tpu.memory_space<vmem>>, vector<16x256xbf16>,
    %219 = vector.extract_strided_slice %4 {offsets = [0, 266], sizes = [16, 256], strides = [1, 1]} : vector<16x640xbf16> to vector<16x256xbf16>
    %c1712 = arith.constant 1712 : index
    %c0_109 = arith.constant 0 : index
    %220 = vector.load %arg5[%c1712, %c0_109] : memref<2048x256xbf16, #tpu.memory_space<vmem>>, vector<16x256xbf16>
    tpu.vector_store %arg5[%c1712, %c0_109], %219 {strides = array<i32>} : memref<2048x256xbf16, #tpu.memory_space<vmem>>, vector<16x256xbf16>,
    %221 = vector.extract_strided_slice %4 {offsets = [0, 267], sizes = [16, 256], strides = [1, 1]} : vector<16x640xbf16> to vector<16x256xbf16>
    %c1728 = arith.constant 1728 : index
    %c0_110 = arith.constant 0 : index
    %222 = vector.load %arg5[%c1728, %c0_110] : memref<2048x256xbf16, #tpu.memory_space<vmem>>, vector<16x256xbf16>
    tpu.vector_store %arg5[%c1728, %c0_110], %221 {strides = array<i32>} : memref<2048x256xbf16, #tpu.memory_space<vmem>>, vector<16x256xbf16>,
    %223 = vector.extract_strided_slice %4 {offsets = [0, 268], sizes = [16, 256], strides = [1, 1]} : vector<16x640xbf16> to vector<16x256xbf16>
    %c1744 = arith.constant 1744 : index
    %c0_111 = arith.constant 0 : index
    %224 = vector.load %arg5[%c1744, %c0_111] : memref<2048x256xbf16, #tpu.memory_space<vmem>>, vector<16x256xbf16>
    tpu.vector_store %arg5[%c1744, %c0_111], %223 {strides = array<i32>} : memref<2048x256xbf16, #tpu.memory_space<vmem>>, vector<16x256xbf16>,
    %225 = vector.extract_strided_slice %4 {offsets = [0, 272], sizes = [16, 256], strides = [1, 1]} : vector<16x640xbf16> to vector<16x256xbf16>
    %c1760 = arith.constant 1760 : index
    %c0_112 = arith.constant 0 : index
    %226 = vector.load %arg5[%c1760, %c0_112] : memref<2048x256xbf16, #tpu.memory_space<vmem>>, vector<16x256xbf16>
    tpu.vector_store %arg5[%c1760, %c0_112], %225 {strides = array<i32>} : memref<2048x256xbf16, #tpu.memory_space<vmem>>, vector<16x256xbf16>,
    %227 = vector.extract_strided_slice %4 {offsets = [0, 273], sizes = [16, 256], strides = [1, 1]} : vector<16x640xbf16> to vector<16x256xbf16>
    %c1776 = arith.constant 1776 : index
    %c0_113 = arith.constant 0 : index
    %228 = vector.load %arg5[%c1776, %c0_113] : memref<2048x256xbf16, #tpu.memory_space<vmem>>, vector<16x256xbf16>
    tpu.vector_store %arg5[%c1776, %c0_113], %227 {strides = array<i32>} : memref<2048x256xbf16, #tpu.memory_space<vmem>>, vector<16x256xbf16>,
    %229 = vector.extract_strided_slice %4 {offsets = [0, 274], sizes = [16, 256], strides = [1, 1]} : vector<16x640xbf16> to vector<16x256xbf16>
    %c1792 = arith.constant 1792 : index
    %c0_114 = arith.constant 0 : index
    %230 = vector.load %arg5[%c1792, %c0_114] : memref<2048x256xbf16, #tpu.memory_space<vmem>>, vector<16x256xbf16>
    tpu.vector_store %arg5[%c1792, %c0_114], %229 {strides = array<i32>} : memref<2048x256xbf16, #tpu.memory_space<vmem>>, vector<16x256xbf16>,
    %231 = vector.extract_strided_slice %4 {offsets = [0, 275], sizes = [16, 256], strides = [1, 1]} : vector<16x640xbf16> to vector<16x256xbf16>
    %c1808 = arith.constant 1808 : index
    %c0_115 = arith.constant 0 : index
    %232 = vector.load %arg5[%c1808, %c0_115] : memref<2048x256xbf16, #tpu.memory_space<vmem>>, vector<16x256xbf16>
    tpu.vector_store %arg5[%c1808, %c0_115], %231 {strides = array<i32>} : memref<2048x256xbf16, #tpu.memory_space<vmem>>, vector<16x256xbf16>,
    %233 = vector.extract_strided_slice %4 {offsets = [0, 276], sizes = [16, 256], strides = [1, 1]} : vector<16x640xbf16> to vector<16x256xbf16>
    %c1824 = arith.constant 1824 : index
    %c0_116 = arith.constant 0 : index
    %234 = vector.load %arg5[%c1824, %c0_116] : memref<2048x256xbf16, #tpu.memory_space<vmem>>, vector<16x256xbf16>
    tpu.vector_store %arg5[%c1824, %c0_116], %233 {strides = array<i32>} : memref<2048x256xbf16, #tpu.memory_space<vmem>>, vector<16x256xbf16>,
    %235 = vector.extract_strided_slice %4 {offsets = [0, 280], sizes = [16, 256], strides = [1, 1]} : vector<16x640xbf16> to vector<16x256xbf16>
    %c1840 = arith.constant 1840 : index
    %c0_117 = arith.constant 0 : index
    %236 = vector.load %arg5[%c1840, %c0_117] : memref<2048x256xbf16, #tpu.memory_space<vmem>>, vector<16x256xbf16>
    tpu.vector_store %arg5[%c1840, %c0_117], %235 {strides = array<i32>} : memref<2048x256xbf16, #tpu.memory_space<vmem>>, vector<16x256xbf16>,
    %237 = vector.extract_strided_slice %4 {offsets = [0, 281], sizes = [16, 256], strides = [1, 1]} : vector<16x640xbf16> to vector<16x256xbf16>
    %c1856 = arith.constant 1856 : index
    %c0_118 = arith.constant 0 : index
    %238 = vector.load %arg5[%c1856, %c0_118] : memref<2048x256xbf16, #tpu.memory_space<vmem>>, vector<16x256xbf16>
    tpu.vector_store %arg5[%c1856, %c0_118], %237 {strides = array<i32>} : memref<2048x256xbf16, #tpu.memory_space<vmem>>, vector<16x256xbf16>,
    %239 = vector.extract_strided_slice %4 {offsets = [0, 282], sizes = [16, 256], strides = [1, 1]} : vector<16x640xbf16> to vector<16x256xbf16>
    %c1872 = arith.constant 1872 : index
    %c0_119 = arith.constant 0 : index
    %240 = vector.load %arg5[%c1872, %c0_119] : memref<2048x256xbf16, #tpu.memory_space<vmem>>, vector<16x256xbf16>
    tpu.vector_store %arg5[%c1872, %c0_119], %239 {strides = array<i32>} : memref<2048x256xbf16, #tpu.memory_space<vmem>>, vector<16x256xbf16>,
    %241 = vector.extract_strided_slice %4 {offsets = [0, 283], sizes = [16, 256], strides = [1, 1]} : vector<16x640xbf16> to vector<16x256xbf16>
    %c1888 = arith.constant 1888 : index
    %c0_120 = arith.constant 0 : index
    %242 = vector.load %arg5[%c1888, %c0_120] : memref<2048x256xbf16, #tpu.memory_space<vmem>>, vector<16x256xbf16>
    tpu.vector_store %arg5[%c1888, %c0_120], %241 {strides = array<i32>} : memref<2048x256xbf16, #tpu.memory_space<vmem>>, vector<16x256xbf16>,
    %243 = vector.extract_strided_slice %4 {offsets = [0, 284], sizes = [16, 256], strides = [1, 1]} : vector<16x640xbf16> to vector<16x256xbf16>
    %c1904 = arith.constant 1904 : index
    %c0_121 = arith.constant 0 : index
    %244 = vector.load %arg5[%c1904, %c0_121] : memref<2048x256xbf16, #tpu.memory_space<vmem>>, vector<16x256xbf16>
    tpu.vector_store %arg5[%c1904, %c0_121], %243 {strides = array<i32>} : memref<2048x256xbf16, #tpu.memory_space<vmem>>, vector<16x256xbf16>,
    %245 = vector.extract_strided_slice %4 {offsets = [0, 288], sizes = [16, 256], strides = [1, 1]} : vector<16x640xbf16> to vector<16x256xbf16>
    %c1920 = arith.constant 1920 : index
    %c0_122 = arith.constant 0 : index
    %246 = vector.load %arg5[%c1920, %c0_122] : memref<2048x256xbf16, #tpu.memory_space<vmem>>, vector<16x256xbf16>
    tpu.vector_store %arg5[%c1920, %c0_122], %245 {strides = array<i32>} : memref<2048x256xbf16, #tpu.memory_space<vmem>>, vector<16x256xbf16>,
    %247 = vector.extract_strided_slice %4 {offsets = [0, 289], sizes = [16, 256], strides = [1, 1]} : vector<16x640xbf16> to vector<16x256xbf16>
    %c1936 = arith.constant 1936 : index
    %c0_123 = arith.constant 0 : index
    %248 = vector.load %arg5[%c1936, %c0_123] : memref<2048x256xbf16, #tpu.memory_space<vmem>>, vector<16x256xbf16>
    tpu.vector_store %arg5[%c1936, %c0_123], %247 {strides = array<i32>} : memref<2048x256xbf16, #tpu.memory_space<vmem>>, vector<16x256xbf16>,
    %249 = vector.extract_strided_slice %4 {offsets = [0, 290], sizes = [16, 256], strides = [1, 1]} : vector<16x640xbf16> to vector<16x256xbf16>
    %c1952 = arith.constant 1952 : index
    %c0_124 = arith.constant 0 : index
    %250 = vector.load %arg5[%c1952, %c0_124] : memref<2048x256xbf16, #tpu.memory_space<vmem>>, vector<16x256xbf16>
    tpu.vector_store %arg5[%c1952, %c0_124], %249 {strides = array<i32>} : memref<2048x256xbf16, #tpu.memory_space<vmem>>, vector<16x256xbf16>,
    %251 = vector.extract_strided_slice %4 {offsets = [0, 291], sizes = [16, 256], strides = [1, 1]} : vector<16x640xbf16> to vector<16x256xbf16>
    %c1968 = arith.constant 1968 : index
    %c0_125 = arith.constant 0 : index
    %252 = vector.load %arg5[%c1968, %c0_125] : memref<2048x256xbf16, #tpu.memory_space<vmem>>, vector<16x256xbf16>
    tpu.vector_store %arg5[%c1968, %c0_125], %251 {strides = array<i32>} : memref<2048x256xbf16, #tpu.memory_space<vmem>>, vector<16x256xbf16>,
    %253 = vector.extract_strided_slice %4 {offsets = [0, 292], sizes = [16, 256], strides = [1, 1]} : vector<16x640xbf16> to vector<16x256xbf16>
    %c1984 = arith.constant 1984 : index
    %c0_126 = arith.constant 0 : index
    %254 = vector.load %arg5[%c1984, %c0_126] : memref<2048x256xbf16, #tpu.memory_space<vmem>>, vector<16x256xbf16>
    tpu.vector_store %arg5[%c1984, %c0_126], %253 {strides = array<i32>} : memref<2048x256xbf16, #tpu.memory_space<vmem>>, vector<16x256xbf16>,
    %cst = arith.constant 0.000000e+00 : bf16
    %255 = vector.broadcast %cst : bf16 to vector<48x256xbf16>
    %c2000 = arith.constant 2000 : index
    %c0_127 = arith.constant 0 : index
    %256 = vector.load %arg5[%c2000, %c0_127] : memref<2048x256xbf16, #tpu.memory_space<vmem>>, vector<48x256xbf16>
    tpu.vector_store %arg5[%c2000, %c0_127], %255 {strides = array<i32>} : memref<2048x256xbf16, #tpu.memory_space<vmem>>, vector<48x256xbf16>,
    %c0_128 = arith.constant 0 : index
    %c0_129 = arith.constant 0 : index
    %257 = vector.load %arg3[%c0_128, %c0_129] : memref<8x2048xbf16, #tpu.memory_space<vmem>>, vector<8x2048xbf16>
    %c0_130 = arith.constant 0 : index
    %c0_131 = arith.constant 0 : index
    %258 = vector.load %arg5[%c0_130, %c0_131] : memref<2048x256xbf16, #tpu.memory_space<vmem>>, vector<2048x256xbf16>
    %cst_132 = arith.constant dense<0.000000e+00> : vector<8x256xf32>
    %259 = tpu.matmul %257, %258, %cst_132 {dimension_numbers = #tpu.dot_dimension_numbers<[1], [0], [0], [1], [0, 0, 1, 1], [], []>} : vector<8x2048xbf16>, vector<2048x256xbf16>, vector<8x256xf32> -> vector<8x256xf32>
    %c0_133 = arith.constant 0 : index
    %c0_134 = arith.constant 0 : index
    %c0_135 = arith.constant 0 : index
    %260 = vector.load %arg4[%c0_133, %c0_134, %c0_135] : memref<1x8x256xf32, #tpu.memory_space<vmem>>, vector<1x8x256xf32>
    %261 = vector.shape_cast %260 : vector<1x8x256xf32> to vector<8x256xf32>
    %262 = vector.shape_cast %259 : vector<8x256xf32> to vector<1x8x256xf32>
    tpu.vector_store %arg4[%c0_133, %c0_134, %c0_135], %262 {strides = array<i32>} : memref<1x8x256xf32, #tpu.memory_space<vmem>>, vector<1x8x256xf32>,
    return
  }
  func.func @transform_0(%arg0: i32, %arg1: i32) -> (i32, i32, i32) {
    %c0_i32 = arith.constant 0 : i32
    %c0_i32_0 = arith.constant 0 : i32
    %c0_i32_1 = arith.constant 0 : i32
    return %arg0, %c0_i32, %c0_i32_0 : i32, i32, i32
  }
  func.func @transform_1(%arg0: i32, %arg1: i32) -> (i32, i32) {
    %c0_i32 = arith.constant 0 : i32
    %c0_i32_0 = arith.constant 0 : i32
    %c0_i32_1 = arith.constant 0 : i32
    return %c0_i32, %c0_i32_0 : i32, i32
  }
  func.func @transform_2(%arg0: i32, %arg1: i32) -> (i32, i32, i32) {
    %c0_i32 = arith.constant 0 : i32
    %c0_i32_0 = arith.constant 0 : i32
    return %arg0, %c0_i32, %arg1 : i32, i32, i32
  }
}

</mosaic_0001>

<llo_original>
// kernel: _lambda_.1
$region0: #{_lambda_.1}
  #allocation0 [shape = 'u32[]', space=smem, size = 0x4, offset = 0x4, fixed_abs, tag = 'smem constant byte address 0x4 - core index']
  #allocation1 [shape = 'u32[72,128]{1,0:T(1,128)}', space=vmem, size = 0x9000, scoped, tag = 'internal scratch']
  #allocation2 [shape = 'bf16[2048,256]{1,0:T(8,128)(2,1)}', space=vmem, size = 0x100000, scoped, tag = 'scratch operand']
  %s0 = inlined_call_operand.vmem [shape: bf16[2,16,640], index: 0, kind: input, shape index: {}]
  %s1 = inlined_call_operand.vmem [shape: bf16[8,2048], index: 1, kind: input, shape index: {}]
  %s2 = inlined_call_operand.vmem [shape: f32[2,8,256], index: 2, kind: output, shape index: {}]
  %s3 = sld [smem:[#allocation0]]
  $region41: #{_lambda_.1} parent=0
    _
  %s5 = ssub.s32 1, %s3
  %s6 = scalar_select 0, %s5, %s3
  loop: start=0, step=1, limit=4
  $region2: #{_lambda_.1} parent=0 // loop_pre_header
    _
  $region3: #{_lambda_.1} parent=0 // loop_header
    %s8 = sphi 0, %s12
    %p9 = scmp.ge.s32.totalorder %s8, 4
    %s15 = sphi 0, %s27
    %s16 = sphi 0, %s23
    %s17 = sphi 0, %s15
    %s18 = sphi 0, %s16
    %s19 = sphi 0, %s17
    %s20 = sphi 0, %s18
    %s30 = sphi 0, %s32
    %s33 = sphi 0, %s30
    %s34 = sphi 0, %s33
    %s50 = sphi 0, %s34
    %s54 = sphi 0, %s54
    %s56 = sphi 0, %s54
    %s57 = sphi 0, %s56
    %s71 = sphi 0, %s57
    %s79 = sphi 0, %s81
    %s82 = sphi 0, %s79
    %s83 = sphi 0, %s82
    %s99 = sphi 0, %s83
  $region4: #{_lambda_.1} parent=0 // loop_header_branch
    %11 = sbr.rel (%p9) target = $region8
  $region5: #{_lambda_.1} parent=0 // loop_body
    %s13 = ssub.s32 %s8, 1
    %s14 = ssub.s32 %s8, 2
    %s21 = sadd.s32 1, %s16
    %p22 = scmp.ge.s32.totalorder %s21, 1
    %s23 = scalar_select %p22, 0, %s21
    %s24 = sadd.s32 1, %s15
    %s25 = scalar_select %p22, %s24, %s15
    %p26 = scmp.ge.s32.totalorder %s25, 2
    %s27 = scalar_select %p26, 0, %s25
    %s28 = ssub.s32 %s15, %s27
    %p29 = scmp.eq.s32.totalorder %s28, 0
    %s31 = sadd.s32 %s30, 1
    %s32 = scalar_select %p29, %s30, %s31
    %p35 = pneg %p29
    %p36 = scmp.eq.s32.totalorder %s8, 1
    %p37 = por %p35, %p36
    %p38 = scmp.ne.s32.totalorder %s30, %s33
    %p39 = scmp.eq.s32.totalorder %s8, 0
    %p40 = por %p38, %p39
    %p41 = scmp.ne.s32.totalorder %s30, %s33
    %p42 = scmp.eq.s32.totalorder %s13, 1
    %p43 = por %p41, %p42
    %p44 = scmp.ne.s32.totalorder %s33, %s34
    %p45 = scmp.eq.s32.totalorder %s13, 0
    %p46 = por %p44, %p45
    %p47 = scmp.ne.s32.totalorder %s33, %s34
    %p48 = scmp.eq.s32.totalorder %s14, 1
    %p49 = por %p47, %p48
    %p51 = scmp.ne.s32.totalorder %s34, %s50
    %p52 = scmp.eq.s32.totalorder %s14, 0
    %p53 = por %p51, %p52
    %s55 = sadd.s32 %s54, 1
    %p58 = scmp.eq.s32.totalorder %s8, 1
    %p59 = scmp.ne.s32.totalorder %s54, %s56
    %p60 = scmp.eq.s32.totalorder %s8, 0
    %p61 = por %p59, %p60
    %p62 = scmp.ne.s32.totalorder %s54, %s56
    %p63 = scmp.eq.s32.totalorder %s13, 1
    %p64 = por %p62, %p63
    %p65 = scmp.ne.s32.totalorder %s56, %s57
    %p66 = scmp.eq.s32.totalorder %s13, 0
    %p67 = por %p65, %p66
    %p68 = scmp.ne.s32.totalorder %s56, %s57
    %p69 = scmp.eq.s32.totalorder %s14, 1
    %p70 = por %p68, %p69
    %p72 = scmp.ne.s32.totalorder %s57, %s71
    %p73 = scmp.eq.s32.totalorder %s14, 0
    %p74 = por %p72, %p73
    %s75 = ssub.s32 %s15, %s27
    %s76 = ssub.s32 %s16, %s23
    %s77 = sor.u32 %s75, %s76
    %p78 = scmp.eq.s32.totalorder %s77, 0
    %s80 = sadd.s32 %s79, 1
    %s81 = scalar_select %p78, %s79, %s80
    %p84 = pneg %p78
    %p85 = scmp.eq.s32.totalorder %s8, 1
    %p86 = por %p84, %p85
    %p87 = scmp.ne.s32.totalorder %s79, %s82
    %p88 = scmp.eq.s32.totalorder %s8, 0
    %p89 = por %p87, %p88
    %p90 = scmp.ne.s32.totalorder %s79, %s82
    %p91 = scmp.eq.s32.totalorder %s13, 1
    %p92 = por %p90, %p91
    %p93 = scmp.ne.s32.totalorder %s82, %s83
    %p94 = scmp.eq.s32.totalorder %s13, 0
    %p95 = por %p93, %p94
    %p96 = scmp.ne.s32.totalorder %s82, %s83
    %p97 = scmp.eq.s32.totalorder %s14, 1
    %p98 = por %p96, %p97
    %p100 = scmp.ne.s32.totalorder %s83, %s99
    %p101 = scmp.eq.s32.totalorder %s14, 0
    %p102 = por %p100, %p101
    %p103 = scmp.le.s32.totalorder 1, %s8
    %p104 = scmp.lt.s32.totalorder %s8, 3
    %p105 = pnand %p103, %p104
    %p106 = pneg %p105
    // Predicated region
    $region9: #{_lambda_.1} parent=5 // pred_check
      _
    $region10: #{_lambda_.1} parent=5 // pred_check_branch
      %108 = sbr.rel (%p105) target = $region12
    $region11: #{_lambda_.1} parent=5 // pred_region
      %s109 = ssub.s32 %s8, 1
      // Predicated region
      $region13: #{_lambda_.1} parent=11 // pred_check
        %p110 = pneg %p67
      $region14: #{_lambda_.1} parent=11 // pred_check_branch
        %112 = sbr.rel (%p110) target = $region16
      $region15: #{_lambda_.1} parent=11 // pred_region
        _
      $region16: #{_lambda_.1} parent=11 // pred_fallthru
        _
    $region12: #{_lambda_.1} parent=5 // pred_fallthru
      _
    %p113 = scmp.lt.s32.totalorder %s8, 2
    // Predicated region
    $region17: #{_lambda_.1} parent=5 // pred_check
      %p114 = pneg %p113
    $region18: #{_lambda_.1} parent=5 // pred_check_branch
      %116 = sbr.rel (%p114) target = $region20
    $region19: #{_lambda_.1} parent=5 // pred_region
      // Predicated region
      $region21: #{_lambda_.1} parent=19 // pred_check
        %p117 = pneg %p40
      $region22: #{_lambda_.1} parent=19 // pred_check_branch
        %119 = sbr.rel (%p117) target = $region24
      $region23: #{_lambda_.1} parent=19 // pred_region
        %p120 = scmp.lt.s32.totalorder %s15, 1
        %s121 = scalar_select %p120, %s15, 1
        %s122 = smul.addr %s121, 10
        %s123 = smul.addr %s122, 4
        %s124 = scalar_lea.vmem %s0, %s123
      $region24: #{_lambda_.1} parent=19 // pred_fallthru
        _
    $region20: #{_lambda_.1} parent=5 // pred_fallthru
      _
    %p125 = scmp.le.s32.totalorder 1, %s8
    %p126 = scmp.lt.s32.totalorder %s8, 3
    %p127 = pnand %p125, %p126
    %p128 = pneg %p127
    // Predicated region
    $region25: #{_lambda_.1} parent=5 // pred_check
      _
    $region26: #{_lambda_.1} parent=5 // pred_check_branch
      %130 = sbr.rel (%p127) target = $region28
    $region27: #{_lambda_.1} parent=5 // pred_region
      %s131 = ssub.s32 %s8, 1
      %p132 = scmp.lt.s32.totalorder %s17, 1
      %s133 = scalar_select %p132, %s17, 1
      %s134 = smul.addr %s133, 10
      %s135 = smul.addr %s134, 4
      %s136 = scalar_lea.vmem %s0, %s135
      %p137 = pneg %p46
      %p138 = pneg %p43
      %p139 = pneg %p67
      %p140 = pneg %p64
      %p141 = pneg %p95
      %p142 = pneg %p92
      %s143 = smul.u32 2, %s18
      %p144 = scmp.lt.s32.totalorder %s17, 1
      %s145 = scalar_select %p144, %s17, 1
      %p146 = scmp.lt.s32.totalorder %s143, 1
      %s147 = scalar_select %p146, %s143, 1
      %s148 = smul.addr %s145, 2
      %s149 = sadd.s32 %s147, %s148
      %s150 = smul.addr %s149, 8
      %s151 = scalar_lea.vmem %s2, %s150
      %p152 = scmp.lt.s32.totalorder %s17, 1
      %s153 = scalar_select %p152, %s17, 1
      %s154 = smul.addr %s153, 10
      %s155 = smul.addr %s154, 4
      %s156 = scalar_lea.vmem %s0, %s155
      %s157 = smul.u32 2, %s18
      %p158 = scmp.lt.s32.totalorder %s17, 1
      %s159 = scalar_select %p158, %s17, 1
      %p160 = scmp.lt.s32.totalorder %s157, 1
      %s161 = scalar_select %p160, %s157, 1
      %s162 = smul.addr %s159, 2
      %s163 = sadd.s32 %s161, %s162
      %s164 = smul.addr %s163, 8
      %s165 = scalar_lea.vmem %s2, %s164
      %s166 = smul.u32 2, %s18
      %s168 = smul.u32 %s18, 256
      %s169 = sshra.s32 %s168, 7
      %s170 = sand.u32 %s168, 127
      %s171 = smul.addr %s169, 4
      %s172 = scalar_lea.vmem %s156, %s171
      %v173 = vld [vmem:[%s172] sm:$0xff]
      %v174 = vld [vmem:[%s172 + $0x8] sm:$0xff]
      %v175 = vld [vmem:[%s172 + $0x10] sm:$0xf]
      %v176 = vld [vmem:[%s172 + $0x14] sm:$0xff]
      %v177 = vld [vmem:[%s172 + $0x1c] sm:$0xff]
      %v178 = vld [vmem:[%s172 + $0x24] sm:$0xf]
      %179 = vst [vmem:[#allocation2] sm:$0xff] %v173
      %180 = vst [vmem:[#allocation2 + $0x8] sm:$0xff] %v176
      %185 = vrot.lane.b32.xlu0 %v173, 127
      %v186 = vpop.permute.xlu0 %185
      %187 = vrot.lane.b32.xlu0 %v174, 127
      %v188 = vpop.permute.xlu0 %187
      %189 = vrot.lane.b32.xlu0 %v176, 127
      %v190 = vpop.permute.xlu0 %189
      %191 = vrot.lane.b32.xlu0 %v177, 127
      %v192 = vpop.permute.xlu0 %191
      %v193 = vrot.slane %v186, 4
      %v194 = vrot.slane %v188, 4
      %v195 = vrot.slane %v190, 4
      %v196 = vrot.slane %v192, 4
      %vm197 = vcmask 1043456
      %v198 = vsel %vm197, %v193, %v194
      %vm199 = vcmask 1039360
      %v200 = vsel %vm199, %v186, %v198
      %v201 = vsel %vm197, %v195, %v196
      %v202 = vsel %vm199, %v190, %v201
      %205 = vst [vmem:[#allocation2 + $0x10] sm:$0xff] %v200
      %206 = vst [vmem:[#allocation2 + $0x18] sm:$0xff] %v202
      %207 = vrot.lane.b32.xlu0 %v173, 126
      %v208 = vpop.permute.xlu0 %207
      %209 = vrot.lane.b32.xlu0 %v174, 126
      %v210 = vpop.permute.xlu0 %209
      %211 = vrot.lane.b32.xlu0 %v176, 126
      %v212 = vpop.permute.xlu0 %211
      %213 = vrot.lane.b32.xlu0 %v177, 126
      %v214 = vpop.permute.xlu0 %213
      %v215 = vrot.slane %v208, 4
      %v216 = vrot.slane %v210, 4
      %v217 = vrot.slane %v212, 4
      %v218 = vrot.slane %v214, 4
      %v219 = vsel %vm197, %v215, %v216
      %vm220 = vcmask 1031168
      %v221 = vsel %vm220, %v208, %v219
      %v222 = vsel %vm197, %v217, %v218
      %v223 = vsel %vm220, %v212, %v222
      %226 = vst [vmem:[#allocation2 + $0x20] sm:$0xff] %v221
      %227 = vst [vmem:[#allocation2 + $0x28] sm:$0xff] %v223
      %228 = vrot.lane.b32.xlu0 %v173, 125
      %v229 = vpop.permute.xlu0 %228
      %230 = vrot.lane.b32.xlu0 %v174, 125
      %v231 = vpop.permute.xlu0 %230
      %232 = vrot.lane.b32.xlu0 %v176, 125
      %v233 = vpop.permute.xlu0 %232
      %234 = vrot.lane.b32.xlu0 %v177, 125
      %v235 = vpop.permute.xlu0 %234
      %v236 = vrot.slane %v229, 4
      %v237 = vrot.slane %v231, 4
      %v238 = vrot.slane %v233, 4
      %v239 = vrot.slane %v235, 4
      %v240 = vsel %vm197, %v236, %v237
      %vm241 = vcmask 1022976
      %v242 = vsel %vm241, %v229, %v240
      %v243 = vsel %vm197, %v238, %v239
      %v244 = vsel %vm241, %v233, %v243
      %247 = vst [vmem:[#allocation2 + $0x30] sm:$0xff] %v242
      %248 = vst [vmem:[#allocation2 + $0x38] sm:$0xff] %v244
      %249 = vrot.lane.b32.xlu0 %v173, 124
      %v250 = vpop.permute.xlu0 %249
      %251 = vrot.lane.b32.xlu0 %v174, 124
      %v252 = vpop.permute.xlu0 %251
      %253 = vrot.lane.b32.xlu0 %v176, 124
      %v254 = vpop.permute.xlu0 %253
      %255 = vrot.lane.b32.xlu0 %v177, 124
      %v256 = vpop.permute.xlu0 %255
      %v257 = vrot.slane %v250, 4
      %v258 = vrot.slane %v252, 4
      %v259 = vrot.slane %v254, 4
      %v260 = vrot.slane %v256, 4
      %v261 = vsel %vm197, %v257, %v258
      %vm262 = vcmask 1014784
      %v263 = vsel %vm262, %v250, %v261
      %v264 = vsel %vm197, %v259, %v260
      %v265 = vsel %vm262, %v254, %v264
      %268 = vst [vmem:[#allocation2 + $0x40] sm:$0xff] %v263
      %269 = vst [vmem:[#allocation2 + $0x48] sm:$0xff] %v265
      %270 = vrot.lane.b32.xlu0 %v173, 120
      %v271 = vpop.permute.xlu0 %270
      %272 = vrot.lane.b32.xlu0 %v174, 120
      %v273 = vpop.permute.xlu0 %272
      %274 = vrot.lane.b32.xlu0 %v176, 120
      %v275 = vpop.permute.xlu0 %274
      %276 = vrot.lane.b32.xlu0 %v177, 120
      %v277 = vpop.permute.xlu0 %276
      %v278 = vrot.slane %v271, 4
      %v279 = vrot.slane %v273, 4
      %v280 = vrot.slane %v275, 4
      %v281 = vrot.slane %v277, 4
      %v282 = vsel %vm197, %v278, %v279
      %vm283 = vcmask 982016
      %v284 = vsel %vm283, %v271, %v282
      %v285 = vsel %vm197, %v280, %v281
      %v286 = vsel %vm283, %v275, %v285
      %289 = vst [vmem:[#allocation2 + $0x50] sm:$0xff] %v284
      %290 = vst [vmem:[#allocation2 + $0x58] sm:$0xff] %v286
      %291 = vrot.lane.b32.xlu0 %v173, 119
      %v292 = vpop.permute.xlu0 %291
      %293 = vrot.lane.b32.xlu0 %v174, 119
      %v294 = vpop.permute.xlu0 %293
      %295 = vrot.lane.b32.xlu0 %v176, 119
      %v296 = vpop.permute.xlu0 %295
      %297 = vrot.lane.b32.xlu0 %v177, 119
      %v298 = vpop.permute.xlu0 %297
      %v299 = vrot.slane %v292, 4
      %v300 = vrot.slane %v294, 4
      %v301 = vrot.slane %v296, 4
      %v302 = vrot.slane %v298, 4
      %v303 = vsel %vm197, %v299, %v300
      %vm304 = vcmask 973824
      %v305 = vsel %vm304, %v292, %v303
      %v306 = vsel %vm197, %v301, %v302
      %v307 = vsel %vm304, %v296, %v306
      %310 = vst [vmem:[#allocation2 + $0x60] sm:$0xff] %v305
      %311 = vst [vmem:[#allocation2 + $0x68] sm:$0xff] %v307
      %312 = vrot.lane.b32.xlu0 %v173, 118
      %v313 = vpop.permute.xlu0 %312
      %314 = vrot.lane.b32.xlu0 %v174, 118
      %v315 = vpop.permute.xlu0 %314
      %316 = vrot.lane.b32.xlu0 %v176, 118
      %v317 = vpop.permute.xlu0 %316
      %318 = vrot.lane.b32.xlu0 %v177, 118
      %v319 = vpop.permute.xlu0 %318
      %v320 = vrot.slane %v313, 4
      %v321 = vrot.slane %v315, 4
      %v322 = vrot.slane %v317, 4
      %v323 = vrot.slane %v319, 4
      %v324 = vsel %vm197, %v320, %v321
      %vm325 = vcmask 965632
      %v326 = vsel %vm325, %v313, %v324
      %v327 = vsel %vm197, %v322, %v323
      %v328 = vsel %vm325, %v317, %v327
      %331 = vst [vmem:[#allocation2 + $0x70] sm:$0xff] %v326
      %332 = vst [vmem:[#allocation2 + $0x78] sm:$0xff] %v328
      %333 = vrot.lane.b32.xlu0 %v173, 117
      %v334 = vpop.permute.xlu0 %333
      %335 = vrot.lane.b32.xlu0 %v174, 117
      %v336 = vpop.permute.xlu0 %335
      %337 = vrot.lane.b32.xlu0 %v176, 117
      %v338 = vpop.permute.xlu0 %337
      %339 = vrot.lane.b32.xlu0 %v177, 117
      %v340 = vpop.permute.xlu0 %339
      %v341 = vrot.slane %v334, 4
      %v342 = vrot.slane %v336, 4
      %v343 = vrot.slane %v338, 4
      %v344 = vrot.slane %v340, 4
      %v345 = vsel %vm197, %v341, %v342
      %vm346 = vcmask 957440
      %v347 = vsel %vm346, %v334, %v345
      %v348 = vsel %vm197, %v343, %v344
      %v349 = vsel %vm346, %v338, %v348
      %352 = vst [vmem:[#allocation2 + $0x80] sm:$0xff] %v347
      %353 = vst [vmem:[#allocation2 + $0x88] sm:$0xff] %v349
      %354 = vrot.lane.b32.xlu0 %v173, 116
      %v355 = vpop.permute.xlu0 %354
      %356 = vrot.lane.b32.xlu0 %v174, 116
      %v357 = vpop.permute.xlu0 %356
      %358 = vrot.lane.b32.xlu0 %v176, 116
      %v359 = vpop.permute.xlu0 %358
      %360 = vrot.lane.b32.xlu0 %v177, 116
      %v361 = vpop.permute.xlu0 %360
      %v362 = vrot.slane %v355, 4
      %v363 = vrot.slane %v357, 4
      %v364 = vrot.slane %v359, 4
      %v365 = vrot.slane %v361, 4
      %v366 = vsel %vm197, %v362, %v363
      %vm367 = vcmask 949248
      %v368 = vsel %vm367, %v355, %v366
      %v369 = vsel %vm197, %v364, %v365
      %v370 = vsel %vm367, %v359, %v369
      %373 = vst [vmem:[#allocation2 + $0x90] sm:$0xff] %v368
      %374 = vst [vmem:[#allocation2 + $0x98] sm:$0xff] %v370
      %375 = vrot.lane.b32.xlu0 %v173, 112
      %v376 = vpop.permute.xlu0 %375
      %377 = vrot.lane.b32.xlu0 %v174, 112
      %v378 = vpop.permute.xlu0 %377
      %379 = vrot.lane.b32.xlu0 %v176, 112
      %v380 = vpop.permute.xlu0 %379
      %381 = vrot.lane.b32.xlu0 %v177, 112
      %v382 = vpop.permute.xlu0 %381
      %v383 = vrot.slane %v376, 4
      %v384 = vrot.slane %v378, 4
      %v385 = vrot.slane %v380, 4
      %v386 = vrot.slane %v382, 4
      %v387 = vsel %vm197, %v383, %v384
      %vm388 = vcmask 916480
      %v389 = vsel %vm388, %v376, %v387
      %v390 = vsel %vm197, %v385, %v386
      %v391 = vsel %vm388, %v380, %v390
      %394 = vst [vmem:[#allocation2 + $0xa0] sm:$0xff] %v389
      %395 = vst [vmem:[#allocation2 + $0xa8] sm:$0xff] %v391
      %396 = vrot.lane.b32.xlu0 %v173, 111
      %v397 = vpop.permute.xlu0 %396
      %398 = vrot.lane.b32.xlu0 %v174, 111
      %v399 = vpop.permute.xlu0 %398
      %400 = vrot.lane.b32.xlu0 %v176, 111
      %v401 = vpop.permute.xlu0 %400
      %402 = vrot.lane.b32.xlu0 %v177, 111
      %v403 = vpop.permute.xlu0 %402
      %v404 = vrot.slane %v397, 4
      %v405 = vrot.slane %v399, 4
      %v406 = vrot.slane %v401, 4
      %v407 = vrot.slane %v403, 4
      %v408 = vsel %vm197, %v404, %v405
      %vm409 = vcmask 908288
      %v410 = vsel %vm409, %v397, %v408
      %v411 = vsel %vm197, %v406, %v407
      %v412 = vsel %vm409, %v401, %v411
      %415 = vst [vmem:[#allocation2 + $0xb0] sm:$0xff] %v410
      %416 = vst [vmem:[#allocation2 + $0xb8] sm:$0xff] %v412
      %417 = vrot.lane.b32.xlu0 %v173, 110
      %v418 = vpop.permute.xlu0 %417
      %419 = vrot.lane.b32.xlu0 %v174, 110
      %v420 = vpop.permute.xlu0 %419
      %421 = vrot.lane.b32.xlu0 %v176, 110
      %v422 = vpop.permute.xlu0 %421
      %423 = vrot.lane.b32.xlu0 %v177, 110
      %v424 = vpop.permute.xlu0 %423
      %v425 = vrot.slane %v418, 4
      %v426 = vrot.slane %v420, 4
      %v427 = vrot.slane %v422, 4
      %v428 = vrot.slane %v424, 4
      %v429 = vsel %vm197, %v425, %v426
      %vm430 = vcmask 900096
      %v431 = vsel %vm430, %v418, %v429
      %v432 = vsel %vm197, %v427, %v428
      %v433 = vsel %vm430, %v422, %v432
      %436 = vst [vmem:[#allocation2 + $0xc0] sm:$0xff] %v431
      %437 = vst [vmem:[#allocation2 + $0xc8] sm:$0xff] %v433
      %438 = vrot.lane.b32.xlu0 %v173, 109
      %v439 = vpop.permute.xlu0 %438
      %440 = vrot.lane.b32.xlu0 %v174, 109
      %v441 = vpop.permute.xlu0 %440
      %442 = vrot.lane.b32.xlu0 %v176, 109
      %v443 = vpop.permute.xlu0 %442
      %444 = vrot.lane.b32.xlu0 %v177, 109
      %v445 = vpop.permute.xlu0 %444
      %v446 = vrot.slane %v439, 4
      %v447 = vrot.slane %v441, 4
      %v448 = vrot.slane %v443, 4
      %v449 = vrot.slane %v445, 4
      %v450 = vsel %vm197, %v446, %v447
      %vm451 = vcmask 891904
      %v452 = vsel %vm451, %v439, %v450
      %v453 = vsel %vm197, %v448, %v449
      %v454 = vsel %vm451, %v443, %v453
      %457 = vst [vmem:[#allocation2 + $0xd0] sm:$0xff] %v452
      %458 = vst [vmem:[#allocation2 + $0xd8] sm:$0xff] %v454
      %459 = vrot.lane.b32.xlu0 %v173, 108
      %v460 = vpop.permute.xlu0 %459
      %461 = vrot.lane.b32.xlu0 %v174, 108
      %v462 = vpop.permute.xlu0 %461
      %463 = vrot.lane.b32.xlu0 %v176, 108
      %v464 = vpop.permute.xlu0 %463
      %465 = vrot.lane.b32.xlu0 %v177, 108
      %v466 = vpop.permute.xlu0 %465
      %v467 = vrot.slane %v460, 4
      %v468 = vrot.slane %v462, 4
      %v469 = vrot.slane %v464, 4
      %v470 = vrot.slane %v466, 4
      %v471 = vsel %vm197, %v467, %v468
      %vm472 = vcmask 883712
      %v473 = vsel %vm472, %v460, %v471
      %v474 = vsel %vm197, %v469, %v470
      %v475 = vsel %vm472, %v464, %v474
      %478 = vst [vmem:[#allocation2 + $0xe0] sm:$0xff] %v473
      %479 = vst [vmem:[#allocation2 + $0xe8] sm:$0xff] %v475
      %480 = vrot.lane.b32.xlu0 %v173, 104
      %v481 = vpop.permute.xlu0 %480
      %482 = vrot.lane.b32.xlu0 %v174, 104
      %v483 = vpop.permute.xlu0 %482
      %484 = vrot.lane.b32.xlu0 %v176, 104
      %v485 = vpop.permute.xlu0 %484
      %486 = vrot.lane.b32.xlu0 %v177, 104
      %v487 = vpop.permute.xlu0 %486
      %v488 = vrot.slane %v481, 4
      %v489 = vrot.slane %v483, 4
      %v490 = vrot.slane %v485, 4
      %v491 = vrot.slane %v487, 4
      %v492 = vsel %vm197, %v488, %v489
      %vm493 = vcmask 850944
      %v494 = vsel %vm493, %v481, %v492
      %v495 = vsel %vm197, %v490, %v491
      %v496 = vsel %vm493, %v485, %v495
      %499 = vst [vmem:[#allocation2 + $0xf0] sm:$0xff] %v494
      %500 = vst [vmem:[#allocation2 + $0xf8] sm:$0xff] %v496
      %501 = vrot.lane.b32.xlu0 %v173, 103
      %v502 = vpop.permute.xlu0 %501
      %503 = vrot.lane.b32.xlu0 %v174, 103
      %v504 = vpop.permute.xlu0 %503
      %505 = vrot.lane.b32.xlu0 %v176, 103
      %v506 = vpop.permute.xlu0 %505
      %507 = vrot.lane.b32.xlu0 %v177, 103
      %v508 = vpop.permute.xlu0 %507
      %v509 = vrot.slane %v502, 4
      %v510 = vrot.slane %v504, 4
      %v511 = vrot.slane %v506, 4
      %v512 = vrot.slane %v508, 4
      %v513 = vsel %vm197, %v509, %v510
      %vm514 = vcmask 842752
      %v515 = vsel %vm514, %v502, %v513
      %v516 = vsel %vm197, %v511, %v512
      %v517 = vsel %vm514, %v506, %v516
      %520 = vst [vmem:[#allocation2 + $0x100] sm:$0xff] %v515
      %521 = vst [vmem:[#allocation2 + $0x108] sm:$0xff] %v517
      %522 = vrot.lane.b32.xlu0 %v173, 102
      %v523 = vpop.permute.xlu0 %522
      %524 = vrot.lane.b32.xlu0 %v174, 102
      %v525 = vpop.permute.xlu0 %524
      %526 = vrot.lane.b32.xlu0 %v176, 102
      %v527 = vpop.permute.xlu0 %526
      %528 = vrot.lane.b32.xlu0 %v177, 102
      %v529 = vpop.permute.xlu0 %528
      %v530 = vrot.slane %v523, 4
      %v531 = vrot.slane %v525, 4
      %v532 = vrot.slane %v527, 4
      %v533 = vrot.slane %v529, 4
      %v534 = vsel %vm197, %v530, %v531
      %vm535 = vcmask 834560
      %v536 = vsel %vm535, %v523, %v534
      %v537 = vsel %vm197, %v532, %v533
      %v538 = vsel %vm535, %v527, %v537
      %541 = vst [vmem:[#allocation2 + $0x110] sm:$0xff] %v536
      %542 = vst [vmem:[#allocation2 + $0x118] sm:$0xff] %v538
      %543 = vrot.lane.b32.xlu0 %v173, 101
      %v544 = vpop.permute.xlu0 %543
      %545 = vrot.lane.b32.xlu0 %v174, 101
      %v546 = vpop.permute.xlu0 %545
      %547 = vrot.lane.b32.xlu0 %v176, 101
      %v548 = vpop.permute.xlu0 %547
      %549 = vrot.lane.b32.xlu0 %v177, 101
      %v550 = vpop.permute.xlu0 %549
      %v551 = vrot.slane %v544, 4
      %v552 = vrot.slane %v546, 4
      %v553 = vrot.slane %v548, 4
      %v554 = vrot.slane %v550, 4
      %v555 = vsel %vm197, %v551, %v552
      %vm556 = vcmask 826368
      %v557 = vsel %vm556, %v544, %v555
      %v558 = vsel %vm197, %v553, %v554
      %v559 = vsel %vm556, %v548, %v558
      %562 = vst [vmem:[#allocation2 + $0x120] sm:$0xff] %v557
      %563 = vst [vmem:[#allocation2 + $0x128] sm:$0xff] %v559
      %564 = vrot.lane.b32.xlu0 %v173, 100
      %v565 = vpop.permute.xlu0 %564
      %566 = vrot.lane.b32.xlu0 %v174, 100
      %v567 = vpop.permute.xlu0 %566
      %568 = vrot.lane.b32.xlu0 %v176, 100
      %v569 = vpop.permute.xlu0 %568
      %570 = vrot.lane.b32.xlu0 %v177, 100
      %v571 = vpop.permute.xlu0 %570
      %v572 = vrot.slane %v565, 4
      %v573 = vrot.slane %v567, 4
      %v574 = vrot.slane %v569, 4
      %v575 = vrot.slane %v571, 4
      %v576 = vsel %vm197, %v572, %v573
      %vm577 = vcmask 818176
      %v578 = vsel %vm577, %v565, %v576
      %v579 = vsel %vm197, %v574, %v575
      %v580 = vsel %vm577, %v569, %v579
      %583 = vst [vmem:[#allocation2 + $0x130] sm:$0xff] %v578
      %584 = vst [vmem:[#allocation2 + $0x138] sm:$0xff] %v580
      %585 = vrot.lane.b32.xlu0 %v173, 96
      %v586 = vpop.permute.xlu0 %585
      %587 = vrot.lane.b32.xlu0 %v174, 96
      %v588 = vpop.permute.xlu0 %587
      %589 = vrot.lane.b32.xlu0 %v176, 96
      %v590 = vpop.permute.xlu0 %589
      %591 = vrot.lane.b32.xlu0 %v177, 96
      %v592 = vpop.permute.xlu0 %591
      %v593 = vrot.slane %v586, 4
      %v594 = vrot.slane %v588, 4
      %v595 = vrot.slane %v590, 4
      %v596 = vrot.slane %v592, 4
      %v597 = vsel %vm197, %v593, %v594
      %vm598 = vcmask 785408
      %v599 = vsel %vm598, %v586, %v597
      %v600 = vsel %vm197, %v595, %v596
      %v601 = vsel %vm598, %v590, %v600
      %604 = vst [vmem:[#allocation2 + $0x140] sm:$0xff] %v599
      %605 = vst [vmem:[#allocation2 + $0x148] sm:$0xff] %v601
      %606 = vrot.lane.b32.xlu0 %v173, 95
      %v607 = vpop.permute.xlu0 %606
      %608 = vrot.lane.b32.xlu0 %v174, 95
      %v609 = vpop.permute.xlu0 %608
      %610 = vrot.lane.b32.xlu0 %v176, 95
      %v611 = vpop.permute.xlu0 %610
      %612 = vrot.lane.b32.xlu0 %v177, 95
      %v613 = vpop.permute.xlu0 %612
      %v614 = vrot.slane %v607, 4
      %v615 = vrot.slane %v609, 4
      %v616 = vrot.slane %v611, 4
      %v617 = vrot.slane %v613, 4
      %v618 = vsel %vm197, %v614, %v615
      %vm619 = vcmask 777216
      %v620 = vsel %vm619, %v607, %v618
      %v621 = vsel %vm197, %v616, %v617
      %v622 = vsel %vm619, %v611, %v621
      %625 = vst [vmem:[#allocation2 + $0x150] sm:$0xff] %v620
      %626 = vst [vmem:[#allocation2 + $0x158] sm:$0xff] %v622
      %627 = vrot.lane.b32.xlu0 %v173, 94
      %v628 = vpop.permute.xlu0 %627
      %629 = vrot.lane.b32.xlu0 %v174, 94
      %v630 = vpop.permute.xlu0 %629
      %631 = vrot.lane.b32.xlu0 %v176, 94
      %v632 = vpop.permute.xlu0 %631
      %633 = vrot.lane.b32.xlu0 %v177, 94
      %v634 = vpop.permute.xlu0 %633
      %v635 = vrot.slane %v628, 4
      %v636 = vrot.slane %v630, 4
      %v637 = vrot.slane %v632, 4
      %v638 = vrot.slane %v634, 4
      %v639 = vsel %vm197, %v635, %v636
      %vm640 = vcmask 769024
      %v641 = vsel %vm640, %v628, %v639
      %v642 = vsel %vm197, %v637, %v638
      %v643 = vsel %vm640, %v632, %v642
      %646 = vst [vmem:[#allocation2 + $0x160] sm:$0xff] %v641
      %647 = vst [vmem:[#allocation2 + $0x168] sm:$0xff] %v643
      %648 = vrot.lane.b32.xlu0 %v173, 93
      %v649 = vpop.permute.xlu0 %648
      %650 = vrot.lane.b32.xlu0 %v174, 93
      %v651 = vpop.permute.xlu0 %650
      %652 = vrot.lane.b32.xlu0 %v176, 93
      %v653 = vpop.permute.xlu0 %652
      %654 = vrot.lane.b32.xlu0 %v177, 93
      %v655 = vpop.permute.xlu0 %654
      %v656 = vrot.slane %v649, 4
      %v657 = vrot.slane %v651, 4
      %v658 = vrot.slane %v653, 4
      %v659 = vrot.slane %v655, 4
      %v660 = vsel %vm197, %v656, %v657
      %vm661 = vcmask 760832
      %v662 = vsel %vm661, %v649, %v660
      %v663 = vsel %vm197, %v658, %v659
      %v664 = vsel %vm661, %v653, %v663
      %667 = vst [vmem:[#allocation2 + $0x170] sm:$0xff] %v662
      %668 = vst [vmem:[#allocation2 + $0x178] sm:$0xff] %v664
      %669 = vrot.lane.b32.xlu0 %v173, 92
      %v670 = vpop.permute.xlu0 %669
      %671 = vrot.lane.b32.xlu0 %v174, 92
      %v672 = vpop.permute.xlu0 %671
      %673 = vrot.lane.b32.xlu0 %v176, 92
      %v674 = vpop.permute.xlu0 %673
      %675 = vrot.lane.b32.xlu0 %v177, 92
      %v676 = vpop.permute.xlu0 %675
      %v677 = vrot.slane %v670, 4
      %v678 = vrot.slane %v672, 4
      %v679 = vrot.slane %v674, 4
      %v680 = vrot.slane %v676, 4
      %v681 = vsel %vm197, %v677, %v678
      %vm682 = vcmask 752640
      %v683 = vsel %vm682, %v670, %v681
      %v684 = vsel %vm197, %v679, %v680
      %v685 = vsel %vm682, %v674, %v684
      %688 = vst [vmem:[#allocation2 + $0x180] sm:$0xff] %v683
      %689 = vst [vmem:[#allocation2 + $0x188] sm:$0xff] %v685
      %690 = vrot.lane.b32.xlu0 %v173, 64
      %v691 = vpop.permute.xlu0 %690
      %692 = vrot.lane.b32.xlu0 %v174, 64
      %v693 = vpop.permute.xlu0 %692
      %694 = vrot.lane.b32.xlu0 %v176, 64
      %v695 = vpop.permute.xlu0 %694
      %696 = vrot.lane.b32.xlu0 %v177, 64
      %v697 = vpop.permute.xlu0 %696
      %v698 = vrot.slane %v691, 4
      %v699 = vrot.slane %v693, 4
      %v700 = vrot.slane %v695, 4
      %v701 = vrot.slane %v697, 4
      %v702 = vsel %vm197, %v698, %v699
      %vm703 = vcmask 523264
      %v704 = vsel %vm703, %v691, %v702
      %v705 = vsel %vm197, %v700, %v701
      %v706 = vsel %vm703, %v695, %v705
      %709 = vst [vmem:[#allocation2 + $0x190] sm:$0xff] %v704
      %710 = vst [vmem:[#allocation2 + $0x198] sm:$0xff] %v706
      %711 = vrot.lane.b32.xlu0 %v173, 63
      %v712 = vpop.permute.xlu0 %711
      %713 = vrot.lane.b32.xlu0 %v174, 63
      %v714 = vpop.permute.xlu0 %713
      %715 = vrot.lane.b32.xlu0 %v176, 63
      %v716 = vpop.permute.xlu0 %715
      %717 = vrot.lane.b32.xlu0 %v177, 63
      %v718 = vpop.permute.xlu0 %717
      %v719 = vrot.slane %v712, 4
      %v720 = vrot.slane %v714, 4
      %v721 = vrot.slane %v716, 4
      %v722 = vrot.slane %v718, 4
      %v723 = vsel %vm197, %v719, %v720
      %vm724 = vcmask 515072
      %v725 = vsel %vm724, %v712, %v723
      %v726 = vsel %vm197, %v721, %v722
      %v727 = vsel %vm724, %v716, %v726
      %730 = vst [vmem:[#allocation2 + $0x1a0] sm:$0xff] %v725
      %731 = vst [vmem:[#allocation2 + $0x1a8] sm:$0xff] %v727
      %732 = vrot.lane.b32.xlu0 %v173, 62
      %v733 = vpop.permute.xlu0 %732
      %734 = vrot.lane.b32.xlu0 %v174, 62
      %v735 = vpop.permute.xlu0 %734
      %736 = vrot.lane.b32.xlu0 %v176, 62
      %v737 = vpop.permute.xlu0 %736
      %738 = vrot.lane.b32.xlu0 %v177, 62
      %v739 = vpop.permute.xlu0 %738
      %v740 = vrot.slane %v733, 4
      %v741 = vrot.slane %v735, 4
      %v742 = vrot.slane %v737, 4
      %v743 = vrot.slane %v739, 4
      %v744 = vsel %vm197, %v740, %v741
      %vm745 = vcmask 506880
      %v746 = vsel %vm745, %v733, %v744
      %v747 = vsel %vm197, %v742, %v743
      %v748 = vsel %vm745, %v737, %v747
      %751 = vst [vmem:[#allocation2 + $0x1b0] sm:$0xff] %v746
      %752 = vst [vmem:[#allocation2 + $0x1b8] sm:$0xff] %v748
      %753 = vrot.lane.b32.xlu0 %v173, 61
      %v754 = vpop.permute.xlu0 %753
      %755 = vrot.lane.b32.xlu0 %v174, 61
      %v756 = vpop.permute.xlu0 %755
      %757 = vrot.lane.b32.xlu0 %v176, 61
      %v758 = vpop.permute.xlu0 %757
      %759 = vrot.lane.b32.xlu0 %v177, 61
      %v760 = vpop.permute.xlu0 %759
      %v761 = vrot.slane %v754, 4
      %v762 = vrot.slane %v756, 4
      %v763 = vrot.slane %v758, 4
      %v764 = vrot.slane %v760, 4
      %v765 = vsel %vm197, %v761, %v762
      %vm766 = vcmask 498688
      %v767 = vsel %vm766, %v754, %v765
      %v768 = vsel %vm197, %v763, %v764
      %v769 = vsel %vm766, %v758, %v768
      %772 = vst [vmem:[#allocation2 + $0x1c0] sm:$0xff] %v767
      %773 = vst [vmem:[#allocation2 + $0x1c8] sm:$0xff] %v769
      %774 = vrot.lane.b32.xlu0 %v173, 60
      %v775 = vpop.permute.xlu0 %774
      %776 = vrot.lane.b32.xlu0 %v174, 60
      %v777 = vpop.permute.xlu0 %776
      %778 = vrot.lane.b32.xlu0 %v176, 60
      %v779 = vpop.permute.xlu0 %778
      %780 = vrot.lane.b32.xlu0 %v177, 60
      %v781 = vpop.permute.xlu0 %780
      %v782 = vrot.slane %v775, 4
      %v783 = vrot.slane %v777, 4
      %v784 = vrot.slane %v779, 4
      %v785 = vrot.slane %v781, 4
      %v786 = vsel %vm197, %v782, %v783
      %vm787 = vcmask 490496
      %v788 = vsel %vm787, %v775, %v786
      %v789 = vsel %vm197, %v784, %v785
      %v790 = vsel %vm787, %v779, %v789
      %793 = vst [vmem:[#allocation2 + $0x1d0] sm:$0xff] %v788
      %794 = vst [vmem:[#allocation2 + $0x1d8] sm:$0xff] %v790
      %795 = vrot.lane.b32.xlu0 %v173, 56
      %v796 = vpop.permute.xlu0 %795
      %797 = vrot.lane.b32.xlu0 %v174, 56
      %v798 = vpop.permute.xlu0 %797
      %799 = vrot.lane.b32.xlu0 %v176, 56
      %v800 = vpop.permute.xlu0 %799
      %801 = vrot.lane.b32.xlu0 %v177, 56
      %v802 = vpop.permute.xlu0 %801
      %v803 = vrot.slane %v796, 4
      %v804 = vrot.slane %v798, 4
      %v805 = vrot.slane %v800, 4
      %v806 = vrot.slane %v802, 4
      %v807 = vsel %vm197, %v803, %v804
      %vm808 = vcmask 457728
      %v809 = vsel %vm808, %v796, %v807
      %v810 = vsel %vm197, %v805, %v806
      %v811 = vsel %vm808, %v800, %v810
      %814 = vst [vmem:[#allocation2 + $0x1e0] sm:$0xff] %v809
      %815 = vst [vmem:[#allocation2 + $0x1e8] sm:$0xff] %v811
      %816 = vrot.lane.b32.xlu0 %v173, 55
      %v817 = vpop.permute.xlu0 %816
      %818 = vrot.lane.b32.xlu0 %v174, 55
      %v819 = vpop.permute.xlu0 %818
      %820 = vrot.lane.b32.xlu0 %v176, 55
      %v821 = vpop.permute.xlu0 %820
      %822 = vrot.lane.b32.xlu0 %v177, 55
      %v823 = vpop.permute.xlu0 %822
      %v824 = vrot.slane %v817, 4
      %v825 = vrot.slane %v819, 4
      %v826 = vrot.slane %v821, 4
      %v827 = vrot.slane %v823, 4
      %v828 = vsel %vm197, %v824, %v825
      %vm829 = vcmask 449536
      %v830 = vsel %vm829, %v817, %v828
      %v831 = vsel %vm197, %v826, %v827
      %v832 = vsel %vm829, %v821, %v831
      %835 = vst [vmem:[#allocation2 + $0x1f0] sm:$0xff] %v830
      %836 = vst [vmem:[#allocation2 + $0x1f8] sm:$0xff] %v832
      %837 = vrot.lane.b32.xlu0 %v173, 54
      %v838 = vpop.permute.xlu0 %837
      %839 = vrot.lane.b32.xlu0 %v174, 54
      %v840 = vpop.permute.xlu0 %839
      %841 = vrot.lane.b32.xlu0 %v176, 54
      %v842 = vpop.permute.xlu0 %841
      %843 = vrot.lane.b32.xlu0 %v177, 54
      %v844 = vpop.permute.xlu0 %843
      %v845 = vrot.slane %v838, 4
      %v846 = vrot.slane %v840, 4
      %v847 = vrot.slane %v842, 4
      %v848 = vrot.slane %v844, 4
      %v849 = vsel %vm197, %v845, %v846
      %vm850 = vcmask 441344
      %v851 = vsel %vm850, %v838, %v849
      %v852 = vsel %vm197, %v847, %v848
      %v853 = vsel %vm850, %v842, %v852
      %856 = vst [vmem:[#allocation2 + $0x200] sm:$0xff] %v851
      %857 = vst [vmem:[#allocation2 + $0x208] sm:$0xff] %v853
      %858 = vrot.lane.b32.xlu0 %v173, 53
      %v859 = vpop.permute.xlu0 %858
      %860 = vrot.lane.b32.xlu0 %v174, 53
      %v861 = vpop.permute.xlu0 %860
      %862 = vrot.lane.b32.xlu0 %v176, 53
      %v863 = vpop.permute.xlu0 %862
      %864 = vrot.lane.b32.xlu0 %v177, 53
      %v865 = vpop.permute.xlu0 %864
      %v866 = vrot.slane %v859, 4
      %v867 = vrot.slane %v861, 4
      %v868 = vrot.slane %v863, 4
      %v869 = vrot.slane %v865, 4
      %v870 = vsel %vm197, %v866, %v867
      %vm871 = vcmask 433152
      %v872 = vsel %vm871, %v859, %v870
      %v873 = vsel %vm197, %v868, %v869
      %v874 = vsel %vm871, %v863, %v873
      %877 = vst [vmem:[#allocation2 + $0x210] sm:$0xff] %v872
      %878 = vst [vmem:[#allocation2 + $0x218] sm:$0xff] %v874
      %879 = vrot.lane.b32.xlu0 %v173, 52
      %v880 = vpop.permute.xlu0 %879
      %881 = vrot.lane.b32.xlu0 %v174, 52
      %v882 = vpop.permute.xlu0 %881
      %883 = vrot.lane.b32.xlu0 %v176, 52
      %v884 = vpop.permute.xlu0 %883
      %885 = vrot.lane.b32.xlu0 %v177, 52
      %v886 = vpop.permute.xlu0 %885
      %v887 = vrot.slane %v880, 4
      %v888 = vrot.slane %v882, 4
      %v889 = vrot.slane %v884, 4
      %v890 = vrot.slane %v886, 4
      %v891 = vsel %vm197, %v887, %v888
      %vm892 = vcmask 424960
      %v893 = vsel %vm892, %v880, %v891
      %v894 = vsel %vm197, %v889, %v890
      %v895 = vsel %vm892, %v884, %v894
      %898 = vst [vmem:[#allocation2 + $0x220] sm:$0xff] %v893
      %899 = vst [vmem:[#allocation2 + $0x228] sm:$0xff] %v895
      %900 = vrot.lane.b32.xlu0 %v173, 48
      %v901 = vpop.permute.xlu0 %900
      %902 = vrot.lane.b32.xlu0 %v174, 48
      %v903 = vpop.permute.xlu0 %902
      %904 = vrot.lane.b32.xlu0 %v176, 48
      %v905 = vpop.permute.xlu0 %904
      %906 = vrot.lane.b32.xlu0 %v177, 48
      %v907 = vpop.permute.xlu0 %906
      %v908 = vrot.slane %v901, 4
      %v909 = vrot.slane %v903, 4
      %v910 = vrot.slane %v905, 4
      %v911 = vrot.slane %v907, 4
      %v912 = vsel %vm197, %v908, %v909
      %vm913 = vcmask 392192
      %v914 = vsel %vm913, %v901, %v912
      %v915 = vsel %vm197, %v910, %v911
      %v916 = vsel %vm913, %v905, %v915
      %919 = vst [vmem:[#allocation2 + $0x230] sm:$0xff] %v914
      %920 = vst [vmem:[#allocation2 + $0x238] sm:$0xff] %v916
      %921 = vrot.lane.b32.xlu0 %v173, 47
      %v922 = vpop.permute.xlu0 %921
      %923 = vrot.lane.b32.xlu0 %v174, 47
      %v924 = vpop.permute.xlu0 %923
      %925 = vrot.lane.b32.xlu0 %v176, 47
      %v926 = vpop.permute.xlu0 %925
      %927 = vrot.lane.b32.xlu0 %v177, 47
      %v928 = vpop.permute.xlu0 %927
      %v929 = vrot.slane %v922, 4
      %v930 = vrot.slane %v924, 4
      %v931 = vrot.slane %v926, 4
      %v932 = vrot.slane %v928, 4
      %v933 = vsel %vm197, %v929, %v930
      %vm934 = vcmask 384000
      %v935 = vsel %vm934, %v922, %v933
      %v936 = vsel %vm197, %v931, %v932
      %v937 = vsel %vm934, %v926, %v936
      %940 = vst [vmem:[#allocation2 + $0x240] sm:$0xff] %v935
      %941 = vst [vmem:[#allocation2 + $0x248] sm:$0xff] %v937
      %942 = vrot.lane.b32.xlu0 %v173, 46
      %v943 = vpop.permute.xlu0 %942
      %944 = vrot.lane.b32.xlu0 %v174, 46
      %v945 = vpop.permute.xlu0 %944
      %946 = vrot.lane.b32.xlu0 %v176, 46
      %v947 = vpop.permute.xlu0 %946
      %948 = vrot.lane.b32.xlu0 %v177, 46
      %v949 = vpop.permute.xlu0 %948
      %v950 = vrot.slane %v943, 4
      %v951 = vrot.slane %v945, 4
      %v952 = vrot.slane %v947, 4
      %v953 = vrot.slane %v949, 4
      %v954 = vsel %vm197, %v950, %v951
      %vm955 = vcmask 375808
      %v956 = vsel %vm955, %v943, %v954
      %v957 = vsel %vm197, %v952, %v953
      %v958 = vsel %vm955, %v947, %v957
      %961 = vst [vmem:[#allocation2 + $0x250] sm:$0xff] %v956
      %962 = vst [vmem:[#allocation2 + $0x258] sm:$0xff] %v958
      %963 = vrot.lane.b32.xlu0 %v173, 45
      %v964 = vpop.permute.xlu0 %963
      %965 = vrot.lane.b32.xlu0 %v174, 45
      %v966 = vpop.permute.xlu0 %965
      %967 = vrot.lane.b32.xlu0 %v176, 45
      %v968 = vpop.permute.xlu0 %967
      %969 = vrot.lane.b32.xlu0 %v177, 45
      %v970 = vpop.permute.xlu0 %969
      %v971 = vrot.slane %v964, 4
      %v972 = vrot.slane %v966, 4
      %v973 = vrot.slane %v968, 4
      %v974 = vrot.slane %v970, 4
      %v975 = vsel %vm197, %v971, %v972
      %vm976 = vcmask 367616
      %v977 = vsel %vm976, %v964, %v975
      %v978 = vsel %vm197, %v973, %v974
      %v979 = vsel %vm976, %v968, %v978
      %982 = vst [vmem:[#allocation2 + $0x260] sm:$0xff] %v977
      %983 = vst [vmem:[#allocation2 + $0x268] sm:$0xff] %v979
      %984 = vrot.lane.b32.xlu0 %v173, 44
      %v985 = vpop.permute.xlu0 %984
      %986 = vrot.lane.b32.xlu0 %v174, 44
      %v987 = vpop.permute.xlu0 %986
      %988 = vrot.lane.b32.xlu0 %v176, 44
      %v989 = vpop.permute.xlu0 %988
      %990 = vrot.lane.b32.xlu0 %v177, 44
      %v991 = vpop.permute.xlu0 %990
      %v992 = vrot.slane %v985, 4
      %v993 = vrot.slane %v987, 4
      %v994 = vrot.slane %v989, 4
      %v995 = vrot.slane %v991, 4
      %v996 = vsel %vm197, %v992, %v993
      %vm997 = vcmask 359424
      %v998 = vsel %vm997, %v985, %v996
      %v999 = vsel %vm197, %v994, %v995
      %v1000 = vsel %vm997, %v989, %v999
      %1003 = vst [vmem:[#allocation2 + $0x270] sm:$0xff] %v998
      %1004 = vst [vmem:[#allocation2 + $0x278] sm:$0xff] %v1000
      %1005 = vrot.lane.b32.xlu0 %v173, 40
      %v1006 = vpop.permute.xlu0 %1005
      %1007 = vrot.lane.b32.xlu0 %v174, 40
      %v1008 = vpop.permute.xlu0 %1007
      %1009 = vrot.lane.b32.xlu0 %v176, 40
      %v1010 = vpop.permute.xlu0 %1009
      %1011 = vrot.lane.b32.xlu0 %v177, 40
      %v1012 = vpop.permute.xlu0 %1011
      %v1013 = vrot.slane %v1006, 4
      %v1014 = vrot.slane %v1008, 4
      %v1015 = vrot.slane %v1010, 4
      %v1016 = vrot.slane %v1012, 4
      %v1017 = vsel %vm197, %v1013, %v1014
      %vm1018 = vcmask 326656
      %v1019 = vsel %vm1018, %v1006, %v1017
      %v1020 = vsel %vm197, %v1015, %v1016
      %v1021 = vsel %vm1018, %v1010, %v1020
      %1024 = vst [vmem:[#allocation2 + $0x280] sm:$0xff] %v1019
      %1025 = vst [vmem:[#allocation2 + $0x288] sm:$0xff] %v1021
      %1026 = vrot.lane.b32.xlu0 %v173, 39
      %v1027 = vpop.permute.xlu0 %1026
      %1028 = vrot.lane.b32.xlu0 %v174, 39
      %v1029 = vpop.permute.xlu0 %1028
      %1030 = vrot.lane.b32.xlu0 %v176, 39
      %v1031 = vpop.permute.xlu0 %1030
      %1032 = vrot.lane.b32.xlu0 %v177, 39
      %v1033 = vpop.permute.xlu0 %1032
      %v1034 = vrot.slane %v1027, 4
      %v1035 = vrot.slane %v1029, 4
      %v1036 = vrot.slane %v1031, 4
      %v1037 = vrot.slane %v1033, 4
      %v1038 = vsel %vm197, %v1034, %v1035
      %vm1039 = vcmask 318464
      %v1040 = vsel %vm1039, %v1027, %v1038
      %v1041 = vsel %vm197, %v1036, %v1037
      %v1042 = vsel %vm1039, %v1031, %v1041
      %1045 = vst [vmem:[#allocation2 + $0x290] sm:$0xff] %v1040
      %1046 = vst [vmem:[#allocation2 + $0x298] sm:$0xff] %v1042
      %1047 = vrot.lane.b32.xlu0 %v173, 38
      %v1048 = vpop.permute.xlu0 %1047
      %1049 = vrot.lane.b32.xlu0 %v174, 38
      %v1050 = vpop.permute.xlu0 %1049
      %1051 = vrot.lane.b32.xlu0 %v176, 38
      %v1052 = vpop.permute.xlu0 %1051
      %1053 = vrot.lane.b32.xlu0 %v177, 38
      %v1054 = vpop.permute.xlu0 %1053
      %v1055 = vrot.slane %v1048, 4
      %v1056 = vrot.slane %v1050, 4
      %v1057 = vrot.slane %v1052, 4
      %v1058 = vrot.slane %v1054, 4
      %v1059 = vsel %vm197, %v1055, %v1056
      %vm1060 = vcmask 310272
      %v1061 = vsel %vm1060, %v1048, %v1059
      %v1062 = vsel %vm197, %v1057, %v1058
      %v1063 = vsel %vm1060, %v1052, %v1062
      %1066 = vst [vmem:[#allocation2 + $0x2a0] sm:$0xff] %v1061
      %1067 = vst [vmem:[#allocation2 + $0x2a8] sm:$0xff] %v1063
      %1068 = vrot.lane.b32.xlu0 %v173, 37
      %v1069 = vpop.permute.xlu0 %1068
      %1070 = vrot.lane.b32.xlu0 %v174, 37
      %v1071 = vpop.permute.xlu0 %1070
      %1072 = vrot.lane.b32.xlu0 %v176, 37
      %v1073 = vpop.permute.xlu0 %1072
      %1074 = vrot.lane.b32.xlu0 %v177, 37
      %v1075 = vpop.permute.xlu0 %1074
      %v1076 = vrot.slane %v1069, 4
      %v1077 = vrot.slane %v1071, 4
      %v1078 = vrot.slane %v1073, 4
      %v1079 = vrot.slane %v1075, 4
      %v1080 = vsel %vm197, %v1076, %v1077
      %vm1081 = vcmask 302080
      %v1082 = vsel %vm1081, %v1069, %v1080
      %v1083 = vsel %vm197, %v1078, %v1079
      %v1084 = vsel %vm1081, %v1073, %v1083
      %1087 = vst [vmem:[#allocation2 + $0x2b0] sm:$0xff] %v1082
      %1088 = vst [vmem:[#allocation2 + $0x2b8] sm:$0xff] %v1084
      %1089 = vrot.lane.b32.xlu0 %v173, 36
      %v1090 = vpop.permute.xlu0 %1089
      %1091 = vrot.lane.b32.xlu0 %v174, 36
      %v1092 = vpop.permute.xlu0 %1091
      %1093 = vrot.lane.b32.xlu0 %v176, 36
      %v1094 = vpop.permute.xlu0 %1093
      %1095 = vrot.lane.b32.xlu0 %v177, 36
      %v1096 = vpop.permute.xlu0 %1095
      %v1097 = vrot.slane %v1090, 4
      %v1098 = vrot.slane %v1092, 4
      %v1099 = vrot.slane %v1094, 4
      %v1100 = vrot.slane %v1096, 4
      %v1101 = vsel %vm197, %v1097, %v1098
      %vm1102 = vcmask 293888
      %v1103 = vsel %vm1102, %v1090, %v1101
      %v1104 = vsel %vm197, %v1099, %v1100
      %v1105 = vsel %vm1102, %v1094, %v1104
      %1108 = vst [vmem:[#allocation2 + $0x2c0] sm:$0xff] %v1103
      %1109 = vst [vmem:[#allocation2 + $0x2c8] sm:$0xff] %v1105
      %1110 = vrot.lane.b32.xlu0 %v173, 32
      %v1111 = vpop.permute.xlu0 %1110
      %1112 = vrot.lane.b32.xlu0 %v174, 32
      %v1113 = vpop.permute.xlu0 %1112
      %1114 = vrot.lane.b32.xlu0 %v176, 32
      %v1115 = vpop.permute.xlu0 %1114
      %1116 = vrot.lane.b32.xlu0 %v177, 32
      %v1117 = vpop.permute.xlu0 %1116
      %v1118 = vrot.slane %v1111, 4
      %v1119 = vrot.slane %v1113, 4
      %v1120 = vrot.slane %v1115, 4
      %v1121 = vrot.slane %v1117, 4
      %v1122 = vsel %vm197, %v1118, %v1119
      %vm1123 = vcmask 261120
      %v1124 = vsel %vm1123, %v1111, %v1122
      %v1125 = vsel %vm197, %v1120, %v1121
      %v1126 = vsel %vm1123, %v1115, %v1125
      %1129 = vst [vmem:[#allocation2 + $0x2d0] sm:$0xff] %v1124
      %1130 = vst [vmem:[#allocation2 + $0x2d8] sm:$0xff] %v1126
      %1131 = vrot.lane.b32.xlu0 %v173, 31
      %v1132 = vpop.permute.xlu0 %1131
      %1133 = vrot.lane.b32.xlu0 %v174, 31
      %v1134 = vpop.permute.xlu0 %1133
      %1135 = vrot.lane.b32.xlu0 %v176, 31
      %v1136 = vpop.permute.xlu0 %1135
      %1137 = vrot.lane.b32.xlu0 %v177, 31
      %v1138 = vpop.permute.xlu0 %1137
      %v1139 = vrot.slane %v1132, 4
      %v1140 = vrot.slane %v1134, 4
      %v1141 = vrot.slane %v1136, 4
      %v1142 = vrot.slane %v1138, 4
      %v1143 = vsel %vm197, %v1139, %v1140
      %vm1144 = vcmask 252928
      %v1145 = vsel %vm1144, %v1132, %v1143
      %v1146 = vsel %vm197, %v1141, %v1142
      %v1147 = vsel %vm1144, %v1136, %v1146
      %1150 = vst [vmem:[#allocation2 + $0x2e0] sm:$0xff] %v1145
      %1151 = vst [vmem:[#allocation2 + $0x2e8] sm:$0xff] %v1147
      %1152 = vrot.lane.b32.xlu0 %v173, 30
      %v1153 = vpop.permute.xlu0 %1152
      %1154 = vrot.lane.b32.xlu0 %v174, 30
      %v1155 = vpop.permute.xlu0 %1154
      %1156 = vrot.lane.b32.xlu0 %v176, 30
      %v1157 = vpop.permute.xlu0 %1156
      %1158 = vrot.lane.b32.xlu0 %v177, 30
      %v1159 = vpop.permute.xlu0 %1158
      %v1160 = vrot.slane %v1153, 4
      %v1161 = vrot.slane %v1155, 4
      %v1162 = vrot.slane %v1157, 4
      %v1163 = vrot.slane %v1159, 4
      %v1164 = vsel %vm197, %v1160, %v1161
      %vm1165 = vcmask 244736
      %v1166 = vsel %vm1165, %v1153, %v1164
      %v1167 = vsel %vm197, %v1162, %v1163
      %v1168 = vsel %vm1165, %v1157, %v1167
      %1171 = vst [vmem:[#allocation2 + $0x2f0] sm:$0xff] %v1166
      %1172 = vst [vmem:[#allocation2 + $0x2f8] sm:$0xff] %v1168
      %1173 = vrot.lane.b32.xlu0 %v173, 29
      %v1174 = vpop.permute.xlu0 %1173
      %1175 = vrot.lane.b32.xlu0 %v174, 29
      %v1176 = vpop.permute.xlu0 %1175
      %1177 = vrot.lane.b32.xlu0 %v176, 29
      %v1178 = vpop.permute.xlu0 %1177
      %1179 = vrot.lane.b32.xlu0 %v177, 29
      %v1180 = vpop.permute.xlu0 %1179
      %v1181 = vrot.slane %v1174, 4
      %v1182 = vrot.slane %v1176, 4
      %v1183 = vrot.slane %v1178, 4
      %v1184 = vrot.slane %v1180, 4
      %v1185 = vsel %vm197, %v1181, %v1182
      %vm1186 = vcmask 236544
      %v1187 = vsel %vm1186, %v1174, %v1185
      %v1188 = vsel %vm197, %v1183, %v1184
      %v1189 = vsel %vm1186, %v1178, %v1188
      %1192 = vst [vmem:[#allocation2 + $0x300] sm:$0xff] %v1187
      %1193 = vst [vmem:[#allocation2 + $0x308] sm:$0xff] %v1189
      %1194 = vrot.lane.b32.xlu0 %v173, 28
      %v1195 = vpop.permute.xlu0 %1194
      %1196 = vrot.lane.b32.xlu0 %v174, 28
      %v1197 = vpop.permute.xlu0 %1196
      %1198 = vrot.lane.b32.xlu0 %v176, 28
      %v1199 = vpop.permute.xlu0 %1198
      %1200 = vrot.lane.b32.xlu0 %v177, 28
      %v1201 = vpop.permute.xlu0 %1200
      %v1202 = vrot.slane %v1195, 4
      %v1203 = vrot.slane %v1197, 4
      %v1204 = vrot.slane %v1199, 4
      %v1205 = vrot.slane %v1201, 4
      %v1206 = vsel %vm197, %v1202, %v1203
      %vm1207 = vcmask 228352
      %v1208 = vsel %vm1207, %v1195, %v1206
      %v1209 = vsel %vm197, %v1204, %v1205
      %v1210 = vsel %vm1207, %v1199, %v1209
      %1213 = vst [vmem:[#allocation2 + $0x310] sm:$0xff] %v1208
      %1214 = vst [vmem:[#allocation2 + $0x318] sm:$0xff] %v1210
      %v1215 = vrot.slane %v173, 4
      %v1216 = vrot.slane %v174, 4
      %v1217 = vrot.slane %v176, 4
      %v1218 = vrot.slane %v177, 4
      %v1219 = vsel %vm197, %v1215, %v1216
      %v1220 = vsel %vm197, %v1217, %v1218
      %1223 = vst [vmem:[#allocation2 + $0x320] sm:$0xff] %v1219
      %1224 = vst [vmem:[#allocation2 + $0x328] sm:$0xff] %v1220
      %v1225 = vsel %vm199, %v198, %v188
      %v1226 = vsel %vm199, %v201, %v192
      %1229 = vst [vmem:[#allocation2 + $0x330] sm:$0xff] %v1225
      %1230 = vst [vmem:[#allocation2 + $0x338] sm:$0xff] %v1226
      %v1231 = vsel %vm220, %v219, %v210
      %v1232 = vsel %vm220, %v222, %v214
      %1235 = vst [vmem:[#allocation2 + $0x340] sm:$0xff] %v1231
      %1236 = vst [vmem:[#allocation2 + $0x348] sm:$0xff] %v1232
      %v1237 = vsel %vm241, %v240, %v231
      %v1238 = vsel %vm241, %v243, %v235
      %1241 = vst [vmem:[#allocation2 + $0x350] sm:$0xff] %v1237
      %1242 = vst [vmem:[#allocation2 + $0x358] sm:$0xff] %v1238
      %v1243 = vsel %vm262, %v261, %v252
      %v1244 = vsel %vm262, %v264, %v256
      %1247 = vst [vmem:[#allocation2 + $0x360] sm:$0xff] %v1243
      %1248 = vst [vmem:[#allocation2 + $0x368] sm:$0xff] %v1244
      %v1249 = vsel %vm283, %v282, %v273
      %v1250 = vsel %vm283, %v285, %v277
      %1253 = vst [vmem:[#allocation2 + $0x370] sm:$0xff] %v1249
      %1254 = vst [vmem:[#allocation2 + $0x378] sm:$0xff] %v1250
      %v1255 = vsel %vm304, %v303, %v294
      %v1256 = vsel %vm304, %v306, %v298
      %1259 = vst [vmem:[#allocation2 + $0x380] sm:$0xff] %v1255
      %1260 = vst [vmem:[#allocation2 + $0x388] sm:$0xff] %v1256
      %v1261 = vsel %vm325, %v324, %v315
      %v1262 = vsel %vm325, %v327, %v319
      %1265 = vst [vmem:[#allocation2 + $0x390] sm:$0xff] %v1261
      %1266 = vst [vmem:[#allocation2 + $0x398] sm:$0xff] %v1262
      %v1267 = vsel %vm346, %v345, %v336
      %v1268 = vsel %vm346, %v348, %v340
      %1271 = vst [vmem:[#allocation2 + $0x3a0] sm:$0xff] %v1267
      %1272 = vst [vmem:[#allocation2 + $0x3a8] sm:$0xff] %v1268
      %v1273 = vsel %vm367, %v366, %v357
      %v1274 = vsel %vm367, %v369, %v361
      %1277 = vst [vmem:[#allocation2 + $0x3b0] sm:$0xff] %v1273
      %1278 = vst [vmem:[#allocation2 + $0x3b8] sm:$0xff] %v1274
      %v1279 = vsel %vm388, %v387, %v378
      %v1280 = vsel %vm388, %v390, %v382
      %1283 = vst [vmem:[#allocation2 + $0x3c0] sm:$0xff] %v1279
      %1284 = vst [vmem:[#allocation2 + $0x3c8] sm:$0xff] %v1280
      %v1285 = vsel %vm409, %v408, %v399
      %v1286 = vsel %vm409, %v411, %v403
      %1289 = vst [vmem:[#allocation2 + $0x3d0] sm:$0xff] %v1285
      %1290 = vst [vmem:[#allocation2 + $0x3d8] sm:$0xff] %v1286
      %v1291 = vsel %vm430, %v429, %v420
      %v1292 = vsel %vm430, %v432, %v424
      %1295 = vst [vmem:[#allocation2 + $0x3e0] sm:$0xff] %v1291
      %1296 = vst [vmem:[#allocation2 + $0x3e8] sm:$0xff] %v1292
      %v1297 = vsel %vm451, %v450, %v441
      %v1298 = vsel %vm451, %v453, %v445
      %1301 = vst [vmem:[#allocation2 + $0x3f0] sm:$0xff] %v1297
      %1302 = vst [vmem:[#allocation2 + $0x3f8] sm:$0xff] %v1298
      %v1303 = vsel %vm472, %v471, %v462
      %v1304 = vsel %vm472, %v474, %v466
      %1307 = vst [vmem:[#allocation2 + $0x400] sm:$0xff] %v1303
      %1308 = vst [vmem:[#allocation2 + $0x408] sm:$0xff] %v1304
      %v1309 = vsel %vm493, %v492, %v483
      %v1310 = vsel %vm493, %v495, %v487
      %1313 = vst [vmem:[#allocation2 + $0x410] sm:$0xff] %v1309
      %1314 = vst [vmem:[#allocation2 + $0x418] sm:$0xff] %v1310
      %v1315 = vsel %vm514, %v513, %v504
      %v1316 = vsel %vm514, %v516, %v508
      %1319 = vst [vmem:[#allocation2 + $0x420] sm:$0xff] %v1315
      %1320 = vst [vmem:[#allocation2 + $0x428] sm:$0xff] %v1316
      %v1321 = vsel %vm535, %v534, %v525
      %v1322 = vsel %vm535, %v537, %v529
      %1325 = vst [vmem:[#allocation2 + $0x430] sm:$0xff] %v1321
      %1326 = vst [vmem:[#allocation2 + $0x438] sm:$0xff] %v1322
      %v1327 = vsel %vm556, %v555, %v546
      %v1328 = vsel %vm556, %v558, %v550
      %1331 = vst [vmem:[#allocation2 + $0x440] sm:$0xff] %v1327
      %1332 = vst [vmem:[#allocation2 + $0x448] sm:$0xff] %v1328
      %v1333 = vsel %vm577, %v576, %v567
      %v1334 = vsel %vm577, %v579, %v571
      %1337 = vst [vmem:[#allocation2 + $0x450] sm:$0xff] %v1333
      %1338 = vst [vmem:[#allocation2 + $0x458] sm:$0xff] %v1334
      %v1339 = vsel %vm598, %v597, %v588
      %v1340 = vsel %vm598, %v600, %v592
      %1343 = vst [vmem:[#allocation2 + $0x460] sm:$0xff] %v1339
      %1344 = vst [vmem:[#allocation2 + $0x468] sm:$0xff] %v1340
      %v1345 = vsel %vm619, %v618, %v609
      %v1346 = vsel %vm619, %v621, %v613
      %1349 = vst [vmem:[#allocation2 + $0x470] sm:$0xff] %v1345
      %1350 = vst [vmem:[#allocation2 + $0x478] sm:$0xff] %v1346
      %v1351 = vsel %vm640, %v639, %v630
      %v1352 = vsel %vm640, %v642, %v634
      %1355 = vst [vmem:[#allocation2 + $0x480] sm:$0xff] %v1351
      %1356 = vst [vmem:[#allocation2 + $0x488] sm:$0xff] %v1352
      %v1357 = vsel %vm661, %v660, %v651
      %v1358 = vsel %vm661, %v663, %v655
      %1361 = vst [vmem:[#allocation2 + $0x490] sm:$0xff] %v1357
      %1362 = vst [vmem:[#allocation2 + $0x498] sm:$0xff] %v1358
      %v1363 = vsel %vm682, %v681, %v672
      %v1364 = vsel %vm682, %v684, %v676
      %1367 = vst [vmem:[#allocation2 + $0x4a0] sm:$0xff] %v1363
      %1368 = vst [vmem:[#allocation2 + $0x4a8] sm:$0xff] %v1364
      %v1369 = vsel %vm703, %v702, %v693
      %v1370 = vsel %vm703, %v705, %v697
      %1373 = vst [vmem:[#allocation2 + $0x4b0] sm:$0xff] %v1369
      %1374 = vst [vmem:[#allocation2 + $0x4b8] sm:$0xff] %v1370
      %v1375 = vsel %vm724, %v723, %v714
      %v1376 = vsel %vm724, %v726, %v718
      %1379 = vst [vmem:[#allocation2 + $0x4c0] sm:$0xff] %v1375
      %1380 = vst [vmem:[#allocation2 + $0x4c8] sm:$0xff] %v1376
      %v1381 = vsel %vm745, %v744, %v735
      %v1382 = vsel %vm745, %v747, %v739
      %1385 = vst [vmem:[#allocation2 + $0x4d0] sm:$0xff] %v1381
      %1386 = vst [vmem:[#allocation2 + $0x4d8] sm:$0xff] %v1382
      %v1387 = vsel %vm766, %v765, %v756
      %v1388 = vsel %vm766, %v768, %v760
      %1391 = vst [vmem:[#allocation2 + $0x4e0] sm:$0xff] %v1387
      %1392 = vst [vmem:[#allocation2 + $0x4e8] sm:$0xff] %v1388
      %v1393 = vsel %vm787, %v786, %v777
      %v1394 = vsel %vm787, %v789, %v781
      %1397 = vst [vmem:[#allocation2 + $0x4f0] sm:$0xff] %v1393
      %1398 = vst [vmem:[#allocation2 + $0x4f8] sm:$0xff] %v1394
      %v1399 = vsel %vm808, %v807, %v798
      %v1400 = vsel %vm808, %v810, %v802
      %1403 = vst [vmem:[#allocation2 + $0x500] sm:$0xff] %v1399
      %1404 = vst [vmem:[#allocation2 + $0x508] sm:$0xff] %v1400
      %v1405 = vsel %vm829, %v828, %v819
      %v1406 = vsel %vm829, %v831, %v823
      %1409 = vst [vmem:[#allocation2 + $0x510] sm:$0xff] %v1405
      %1410 = vst [vmem:[#allocation2 + $0x518] sm:$0xff] %v1406
      %v1411 = vsel %vm850, %v849, %v840
      %v1412 = vsel %vm850, %v852, %v844
      %1415 = vst [vmem:[#allocation2 + $0x520] sm:$0xff] %v1411
      %1416 = vst [vmem:[#allocation2 + $0x528] sm:$0xff] %v1412
      %v1417 = vsel %vm871, %v870, %v861
      %v1418 = vsel %vm871, %v873, %v865
      %1421 = vst [vmem:[#allocation2 + $0x530] sm:$0xff] %v1417
      %1422 = vst [vmem:[#allocation2 + $0x538] sm:$0xff] %v1418
      %v1423 = vsel %vm892, %v891, %v882
      %v1424 = vsel %vm892, %v894, %v886
      %1427 = vst [vmem:[#allocation2 + $0x540] sm:$0xff] %v1423
      %1428 = vst [vmem:[#allocation2 + $0x548] sm:$0xff] %v1424
      %v1429 = vsel %vm913, %v912, %v903
      %v1430 = vsel %vm913, %v915, %v907
      %1433 = vst [vmem:[#allocation2 + $0x550] sm:$0xff] %v1429
      %1434 = vst [vmem:[#allocation2 + $0x558] sm:$0xff] %v1430
      %v1435 = vsel %vm934, %v933, %v924
      %v1436 = vsel %vm934, %v936, %v928
      %1439 = vst [vmem:[#allocation2 + $0x560] sm:$0xff] %v1435
      %1440 = vst [vmem:[#allocation2 + $0x568] sm:$0xff] %v1436
      %v1441 = vsel %vm955, %v954, %v945
      %v1442 = vsel %vm955, %v957, %v949
      %1445 = vst [vmem:[#allocation2 + $0x570] sm:$0xff] %v1441
      %1446 = vst [vmem:[#allocation2 + $0x578] sm:$0xff] %v1442
      %v1447 = vsel %vm976, %v975, %v966
      %v1448 = vsel %vm976, %v978, %v970
      %1451 = vst [vmem:[#allocation2 + $0x580] sm:$0xff] %v1447
      %1452 = vst [vmem:[#allocation2 + $0x588] sm:$0xff] %v1448
      %v1453 = vsel %vm997, %v996, %v987
      %v1454 = vsel %vm997, %v999, %v991
      %1457 = vst [vmem:[#allocation2 + $0x590] sm:$0xff] %v1453
      %1458 = vst [vmem:[#allocation2 + $0x598] sm:$0xff] %v1454
      %v1459 = vsel %vm1018, %v1017, %v1008
      %v1460 = vsel %vm1018, %v1020, %v1012
      %1463 = vst [vmem:[#allocation2 + $0x5a0] sm:$0xff] %v1459
      %1464 = vst [vmem:[#allocation2 + $0x5a8] sm:$0xff] %v1460
      %v1465 = vsel %vm1039, %v1038, %v1029
      %v1466 = vsel %vm1039, %v1041, %v1033
      %1469 = vst [vmem:[#allocation2 + $0x5b0] sm:$0xff] %v1465
      %1470 = vst [vmem:[#allocation2 + $0x5b8] sm:$0xff] %v1466
      %v1471 = vsel %vm1060, %v1059, %v1050
      %v1472 = vsel %vm1060, %v1062, %v1054
      %1475 = vst [vmem:[#allocation2 + $0x5c0] sm:$0xff] %v1471
      %1476 = vst [vmem:[#allocation2 + $0x5c8] sm:$0xff] %v1472
      %v1477 = vsel %vm1081, %v1080, %v1071
      %v1478 = vsel %vm1081, %v1083, %v1075
      %1481 = vst [vmem:[#allocation2 + $0x5d0] sm:$0xff] %v1477
      %1482 = vst [vmem:[#allocation2 + $0x5d8] sm:$0xff] %v1478
      %v1483 = vsel %vm1102, %v1101, %v1092
      %v1484 = vsel %vm1102, %v1104, %v1096
      %1487 = vst [vmem:[#allocation2 + $0x5e0] sm:$0xff] %v1483
      %1488 = vst [vmem:[#allocation2 + $0x5e8] sm:$0xff] %v1484
      %v1489 = vsel %vm1123, %v1122, %v1113
      %v1490 = vsel %vm1123, %v1125, %v1117
      %1493 = vst [vmem:[#allocation2 + $0x5f0] sm:$0xff] %v1489
      %1494 = vst [vmem:[#allocation2 + $0x5f8] sm:$0xff] %v1490
      %v1495 = vsel %vm1144, %v1143, %v1134
      %v1496 = vsel %vm1144, %v1146, %v1138
      %1499 = vst [vmem:[#allocation2 + $0x600] sm:$0xff] %v1495
      %1500 = vst [vmem:[#allocation2 + $0x608] sm:$0xff] %v1496
      %v1501 = vsel %vm1165, %v1164, %v1155
      %v1502 = vsel %vm1165, %v1167, %v1159
      %1505 = vst [vmem:[#allocation2 + $0x610] sm:$0xff] %v1501
      %1506 = vst [vmem:[#allocation2 + $0x618] sm:$0xff] %v1502
      %v1507 = vsel %vm1186, %v1185, %v1176
      %v1508 = vsel %vm1186, %v1188, %v1180
      %1511 = vst [vmem:[#allocation2 + $0x620] sm:$0xff] %v1507
      %1512 = vst [vmem:[#allocation2 + $0x628] sm:$0xff] %v1508
      %v1513 = vsel %vm1207, %v1206, %v1197
      %v1514 = vsel %vm1207, %v1209, %v1201
      %1517 = vst [vmem:[#allocation2 + $0x630] sm:$0xff] %v1513
      %1518 = vst [vmem:[#allocation2 + $0x638] sm:$0xff] %v1514
      %1519 = vst [vmem:[#allocation2 + $0x640] sm:$0xff] %v174
      %1520 = vst [vmem:[#allocation2 + $0x648] sm:$0xff] %v177
      %1523 = vrot.lane.b32.xlu0 %v175, 127
      %v1524 = vpop.permute.xlu0 %1523
      %1525 = vrot.lane.b32.xlu0 %v178, 127
      %v1526 = vpop.permute.xlu0 %1525
      %v1527 = vrot.slane %v1524, 4
      %v1528 = vrot.slane %v1526, 4
      %v1529 = vsel %vm197, %v194, %v1527
      %v1530 = vsel %vm199, %v188, %v1529
      %v1531 = vsel %vm197, %v196, %v1528
      %v1532 = vsel %vm199, %v192, %v1531
      %1535 = vst [vmem:[#allocation2 + $0x650] sm:$0xff] %v1530
      %1536 = vst [vmem:[#allocation2 + $0x658] sm:$0xff] %v1532
      %1537 = vrot.lane.b32.xlu0 %v175, 126
      %v1538 = vpop.permute.xlu0 %1537
      %1539 = vrot.lane.b32.xlu0 %v178, 126
      %v1540 = vpop.permute.xlu0 %1539
      %v1541 = vrot.slane %v1538, 4
      %v1542 = vrot.slane %v1540, 4
      %v1543 = vsel %vm197, %v216, %v1541
      %v1544 = vsel %vm220, %v210, %v1543
      %v1545 = vsel %vm197, %v218, %v1542
      %v1546 = vsel %vm220, %v214, %v1545
      %1549 = vst [vmem:[#allocation2 + $0x660] sm:$0xff] %v1544
      %1550 = vst [vmem:[#allocation2 + $0x668] sm:$0xff] %v1546
      %1551 = vrot.lane.b32.xlu0 %v175, 125
      %v1552 = vpop.permute.xlu0 %1551
      %1553 = vrot.lane.b32.xlu0 %v178, 125
      %v1554 = vpop.permute.xlu0 %1553
      %v1555 = vrot.slane %v1552, 4
      %v1556 = vrot.slane %v1554, 4
      %v1557 = vsel %vm197, %v237, %v1555
      %v1558 = vsel %vm241, %v231, %v1557
      %v1559 = vsel %vm197, %v239, %v1556
      %v1560 = vsel %vm241, %v235, %v1559
      %1563 = vst [vmem:[#allocation2 + $0x670] sm:$0xff] %v1558
      %1564 = vst [vmem:[#allocation2 + $0x678] sm:$0xff] %v1560
      %1565 = vrot.lane.b32.xlu0 %v175, 124
      %v1566 = vpop.permute.xlu0 %1565
      %1567 = vrot.lane.b32.xlu0 %v178, 124
      %v1568 = vpop.permute.xlu0 %1567
      %v1569 = vrot.slane %v1566, 4
      %v1570 = vrot.slane %v1568, 4
      %v1571 = vsel %vm197, %v258, %v1569
      %v1572 = vsel %vm262, %v252, %v1571
      %v1573 = vsel %vm197, %v260, %v1570
      %v1574 = vsel %vm262, %v256, %v1573
      %1577 = vst [vmem:[#allocation2 + $0x680] sm:$0xff] %v1572
      %1578 = vst [vmem:[#allocation2 + $0x688] sm:$0xff] %v1574
      %1579 = vrot.lane.b32.xlu0 %v175, 120
      %v1580 = vpop.permute.xlu0 %1579
      %1581 = vrot.lane.b32.xlu0 %v178, 120
      %v1582 = vpop.permute.xlu0 %1581
      %v1583 = vrot.slane %v1580, 4
      %v1584 = vrot.slane %v1582, 4
      %v1585 = vsel %vm197, %v279, %v1583
      %v1586 = vsel %vm283, %v273, %v1585
      %v1587 = vsel %vm197, %v281, %v1584
      %v1588 = vsel %vm283, %v277, %v1587
      %1591 = vst [vmem:[#allocation2 + $0x690] sm:$0xff] %v1586
      %1592 = vst [vmem:[#allocation2 + $0x698] sm:$0xff] %v1588
      %1593 = vrot.lane.b32.xlu0 %v175, 119
      %v1594 = vpop.permute.xlu0 %1593
      %1595 = vrot.lane.b32.xlu0 %v178, 119
      %v1596 = vpop.permute.xlu0 %1595
      %v1597 = vrot.slane %v1594, 4
      %v1598 = vrot.slane %v1596, 4
      %v1599 = vsel %vm197, %v300, %v1597
      %v1600 = vsel %vm304, %v294, %v1599
      %v1601 = vsel %vm197, %v302, %v1598
      %v1602 = vsel %vm304, %v298, %v1601
      %1605 = vst [vmem:[#allocation2 + $0x6a0] sm:$0xff] %v1600
      %1606 = vst [vmem:[#allocation2 + $0x6a8] sm:$0xff] %v1602
      %1607 = vrot.lane.b32.xlu0 %v175, 118
      %v1608 = vpop.permute.xlu0 %1607
      %1609 = vrot.lane.b32.xlu0 %v178, 118
      %v1610 = vpop.permute.xlu0 %1609
      %v1611 = vrot.slane %v1608, 4
      %v1612 = vrot.slane %v1610, 4
      %v1613 = vsel %vm197, %v321, %v1611
      %v1614 = vsel %vm325, %v315, %v1613
      %v1615 = vsel %vm197, %v323, %v1612
      %v1616 = vsel %vm325, %v319, %v1615
      %1619 = vst [vmem:[#allocation2 + $0x6b0] sm:$0xff] %v1614
      %1620 = vst [vmem:[#allocation2 + $0x6b8] sm:$0xff] %v1616
      %1621 = vrot.lane.b32.xlu0 %v175, 117
      %v1622 = vpop.permute.xlu0 %1621
      %1623 = vrot.lane.b32.xlu0 %v178, 117
      %v1624 = vpop.permute.xlu0 %1623
      %v1625 = vrot.slane %v1622, 4
      %v1626 = vrot.slane %v1624, 4
      %v1627 = vsel %vm197, %v342, %v1625
      %v1628 = vsel %vm346, %v336, %v1627
      %v1629 = vsel %vm197, %v344, %v1626
      %v1630 = vsel %vm346, %v340, %v1629
      %1633 = vst [vmem:[#allocation2 + $0x6c0] sm:$0xff] %v1628
      %1634 = vst [vmem:[#allocation2 + $0x6c8] sm:$0xff] %v1630
      %1635 = vrot.lane.b32.xlu0 %v175, 116
      %v1636 = vpop.permute.xlu0 %1635
      %1637 = vrot.lane.b32.xlu0 %v178, 116
      %v1638 = vpop.permute.xlu0 %1637
      %v1639 = vrot.slane %v1636, 4
      %v1640 = vrot.slane %v1638, 4
      %v1641 = vsel %vm197, %v363, %v1639
      %v1642 = vsel %vm367, %v357, %v1641
      %v1643 = vsel %vm197, %v365, %v1640
      %v1644 = vsel %vm367, %v361, %v1643
      %1647 = vst [vmem:[#allocation2 + $0x6d0] sm:$0xff] %v1642
      %1648 = vst [vmem:[#allocation2 + $0x6d8] sm:$0xff] %v1644
      %1649 = vrot.lane.b32.xlu0 %v175, 112
      %v1650 = vpop.permute.xlu0 %1649
      %1651 = vrot.lane.b32.xlu0 %v178, 112
      %v1652 = vpop.permute.xlu0 %1651
      %v1653 = vrot.slane %v1650, 4
      %v1654 = vrot.slane %v1652, 4
      %v1655 = vsel %vm197, %v384, %v1653
      %v1656 = vsel %vm388, %v378, %v1655
      %v1657 = vsel %vm197, %v386, %v1654
      %v1658 = vsel %vm388, %v382, %v1657
      %1661 = vst [vmem:[#allocation2 + $0x6e0] sm:$0xff] %v1656
      %1662 = vst [vmem:[#allocation2 + $0x6e8] sm:$0xff] %v1658
      %1663 = vrot.lane.b32.xlu0 %v175, 111
      %v1664 = vpop.permute.xlu0 %1663
      %1665 = vrot.lane.b32.xlu0 %v178, 111
      %v1666 = vpop.permute.xlu0 %1665
      %v1667 = vrot.slane %v1664, 4
      %v1668 = vrot.slane %v1666, 4
      %v1669 = vsel %vm197, %v405, %v1667
      %v1670 = vsel %vm409, %v399, %v1669
      %v1671 = vsel %vm197, %v407, %v1668
      %v1672 = vsel %vm409, %v403, %v1671
      %1675 = vst [vmem:[#allocation2 + $0x6f0] sm:$0xff] %v1670
      %1676 = vst [vmem:[#allocation2 + $0x6f8] sm:$0xff] %v1672
      %1677 = vrot.lane.b32.xlu0 %v175, 110
      %v1678 = vpop.permute.xlu0 %1677
      %1679 = vrot.lane.b32.xlu0 %v178, 110
      %v1680 = vpop.permute.xlu0 %1679
      %v1681 = vrot.slane %v1678, 4
      %v1682 = vrot.slane %v1680, 4
      %v1683 = vsel %vm197, %v426, %v1681
      %v1684 = vsel %vm430, %v420, %v1683
      %v1685 = vsel %vm197, %v428, %v1682
      %v1686 = vsel %vm430, %v424, %v1685
      %1689 = vst [vmem:[#allocation2 + $0x700] sm:$0xff] %v1684
      %1690 = vst [vmem:[#allocation2 + $0x708] sm:$0xff] %v1686
      %1691 = vrot.lane.b32.xlu0 %v175, 109
      %v1692 = vpop.permute.xlu0 %1691
      %1693 = vrot.lane.b32.xlu0 %v178, 109
      %v1694 = vpop.permute.xlu0 %1693
      %v1695 = vrot.slane %v1692, 4
      %v1696 = vrot.slane %v1694, 4
      %v1697 = vsel %vm197, %v447, %v1695
      %v1698 = vsel %vm451, %v441, %v1697
      %v1699 = vsel %vm197, %v449, %v1696
      %v1700 = vsel %vm451, %v445, %v1699
      %1703 = vst [vmem:[#allocation2 + $0x710] sm:$0xff] %v1698
      %1704 = vst [vmem:[#allocation2 + $0x718] sm:$0xff] %v1700
      %1705 = vrot.lane.b32.xlu0 %v175, 108
      %v1706 = vpop.permute.xlu0 %1705
      %1707 = vrot.lane.b32.xlu0 %v178, 108
      %v1708 = vpop.permute.xlu0 %1707
      %v1709 = vrot.slane %v1706, 4
      %v1710 = vrot.slane %v1708, 4
      %v1711 = vsel %vm197, %v468, %v1709
      %v1712 = vsel %vm472, %v462, %v1711
      %v1713 = vsel %vm197, %v470, %v1710
      %v1714 = vsel %vm472, %v466, %v1713
      %1717 = vst [vmem:[#allocation2 + $0x720] sm:$0xff] %v1712
      %1718 = vst [vmem:[#allocation2 + $0x728] sm:$0xff] %v1714
      %1719 = vrot.lane.b32.xlu0 %v175, 104
      %v1720 = vpop.permute.xlu0 %1719
      %1721 = vrot.lane.b32.xlu0 %v178, 104
      %v1722 = vpop.permute.xlu0 %1721
      %v1723 = vrot.slane %v1720, 4
      %v1724 = vrot.slane %v1722, 4
      %v1725 = vsel %vm197, %v489, %v1723
      %v1726 = vsel %vm493, %v483, %v1725
      %v1727 = vsel %vm197, %v491, %v1724
      %v1728 = vsel %vm493, %v487, %v1727
      %1731 = vst [vmem:[#allocation2 + $0x730] sm:$0xff] %v1726
      %1732 = vst [vmem:[#allocation2 + $0x738] sm:$0xff] %v1728
      %1733 = vrot.lane.b32.xlu0 %v175, 103
      %v1734 = vpop.permute.xlu0 %1733
      %1735 = vrot.lane.b32.xlu0 %v178, 103
      %v1736 = vpop.permute.xlu0 %1735
      %v1737 = vrot.slane %v1734, 4
      %v1738 = vrot.slane %v1736, 4
      %v1739 = vsel %vm197, %v510, %v1737
      %v1740 = vsel %vm514, %v504, %v1739
      %v1741 = vsel %vm197, %v512, %v1738
      %v1742 = vsel %vm514, %v508, %v1741
      %1745 = vst [vmem:[#allocation2 + $0x740] sm:$0xff] %v1740
      %1746 = vst [vmem:[#allocation2 + $0x748] sm:$0xff] %v1742
      %1747 = vrot.lane.b32.xlu0 %v175, 102
      %v1748 = vpop.permute.xlu0 %1747
      %1749 = vrot.lane.b32.xlu0 %v178, 102
      %v1750 = vpop.permute.xlu0 %1749
      %v1751 = vrot.slane %v1748, 4
      %v1752 = vrot.slane %v1750, 4
      %v1753 = vsel %vm197, %v531, %v1751
      %v1754 = vsel %vm535, %v525, %v1753
      %v1755 = vsel %vm197, %v533, %v1752
      %v1756 = vsel %vm535, %v529, %v1755
      %1759 = vst [vmem:[#allocation2 + $0x750] sm:$0xff] %v1754
      %1760 = vst [vmem:[#allocation2 + $0x758] sm:$0xff] %v1756
      %1761 = vrot.lane.b32.xlu0 %v175, 101
      %v1762 = vpop.permute.xlu0 %1761
      %1763 = vrot.lane.b32.xlu0 %v178, 101
      %v1764 = vpop.permute.xlu0 %1763
      %v1765 = vrot.slane %v1762, 4
      %v1766 = vrot.slane %v1764, 4
      %v1767 = vsel %vm197, %v552, %v1765
      %v1768 = vsel %vm556, %v546, %v1767
      %v1769 = vsel %vm197, %v554, %v1766
      %v1770 = vsel %vm556, %v550, %v1769
      %1773 = vst [vmem:[#allocation2 + $0x760] sm:$0xff] %v1768
      %1774 = vst [vmem:[#allocation2 + $0x768] sm:$0xff] %v1770
      %1775 = vrot.lane.b32.xlu0 %v175, 100
      %v1776 = vpop.permute.xlu0 %1775
      %1777 = vrot.lane.b32.xlu0 %v178, 100
      %v1778 = vpop.permute.xlu0 %1777
      %v1779 = vrot.slane %v1776, 4
      %v1780 = vrot.slane %v1778, 4
      %v1781 = vsel %vm197, %v573, %v1779
      %v1782 = vsel %vm577, %v567, %v1781
      %v1783 = vsel %vm197, %v575, %v1780
      %v1784 = vsel %vm577, %v571, %v1783
      %1787 = vst [vmem:[#allocation2 + $0x770] sm:$0xff] %v1782
      %1788 = vst [vmem:[#allocation2 + $0x778] sm:$0xff] %v1784
      %1789 = vrot.lane.b32.xlu0 %v175, 96
      %v1790 = vpop.permute.xlu0 %1789
      %1791 = vrot.lane.b32.xlu0 %v178, 96
      %v1792 = vpop.permute.xlu0 %1791
      %v1793 = vrot.slane %v1790, 4
      %v1794 = vrot.slane %v1792, 4
      %v1795 = vsel %vm197, %v594, %v1793
      %v1796 = vsel %vm598, %v588, %v1795
      %v1797 = vsel %vm197, %v596, %v1794
      %v1798 = vsel %vm598, %v592, %v1797
      %1801 = vst [vmem:[#allocation2 + $0x780] sm:$0xff] %v1796
      %1802 = vst [vmem:[#allocation2 + $0x788] sm:$0xff] %v1798
      %1803 = vrot.lane.b32.xlu0 %v175, 95
      %v1804 = vpop.permute.xlu0 %1803
      %1805 = vrot.lane.b32.xlu0 %v178, 95
      %v1806 = vpop.permute.xlu0 %1805
      %v1807 = vrot.slane %v1804, 4
      %v1808 = vrot.slane %v1806, 4
      %v1809 = vsel %vm197, %v615, %v1807
      %v1810 = vsel %vm619, %v609, %v1809
      %v1811 = vsel %vm197, %v617, %v1808
      %v1812 = vsel %vm619, %v613, %v1811
      %1815 = vst [vmem:[#allocation2 + $0x790] sm:$0xff] %v1810
      %1816 = vst [vmem:[#allocation2 + $0x798] sm:$0xff] %v1812
      %1817 = vrot.lane.b32.xlu0 %v175, 94
      %v1818 = vpop.permute.xlu0 %1817
      %1819 = vrot.lane.b32.xlu0 %v178, 94
      %v1820 = vpop.permute.xlu0 %1819
      %v1821 = vrot.slane %v1818, 4
      %v1822 = vrot.slane %v1820, 4
      %v1823 = vsel %vm197, %v636, %v1821
      %v1824 = vsel %vm640, %v630, %v1823
      %v1825 = vsel %vm197, %v638, %v1822
      %v1826 = vsel %vm640, %v634, %v1825
      %1829 = vst [vmem:[#allocation2 + $0x7a0] sm:$0xff] %v1824
      %1830 = vst [vmem:[#allocation2 + $0x7a8] sm:$0xff] %v1826
      %1831 = vrot.lane.b32.xlu0 %v175, 93
      %v1832 = vpop.permute.xlu0 %1831
      %1833 = vrot.lane.b32.xlu0 %v178, 93
      %v1834 = vpop.permute.xlu0 %1833
      %v1835 = vrot.slane %v1832, 4
      %v1836 = vrot.slane %v1834, 4
      %v1837 = vsel %vm197, %v657, %v1835
      %v1838 = vsel %vm661, %v651, %v1837
      %v1839 = vsel %vm197, %v659, %v1836
      %v1840 = vsel %vm661, %v655, %v1839
      %1843 = vst [vmem:[#allocation2 + $0x7b0] sm:$0xff] %v1838
      %1844 = vst [vmem:[#allocation2 + $0x7b8] sm:$0xff] %v1840
      %1845 = vrot.lane.b32.xlu0 %v175, 92
      %v1846 = vpop.permute.xlu0 %1845
      %1847 = vrot.lane.b32.xlu0 %v178, 92
      %v1848 = vpop.permute.xlu0 %1847
      %v1849 = vrot.slane %v1846, 4
      %v1850 = vrot.slane %v1848, 4
      %v1851 = vsel %vm197, %v678, %v1849
      %v1852 = vsel %vm682, %v672, %v1851
      %v1853 = vsel %vm197, %v680, %v1850
      %v1854 = vsel %vm682, %v676, %v1853
      %1857 = vst [vmem:[#allocation2 + $0x7c0] sm:$0xff] %v1852
      %1858 = vst [vmem:[#allocation2 + $0x7c8] sm:$0xff] %v1854
      %1859 = vst [vmem:[#allocation2 + $0x7d0] sm:$0xff] 0
      %1860 = vst [vmem:[#allocation2 + $0x7d8] sm:$0xff] 0
      %1861 = vst [vmem:[#allocation2 + $0x7e0] sm:$0xff] 0
      %1862 = vst [vmem:[#allocation2 + $0x7e8] sm:$0xff] 0
      %1863 = vst [vmem:[#allocation2 + $0x7f0] sm:$0xff] 0
      %1864 = vst [vmem:[#allocation2 + $0x7f8] sm:$0xff] 0
      %v1865 = vld [vmem:[%s1] sm:$0xff]
      %v1866 = vld [vmem:[%s1 + $0x8] sm:$0xff]
      %v1867 = vld [vmem:[%s1 + $0x10] sm:$0xff]
      %v1868 = vld [vmem:[%s1 + $0x18] sm:$0xff]
      %v1869 = vld [vmem:[%s1 + $0x20] sm:$0xff]
      %v1870 = vld [vmem:[%s1 + $0x28] sm:$0xff]
      %v1871 = vld [vmem:[%s1 + $0x30] sm:$0xff]
      %v1872 = vld [vmem:[%s1 + $0x38] sm:$0xff]
      %v1873 = vld [vmem:[#allocation2] sm:$0xff]
      %v1874 = vld [vmem:[#allocation2 + $0x8] sm:$0xff]
      %v1875 = vld [vmem:[#allocation2 + $0x10] sm:$0xff]
      %v1876 = vld [vmem:[#allocation2 + $0x18] sm:$0xff]
      %v1877 = vld [vmem:[#allocation2 + $0x20] sm:$0xff]
      %v1878 = vld [vmem:[#allocation2 + $0x28] sm:$0xff]
      %v1879 = vld [vmem:[#allocation2 + $0x30] sm:$0xff]
      %v1880 = vld [vmem:[#allocation2 + $0x38] sm:$0xff]
      %v1881 = vld [vmem:[#allocation2 + $0x40] sm:$0xff]
      %v1882 = vld [vmem:[#allocation2 + $0x48] sm:$0xff]
      %v1883 = vld [vmem:[#allocation2 + $0x50] sm:$0xff]
      %v1884 = vld [vmem:[#allocation2 + $0x58] sm:$0xff]
      %v1885 = vld [vmem:[#allocation2 + $0x60] sm:$0xff]
      %v1886 = vld [vmem:[#allocation2 + $0x68] sm:$0xff]
      %v1887 = vld [vmem:[#allocation2 + $0x70] sm:$0xff]
      %v1888 = vld [vmem:[#allocation2 + $0x78] sm:$0xff]
      %v1889 = vld [vmem:[#allocation2 + $0x80] sm:$0xff]
      %v1890 = vld [vmem:[#allocation2 + $0x88] sm:$0xff]
      %v1891 = vld [vmem:[#allocation2 + $0x90] sm:$0xff]
      %v1892 = vld [vmem:[#allocation2 + $0x98] sm:$0xff]
      %v1893 = vld [vmem:[#allocation2 + $0xa0] sm:$0xff]
      %v1894 = vld [vmem:[#allocation2 + $0xa8] sm:$0xff]
      %v1895 = vld [vmem:[#allocation2 + $0xb0] sm:$0xff]
      %v1896 = vld [vmem:[#allocation2 + $0xb8] sm:$0xff]
      %v1897 = vld [vmem:[#allocation2 + $0xc0] sm:$0xff]
      %v1898 = vld [vmem:[#allocation2 + $0xc8] sm:$0xff]
      %v1899 = vld [vmem:[#allocation2 + $0xd0] sm:$0xff]
      %v1900 = vld [vmem:[#allocation2 + $0xd8] sm:$0xff]
      %v1901 = vld [vmem:[#allocation2 + $0xe0] sm:$0xff]
      %v1902 = vld [vmem:[#allocation2 + $0xe8] sm:$0xff]
      %v1903 = vld [vmem:[#allocation2 + $0xf0] sm:$0xff]
      %v1904 = vld [vmem:[#allocation2 + $0xf8] sm:$0xff]
      %v1905 = vld [vmem:[#allocation2 + $0x100] sm:$0xff]
      %v1906 = vld [vmem:[#allocation2 + $0x108] sm:$0xff]
      %v1907 = vld [vmem:[#allocation2 + $0x110] sm:$0xff]
      %v1908 = vld [vmem:[#allocation2 + $0x118] sm:$0xff]
      %v1909 = vld [vmem:[#allocation2 + $0x120] sm:$0xff]
      %v1910 = vld [vmem:[#allocation2 + $0x128] sm:$0xff]
      %v1911 = vld [vmem:[#allocation2 + $0x130] sm:$0xff]
      %v1912 = vld [vmem:[#allocation2 + $0x138] sm:$0xff]
      %v1913 = vld [vmem:[#allocation2 + $0x140] sm:$0xff]
      %v1914 = vld [vmem:[#allocation2 + $0x148] sm:$0xff]
      %v1915 = vld [vmem:[#allocation2 + $0x150] sm:$0xff]
      %v1916 = vld [vmem:[#allocation2 + $0x158] sm:$0xff]
      %v1917 = vld [vmem:[#allocation2 + $0x160] sm:$0xff]
      %v1918 = vld [vmem:[#allocation2 + $0x168] sm:$0xff]
      %v1919 = vld [vmem:[#allocation2 + $0x170] sm:$0xff]
      %v1920 = vld [vmem:[#allocation2 + $0x178] sm:$0xff]
      %v1921 = vld [vmem:[#allocation2 + $0x180] sm:$0xff]
      %v1922 = vld [vmem:[#allocation2 + $0x188] sm:$0xff]
      %v1923 = vld [vmem:[#allocation2 + $0x190] sm:$0xff]
      %v1924 = vld [vmem:[#allocation2 + $0x198] sm:$0xff]
      %v1925 = vld [vmem:[#allocation2 + $0x1a0] sm:$0xff]
      %v1926 = vld [vmem:[#allocation2 + $0x1a8] sm:$0xff]
      %v1927 = vld [vmem:[#allocation2 + $0x1b0] sm:$0xff]
      %v1928 = vld [vmem:[#allocation2 + $0x1b8] sm:$0xff]
      %v1929 = vld [vmem:[#allocation2 + $0x1c0] sm:$0xff]
      %v1930 = vld [vmem:[#allocation2 + $0x1c8] sm:$0xff]
      %v1931 = vld [vmem:[#allocation2 + $0x1d0] sm:$0xff]
      %v1932 = vld [vmem:[#allocation2 + $0x1d8] sm:$0xff]
      %v1933 = vld [vmem:[#allocation2 + $0x1e0] sm:$0xff]
      %v1934 = vld [vmem:[#allocation2 + $0x1e8] sm:$0xff]
      %v1935 = vld [vmem:[#allocation2 + $0x1f0] sm:$0xff]
      %v1936 = vld [vmem:[#allocation2 + $0x1f8] sm:$0xff]
      %v1937 = vld [vmem:[#allocation2 + $0x200] sm:$0xff]
      %v1938 = vld [vmem:[#allocation2 + $0x208] sm:$0xff]
      %v1939 = vld [vmem:[#allocation2 + $0x210] sm:$0xff]
      %v1940 = vld [vmem:[#allocation2 + $0x218] sm:$0xff]
      %v1941 = vld [vmem:[#allocation2 + $0x220] sm:$0xff]
      %v1942 = vld [vmem:[#allocation2 + $0x228] sm:$0xff]
      %v1943 = vld [vmem:[#allocation2 + $0x230] sm:$0xff]
      %v1944 = vld [vmem:[#allocation2 + $0x238] sm:$0xff]
      %v1945 = vld [vmem:[#allocation2 + $0x240] sm:$0xff]
      %v1946 = vld [vmem:[#allocation2 + $0x248] sm:$0xff]
      %v1947 = vld [vmem:[#allocation2 + $0x250] sm:$0xff]
      %v1948 = vld [vmem:[#allocation2 + $0x258] sm:$0xff]
      %v1949 = vld [vmem:[#allocation2 + $0x260] sm:$0xff]
      %v1950 = vld [vmem:[#allocation2 + $0x268] sm:$0xff]
      %v1951 = vld [vmem:[#allocation2 + $0x270] sm:$0xff]
      %v1952 = vld [vmem:[#allocation2 + $0x278] sm:$0xff]
      %v1953 = vld [vmem:[#allocation2 + $0x280] sm:$0xff]
      %v1954 = vld [vmem:[#allocation2 + $0x288] sm:$0xff]
      %v1955 = vld [vmem:[#allocation2 + $0x290] sm:$0xff]
      %v1956 = vld [vmem:[#allocation2 + $0x298] sm:$0xff]
      %v1957 = vld [vmem:[#allocation2 + $0x2a0] sm:$0xff]
      %v1958 = vld [vmem:[#allocation2 + $0x2a8] sm:$0xff]
      %v1959 = vld [vmem:[#allocation2 + $0x2b0] sm:$0xff]
      %v1960 = vld [vmem:[#allocation2 + $0x2b8] sm:$0xff]
      %v1961 = vld [vmem:[#allocation2 + $0x2c0] sm:$0xff]
      %v1962 = vld [vmem:[#allocation2 + $0x2c8] sm:$0xff]
      %v1963 = vld [vmem:[#allocation2 + $0x2d0] sm:$0xff]
      %v1964 = vld [vmem:[#allocation2 + $0x2d8] sm:$0xff]
      %v1965 = vld [vmem:[#allocation2 + $0x2e0] sm:$0xff]
      %v1966 = vld [vmem:[#allocation2 + $0x2e8] sm:$0xff]
      %v1967 = vld [vmem:[#allocation2 + $0x2f0] sm:$0xff]
      %v1968 = vld [vmem:[#allocation2 + $0x2f8] sm:$0xff]
      %v1969 = vld [vmem:[#allocation2 + $0x300] sm:$0xff]
      %v1970 = vld [vmem:[#allocation2 + $0x308] sm:$0xff]
      %v1971 = vld [vmem:[#allocation2 + $0x310] sm:$0xff]
      %v1972 = vld [vmem:[#allocation2 + $0x318] sm:$0xff]
      %v1973 = vld [vmem:[#allocation2 + $0x320] sm:$0xff]
      %v1974 = vld [vmem:[#allocation2 + $0x328] sm:$0xff]
      %v1975 = vld [vmem:[#allocation2 + $0x330] sm:$0xff]
      %v1976 = vld [vmem:[#allocation2 + $0x338] sm:$0xff]
      %v1977 = vld [vmem:[#allocation2 + $0x340] sm:$0xff]
      %v1978 = vld [vmem:[#allocation2 + $0x348] sm:$0xff]
      %v1979 = vld [vmem:[#allocation2 + $0x350] sm:$0xff]
      %v1980 = vld [vmem:[#allocation2 + $0x358] sm:$0xff]
      %v1981 = vld [vmem:[#allocation2 + $0x360] sm:$0xff]
      %v1982 = vld [vmem:[#allocation2 + $0x368] sm:$0xff]
      %v1983 = vld [vmem:[#allocation2 + $0x370] sm:$0xff]
      %v1984 = vld [vmem:[#allocation2 + $0x378] sm:$0xff]
      %v1985 = vld [vmem:[#allocation2 + $0x380] sm:$0xff]
      %v1986 = vld [vmem:[#allocation2 + $0x388] sm:$0xff]
      %v1987 = vld [vmem:[#allocation2 + $0x390] sm:$0xff]
      %v1988 = vld [vmem:[#allocation2 + $0x398] sm:$0xff]
      %v1989 = vld [vmem:[#allocation2 + $0x3a0] sm:$0xff]
      %v1990 = vld [vmem:[#allocation2 + $0x3a8] sm:$0xff]
      %v1991 = vld [vmem:[#allocation2 + $0x3b0] sm:$0xff]
      %v1992 = vld [vmem:[#allocation2 + $0x3b8] sm:$0xff]
      %v1993 = vld [vmem:[#allocation2 + $0x3c0] sm:$0xff]
      %v1994 = vld [vmem:[#allocation2 + $0x3c8] sm:$0xff]
      %v1995 = vld [vmem:[#allocation2 + $0x3d0] sm:$0xff]
      %v1996 = vld [vmem:[#allocation2 + $0x3d8] sm:$0xff]
      %v1997 = vld [vmem:[#allocation2 + $0x3e0] sm:$0xff]
      %v1998 = vld [vmem:[#allocation2 + $0x3e8] sm:$0xff]
      %v1999 = vld [vmem:[#allocation2 + $0x3f0] sm:$0xff]
      %v2000 = vld [vmem:[#allocation2 + $0x3f8] sm:$0xff]
      %v2001 = vld [vmem:[#allocation2 + $0x400] sm:$0xff]
      %v2002 = vld [vmem:[#allocation2 + $0x408] sm:$0xff]
      %v2003 = vld [vmem:[#allocation2 + $0x410] sm:$0xff]
      %v2004 = vld [vmem:[#allocation2 + $0x418] sm:$0xff]
      %v2005 = vld [vmem:[#allocation2 + $0x420] sm:$0xff]
      %v2006 = vld [vmem:[#allocation2 + $0x428] sm:$0xff]
      %v2007 = vld [vmem:[#allocation2 + $0x430] sm:$0xff]
      %v2008 = vld [vmem:[#allocation2 + $0x438] sm:$0xff]
      %v2009 = vld [vmem:[#allocation2 + $0x440] sm:$0xff]
      %v2010 = vld [vmem:[#allocation2 + $0x448] sm:$0xff]
      %v2011 = vld [vmem:[#allocation2 + $0x450] sm:$0xff]
      %v2012 = vld [vmem:[#allocation2 + $0x458] sm:$0xff]
      %v2013 = vld [vmem:[#allocation2 + $0x460] sm:$0xff]
      %v2014 = vld [vmem:[#allocation2 + $0x468] sm:$0xff]
      %v2015 = vld [vmem:[#allocation2 + $0x470] sm:$0xff]
      %v2016 = vld [vmem:[#allocation2 + $0x478] sm:$0xff]
      %v2017 = vld [vmem:[#allocation2 + $0x480] sm:$0xff]
      %v2018 = vld [vmem:[#allocation2 + $0x488] sm:$0xff]
      %v2019 = vld [vmem:[#allocation2 + $0x490] sm:$0xff]
      %v2020 = vld [vmem:[#allocation2 + $0x498] sm:$0xff]
      %v2021 = vld [vmem:[#allocation2 + $0x4a0] sm:$0xff]
      %v2022 = vld [vmem:[#allocation2 + $0x4a8] sm:$0xff]
      %v2023 = vld [vmem:[#allocation2 + $0x4b0] sm:$0xff]
      %v2024 = vld [vmem:[#allocation2 + $0x4b8] sm:$0xff]
      %v2025 = vld [vmem:[#allocation2 + $0x4c0] sm:$0xff]
      %v2026 = vld [vmem:[#allocation2 + $0x4c8] sm:$0xff]
      %v2027 = vld [vmem:[#allocation2 + $0x4d0] sm:$0xff]
      %v2028 = vld [vmem:[#allocation2 + $0x4d8] sm:$0xff]
      %v2029 = vld [vmem:[#allocation2 + $0x4e0] sm:$0xff]
      %v2030 = vld [vmem:[#allocation2 + $0x4e8] sm:$0xff]
      %v2031 = vld [vmem:[#allocation2 + $0x4f0] sm:$0xff]
      %v2032 = vld [vmem:[#allocation2 + $0x4f8] sm:$0xff]
      %v2033 = vld [vmem:[#allocation2 + $0x500] sm:$0xff]
      %v2034 = vld [vmem:[#allocation2 + $0x508] sm:$0xff]
      %v2035 = vld [vmem:[#allocation2 + $0x510] sm:$0xff]
      %v2036 = vld [vmem:[#allocation2 + $0x518] sm:$0xff]
      %v2037 = vld [vmem:[#allocation2 + $0x520] sm:$0xff]
      %v2038 = vld [vmem:[#allocation2 + $0x528] sm:$0xff]
      %v2039 = vld [vmem:[#allocation2 + $0x530] sm:$0xff]
      %v2040 = vld [vmem:[#allocation2 + $0x538] sm:$0xff]
      %v2041 = vld [vmem:[#allocation2 + $0x540] sm:$0xff]
      %v2042 = vld [vmem:[#allocation2 + $0x548] sm:$0xff]
      %v2043 = vld [vmem:[#allocation2 + $0x550] sm:$0xff]
      %v2044 = vld [vmem:[#allocation2 + $0x558] sm:$0xff]
      %v2045 = vld [vmem:[#allocation2 + $0x560] sm:$0xff]
      %v2046 = vld [vmem:[#allocation2 + $0x568] sm:$0xff]
      %v2047 = vld [vmem:[#allocation2 + $0x570] sm:$0xff]
      %v2048 = vld [vmem:[#allocation2 + $0x578] sm:$0xff]
      %v2049 = vld [vmem:[#allocation2 + $0x580] sm:$0xff]
      %v2050 = vld [vmem:[#allocation2 + $0x588] sm:$0xff]
      %v2051 = vld [vmem:[#allocation2 + $0x590] sm:$0xff]
      %v2052 = vld [vmem:[#allocation2 + $0x598] sm:$0xff]
      %v2053 = vld [vmem:[#allocation2 + $0x5a0] sm:$0xff]
      %v2054 = vld [vmem:[#allocation2 + $0x5a8] sm:$0xff]
      %v2055 = vld [vmem:[#allocation2 + $0x5b0] sm:$0xff]
      %v2056 = vld [vmem:[#allocation2 + $0x5b8] sm:$0xff]
      %v2057 = vld [vmem:[#allocation2 + $0x5c0] sm:$0xff]
      %v2058 = vld [vmem:[#allocation2 + $0x5c8] sm:$0xff]
      %v2059 = vld [vmem:[#allocation2 + $0x5d0] sm:$0xff]
      %v2060 = vld [vmem:[#allocation2 + $0x5d8] sm:$0xff]
      %v2061 = vld [vmem:[#allocation2 + $0x5e0] sm:$0xff]
      %v2062 = vld [vmem:[#allocation2 + $0x5e8] sm:$0xff]
      %v2063 = vld [vmem:[#allocation2 + $0x5f0] sm:$0xff]
      %v2064 = vld [vmem:[#allocation2 + $0x5f8] sm:$0xff]
      %v2065 = vld [vmem:[#allocation2 + $0x600] sm:$0xff]
      %v2066 = vld [vmem:[#allocation2 + $0x608] sm:$0xff]
      %v2067 = vld [vmem:[#allocation2 + $0x610] sm:$0xff]
      %v2068 = vld [vmem:[#allocation2 + $0x618] sm:$0xff]
      %v2069 = vld [vmem:[#allocation2 + $0x620] sm:$0xff]
      %v2070 = vld [vmem:[#allocation2 + $0x628] sm:$0xff]
      %v2071 = vld [vmem:[#allocation2 + $0x630] sm:$0xff]
      %v2072 = vld [vmem:[#allocation2 + $0x638] sm:$0xff]
      %v2073 = vld [vmem:[#allocation2 + $0x640] sm:$0xff]
      %v2074 = vld [vmem:[#allocation2 + $0x648] sm:$0xff]
      %v2075 = vld [vmem:[#allocation2 + $0x650] sm:$0xff]
      %v2076 = vld [vmem:[#allocation2 + $0x658] sm:$0xff]
      %v2077 = vld [vmem:[#allocation2 + $0x660] sm:$0xff]
      %v2078 = vld [vmem:[#allocation2 + $0x668] sm:$0xff]
      %v2079 = vld [vmem:[#allocation2 + $0x670] sm:$0xff]
      %v2080 = vld [vmem:[#allocation2 + $0x678] sm:$0xff]
      %v2081 = vld [vmem:[#allocation2 + $0x680] sm:$0xff]
      %v2082 = vld [vmem:[#allocation2 + $0x688] sm:$0xff]
      %v2083 = vld [vmem:[#allocation2 + $0x690] sm:$0xff]
      %v2084 = vld [vmem:[#allocation2 + $0x698] sm:$0xff]
      %v2085 = vld [vmem:[#allocation2 + $0x6a0] sm:$0xff]
      %v2086 = vld [vmem:[#allocation2 + $0x6a8] sm:$0xff]
      %v2087 = vld [vmem:[#allocation2 + $0x6b0] sm:$0xff]
      %v2088 = vld [vmem:[#allocation2 + $0x6b8] sm:$0xff]
      %v2089 = vld [vmem:[#allocation2 + $0x6c0] sm:$0xff]
      %v2090 = vld [vmem:[#allocation2 + $0x6c8] sm:$0xff]
      %v2091 = vld [vmem:[#allocation2 + $0x6d0] sm:$0xff]
      %v2092 = vld [vmem:[#allocation2 + $0x6d8] sm:$0xff]
      %v2093 = vld [vmem:[#allocation2 + $0x6e0] sm:$0xff]
      %v2094 = vld [vmem:[#allocation2 + $0x6e8] sm:$0xff]
      %v2095 = vld [vmem:[#allocation2 + $0x6f0] sm:$0xff]
      %v2096 = vld [vmem:[#allocation2 + $0x6f8] sm:$0xff]
      %v2097 = vld [vmem:[#allocation2 + $0x700] sm:$0xff]
      %v2098 = vld [vmem:[#allocation2 + $0x708] sm:$0xff]
      %v2099 = vld [vmem:[#allocation2 + $0x710] sm:$0xff]
      %v2100 = vld [vmem:[#allocation2 + $0x718] sm:$0xff]
      %v2101 = vld [vmem:[#allocation2 + $0x720] sm:$0xff]
      %v2102 = vld [vmem:[#allocation2 + $0x728] sm:$0xff]
      %v2103 = vld [vmem:[#allocation2 + $0x730] sm:$0xff]
      %v2104 = vld [vmem:[#allocation2 + $0x738] sm:$0xff]
      %v2105 = vld [vmem:[#allocation2 + $0x740] sm:$0xff]
      %v2106 = vld [vmem:[#allocation2 + $0x748] sm:$0xff]
      %v2107 = vld [vmem:[#allocation2 + $0x750] sm:$0xff]
      %v2108 = vld [vmem:[#allocation2 + $0x758] sm:$0xff]
      %v2109 = vld [vmem:[#allocation2 + $0x760] sm:$0xff]
      %v2110 = vld [vmem:[#allocation2 + $0x768] sm:$0xff]
      %v2111 = vld [vmem:[#allocation2 + $0x770] sm:$0xff]
      %v2112 = vld [vmem:[#allocation2 + $0x778] sm:$0xff]
      %v2113 = vld [vmem:[#allocation2 + $0x780] sm:$0xff]
      %v2114 = vld [vmem:[#allocation2 + $0x788] sm:$0xff]
      %v2115 = vld [vmem:[#allocation2 + $0x790] sm:$0xff]
      %v2116 = vld [vmem:[#allocation2 + $0x798] sm:$0xff]
      %v2117 = vld [vmem:[#allocation2 + $0x7a0] sm:$0xff]
      %v2118 = vld [vmem:[#allocation2 + $0x7a8] sm:$0xff]
      %v2119 = vld [vmem:[#allocation2 + $0x7b0] sm:$0xff]
      %v2120 = vld [vmem:[#allocation2 + $0x7b8] sm:$0xff]
      %v2121 = vld [vmem:[#allocation2 + $0x7c0] sm:$0xff]
      %v2122 = vld [vmem:[#allocation2 + $0x7c8] sm:$0xff]
      %v2123 = vld [vmem:[#allocation2 + $0x7d0] sm:$0xff]
      %v2124 = vld [vmem:[#allocation2 + $0x7d8] sm:$0xff]
      %v2125 = vld [vmem:[#allocation2 + $0x7e0] sm:$0xff]
      %v2126 = vld [vmem:[#allocation2 + $0x7e8] sm:$0xff]
      %v2127 = vld [vmem:[#allocation2 + $0x7f0] sm:$0xff]
      %v2128 = vld [vmem:[#allocation2 + $0x7f8] sm:$0xff]
      %v2137 = vunpack.c.l.b16 %v1865
      %v2138 = vunpack.c.h.b16 %v1865
      %v2139 = vunpack.c.l.b16 %v1866
      %v2140 = vunpack.c.h.b16 %v1866
      %v2141 = vunpack.c.l.b16 %v1867
      %v2142 = vunpack.c.h.b16 %v1867
      %v2143 = vunpack.c.l.b16 %v1868
      %v2144 = vunpack.c.h.b16 %v1868
      %v2145 = vunpack.c.l.b16 %v1869
      %v2146 = vunpack.c.h.b16 %v1869
      %v2147 = vunpack.c.l.b16 %v1870
      %v2148 = vunpack.c.h.b16 %v1870
      %v2149 = vunpack.c.l.b16 %v1871
      %v2150 = vunpack.c.h.b16 %v1871
      %v2151 = vunpack.c.l.b16 %v1872
      %v2152 = vunpack.c.h.b16 %v1872
      %v2153 = vpack.c.b16 %v2137, %v2137
      %v2154 = vpack.c.b16 %v2138, %v2138
      %v2155 = vpack.c.b16 %v2139, %v2139
      %v2156 = vpack.c.b16 %v2140, %v2140
      %v2157 = vpack.c.b16 %v2141, %v2141
      %v2158 = vpack.c.b16 %v2142, %v2142
      %v2159 = vpack.c.b16 %v2143, %v2143
      %v2160 = vpack.c.b16 %v2144, %v2144
      %v2161 = vpack.c.b16 %v2145, %v2145
      %v2162 = vpack.c.b16 %v2146, %v2146
      %v2163 = vpack.c.b16 %v2147, %v2147
      %v2164 = vpack.c.b16 %v2148, %v2148
      %v2165 = vpack.c.b16 %v2149, %v2149
      %v2166 = vpack.c.b16 %v2150, %v2150
      %v2167 = vpack.c.b16 %v2151, %v2151
      %v2168 = vpack.c.b16 %v2152, %v2152
      %v2441 = vunpack.c.l.b16 %v1873
      %v2442 = vunpack.c.h.b16 %v1873
      %v2443 = vunpack.c.l.b16 %v1874
      %v2444 = vunpack.c.h.b16 %v1874
      %v2445 = vunpack.c.l.b16 %v1875
      %v2446 = vunpack.c.h.b16 %v1875
      %v2447 = vunpack.c.l.b16 %v1876
      %v2448 = vunpack.c.h.b16 %v1876
      %v2449 = vunpack.c.l.b16 %v1877
      %v2450 = vunpack.c.h.b16 %v1877
      %v2451 = vunpack.c.l.b16 %v1878
      %v2452 = vunpack.c.h.b16 %v1878
      %v2453 = vunpack.c.l.b16 %v1879
      %v2454 = vunpack.c.h.b16 %v1879
      %v2455 = vunpack.c.l.b16 %v1880
      %v2456 = vunpack.c.h.b16 %v1880
      %v2457 = vunpack.c.l.b16 %v1881
      %v2458 = vunpack.c.h.b16 %v1881
      %v2459 = vunpack.c.l.b16 %v1882
      %v2460 = vunpack.c.h.b16 %v1882
      %v2461 = vunpack.c.l.b16 %v1883
      %v2462 = vunpack.c.h.b16 %v1883
      %v2463 = vunpack.c.l.b16 %v1884
      %v2464 = vunpack.c.h.b16 %v1884
      %v2465 = vunpack.c.l.b16 %v1885
      %v2466 = vunpack.c.h.b16 %v1885
      %v2467 = vunpack.c.l.b16 %v1886
      %v2468 = vunpack.c.h.b16 %v1886
      %v2469 = vunpack.c.l.b16 %v1887
      %v2470 = vunpack.c.h.b16 %v1887
      %v2471 = vunpack.c.l.b16 %v1888
      %v2472 = vunpack.c.h.b16 %v1888
      %v2473 = vunpack.c.l.b16 %v1889
      %v2474 = vunpack.c.h.b16 %v1889
      %v2475 = vunpack.c.l.b16 %v1890
      %v2476 = vunpack.c.h.b16 %v1890
      %v2477 = vunpack.c.l.b16 %v1891
      %v2478 = vunpack.c.h.b16 %v1891
      %v2479 = vunpack.c.l.b16 %v1892
      %v2480 = vunpack.c.h.b16 %v1892
      %v2481 = vunpack.c.l.b16 %v1893
      %v2482 = vunpack.c.h.b16 %v1893
      %v2483 = vunpack.c.l.b16 %v1894
      %v2484 = vunpack.c.h.b16 %v1894
      %v2485 = vunpack.c.l.b16 %v1895
      %v2486 = vunpack.c.h.b16 %v1895
      %v2487 = vunpack.c.l.b16 %v1896
      %v2488 = vunpack.c.h.b16 %v1896
      %v2489 = vunpack.c.l.b16 %v1897
      %v2490 = vunpack.c.h.b16 %v1897
      %v2491 = vunpack.c.l.b16 %v1898
      %v2492 = vunpack.c.h.b16 %v1898
      %v2493 = vunpack.c.l.b16 %v1899
      %v2494 = vunpack.c.h.b16 %v1899
      %v2495 = vunpack.c.l.b16 %v1900
      %v2496 = vunpack.c.h.b16 %v1900
      %v2497 = vunpack.c.l.b16 %v1901
      %v2498 = vunpack.c.h.b16 %v1901
      %v2499 = vunpack.c.l.b16 %v1902
      %v2500 = vunpack.c.h.b16 %v1902
      %v2501 = vunpack.c.l.b16 %v1903
      %v2502 = vunpack.c.h.b16 %v1903
      %v2503 = vunpack.c.l.b16 %v1904
      %v2504 = vunpack.c.h.b16 %v1904
      %v2505 = vunpack.c.l.b16 %v1905
      %v2506 = vunpack.c.h.b16 %v1905
      %v2507 = vunpack.c.l.b16 %v1906
      %v2508 = vunpack.c.h.b16 %v1906
      %v2509 = vunpack.c.l.b16 %v1907
      %v2510 = vunpack.c.h.b16 %v1907
      %v2511 = vunpack.c.l.b16 %v1908
      %v2512 = vunpack.c.h.b16 %v1908
      %v2513 = vunpack.c.l.b16 %v1909
      %v2514 = vunpack.c.h.b16 %v1909
      %v2515 = vunpack.c.l.b16 %v1910
      %v2516 = vunpack.c.h.b16 %v1910
      %v2517 = vunpack.c.l.b16 %v1911
      %v2518 = vunpack.c.h.b16 %v1911
      %v2519 = vunpack.c.l.b16 %v1912
      %v2520 = vunpack.c.h.b16 %v1912
      %v2521 = vunpack.c.l.b16 %v1913
      %v2522 = vunpack.c.h.b16 %v1913
      %v2523 = vunpack.c.l.b16 %v1914
      %v2524 = vunpack.c.h.b16 %v1914
      %v2525 = vunpack.c.l.b16 %v1915
      %v2526 = vunpack.c.h.b16 %v1915
      %v2527 = vunpack.c.l.b16 %v1916
      %v2528 = vunpack.c.h.b16 %v1916
      %v2529 = vunpack.c.l.b16 %v1917
      %v2530 = vunpack.c.h.b16 %v1917
      %v2531 = vunpack.c.l.b16 %v1918
      %v2532 = vunpack.c.h.b16 %v1918
      %v2533 = vunpack.c.l.b16 %v1919
      %v2534 = vunpack.c.h.b16 %v1919
      %v2535 = vunpack.c.l.b16 %v1920
      %v2536 = vunpack.c.h.b16 %v1920
      %v2537 = vunpack.c.l.b16 %v1921
      %v2538 = vunpack.c.h.b16 %v1921
      %v2539 = vunpack.c.l.b16 %v1922
      %v2540 = vunpack.c.h.b16 %v1922
      %v2541 = vunpack.c.l.b16 %v1923
      %v2542 = vunpack.c.h.b16 %v1923
      %v2543 = vunpack.c.l.b16 %v1924
      %v2544 = vunpack.c.h.b16 %v1924
      %v2545 = vunpack.c.l.b16 %v1925
      %v2546 = vunpack.c.h.b16 %v1925
      %v2547 = vunpack.c.l.b16 %v1926
      %v2548 = vunpack.c.h.b16 %v1926
      %v2549 = vunpack.c.l.b16 %v1927
      %v2550 = vunpack.c.h.b16 %v1927
      %v2551 = vunpack.c.l.b16 %v1928
      %v2552 = vunpack.c.h.b16 %v1928
      %v2553 = vunpack.c.l.b16 %v1929
      %v2554 = vunpack.c.h.b16 %v1929
      %v2555 = vunpack.c.l.b16 %v1930
      %v2556 = vunpack.c.h.b16 %v1930
      %v2557 = vunpack.c.l.b16 %v1931
      %v2558 = vunpack.c.h.b16 %v1931
      %v2559 = vunpack.c.l.b16 %v1932
      %v2560 = vunpack.c.h.b16 %v1932
      %v2561 = vunpack.c.l.b16 %v1933
      %v2562 = vunpack.c.h.b16 %v1933
      %v2563 = vunpack.c.l.b16 %v1934
      %v2564 = vunpack.c.h.b16 %v1934
      %v2565 = vunpack.c.l.b16 %v1935
      %v2566 = vunpack.c.h.b16 %v1935
      %v2567 = vunpack.c.l.b16 %v1936
      %v2568 = vunpack.c.h.b16 %v1936
      %v2569 = vunpack.c.l.b16 %v1937
      %v2570 = vunpack.c.h.b16 %v1937
      %v2571 = vunpack.c.l.b16 %v1938
      %v2572 = vunpack.c.h.b16 %v1938
      %v2573 = vunpack.c.l.b16 %v1939
      %v2574 = vunpack.c.h.b16 %v1939
      %v2575 = vunpack.c.l.b16 %v1940
      %v2576 = vunpack.c.h.b16 %v1940
      %v2577 = vunpack.c.l.b16 %v1941
      %v2578 = vunpack.c.h.b16 %v1941
      %v2579 = vunpack.c.l.b16 %v1942
      %v2580 = vunpack.c.h.b16 %v1942
      %v2581 = vunpack.c.l.b16 %v1943
      %v2582 = vunpack.c.h.b16 %v1943
      %v2583 = vunpack.c.l.b16 %v1944
      %v2584 = vunpack.c.h.b16 %v1944
      %v2585 = vunpack.c.l.b16 %v1945
      %v2586 = vunpack.c.h.b16 %v1945
      %v2587 = vunpack.c.l.b16 %v1946
      %v2588 = vunpack.c.h.b16 %v1946
      %v2589 = vunpack.c.l.b16 %v1947
      %v2590 = vunpack.c.h.b16 %v1947
      %v2591 = vunpack.c.l.b16 %v1948
      %v2592 = vunpack.c.h.b16 %v1948
      %v2593 = vunpack.c.l.b16 %v1949
      %v2594 = vunpack.c.h.b16 %v1949
      %v2595 = vunpack.c.l.b16 %v1950
      %v2596 = vunpack.c.h.b16 %v1950
      %v2597 = vunpack.c.l.b16 %v1951
      %v2598 = vunpack.c.h.b16 %v1951
      %v2599 = vunpack.c.l.b16 %v1952
      %v2600 = vunpack.c.h.b16 %v1952
      %v2601 = vunpack.c.l.b16 %v1953
      %v2602 = vunpack.c.h.b16 %v1953
      %v2603 = vunpack.c.l.b16 %v1954
      %v2604 = vunpack.c.h.b16 %v1954
      %v2605 = vunpack.c.l.b16 %v1955
      %v2606 = vunpack.c.h.b16 %v1955
      %v2607 = vunpack.c.l.b16 %v1956
      %v2608 = vunpack.c.h.b16 %v1956
      %v2609 = vunpack.c.l.b16 %v1957
      %v2610 = vunpack.c.h.b16 %v1957
      %v2611 = vunpack.c.l.b16 %v1958
      %v2612 = vunpack.c.h.b16 %v1958
      %v2613 = vunpack.c.l.b16 %v1959
      %v2614 = vunpack.c.h.b16 %v1959
      %v2615 = vunpack.c.l.b16 %v1960
      %v2616 = vunpack.c.h.b16 %v1960
      %v2617 = vunpack.c.l.b16 %v1961
      %v2618 = vunpack.c.h.b16 %v1961
      %v2619 = vunpack.c.l.b16 %v1962
      %v2620 = vunpack.c.h.b16 %v1962
      %v2621 = vunpack.c.l.b16 %v1963
      %v2622 = vunpack.c.h.b16 %v1963
      %v2623 = vunpack.c.l.b16 %v1964
      %v2624 = vunpack.c.h.b16 %v1964
      %v2625 = vunpack.c.l.b16 %v1965
      %v2626 = vunpack.c.h.b16 %v1965
      %v2627 = vunpack.c.l.b16 %v1966
      %v2628 = vunpack.c.h.b16 %v1966
      %v2629 = vunpack.c.l.b16 %v1967
      %v2630 = vunpack.c.h.b16 %v1967
      %v2631 = vunpack.c.l.b16 %v1968
      %v2632 = vunpack.c.h.b16 %v1968
      %v2633 = vunpack.c.l.b16 %v1969
      %v2634 = vunpack.c.h.b16 %v1969
      %v2635 = vunpack.c.l.b16 %v1970
      %v2636 = vunpack.c.h.b16 %v1970
      %v2637 = vunpack.c.l.b16 %v1971
      %v2638 = vunpack.c.h.b16 %v1971
      %v2639 = vunpack.c.l.b16 %v1972
      %v2640 = vunpack.c.h.b16 %v1972
      %v2641 = vunpack.c.l.b16 %v1973
      %v2642 = vunpack.c.h.b16 %v1973
      %v2643 = vunpack.c.l.b16 %v1974
      %v2644 = vunpack.c.h.b16 %v1974
      %v2645 = vunpack.c.l.b16 %v1975
      %v2646 = vunpack.c.h.b16 %v1975
      %v2647 = vunpack.c.l.b16 %v1976
      %v2648 = vunpack.c.h.b16 %v1976
      %v2649 = vunpack.c.l.b16 %v1977
      %v2650 = vunpack.c.h.b16 %v1977
      %v2651 = vunpack.c.l.b16 %v1978
      %v2652 = vunpack.c.h.b16 %v1978
      %v2653 = vunpack.c.l.b16 %v1979
      %v2654 = vunpack.c.h.b16 %v1979
      %v2655 = vunpack.c.l.b16 %v1980
      %v2656 = vunpack.c.h.b16 %v1980
      %v2657 = vunpack.c.l.b16 %v1981
      %v2658 = vunpack.c.h.b16 %v1981
      %v2659 = vunpack.c.l.b16 %v1982
      %v2660 = vunpack.c.h.b16 %v1982
      %v2661 = vunpack.c.l.b16 %v1983
      %v2662 = vunpack.c.h.b16 %v1983
      %v2663 = vunpack.c.l.b16 %v1984
      %v2664 = vunpack.c.h.b16 %v1984
      %v2665 = vunpack.c.l.b16 %v1985
      %v2666 = vunpack.c.h.b16 %v1985
      %v2667 = vunpack.c.l.b16 %v1986
      %v2668 = vunpack.c.h.b16 %v1986
      %v2669 = vunpack.c.l.b16 %v1987
      %v2670 = vunpack.c.h.b16 %v1987
      %v2671 = vunpack.c.l.b16 %v1988
      %v2672 = vunpack.c.h.b16 %v1988
      %v2673 = vunpack.c.l.b16 %v1989
      %v2674 = vunpack.c.h.b16 %v1989
      %v2675 = vunpack.c.l.b16 %v1990
      %v2676 = vunpack.c.h.b16 %v1990
      %v2677 = vunpack.c.l.b16 %v1991
      %v2678 = vunpack.c.h.b16 %v1991
      %v2679 = vunpack.c.l.b16 %v1992
      %v2680 = vunpack.c.h.b16 %v1992
      %v2681 = vunpack.c.l.b16 %v1993
      %v2682 = vunpack.c.h.b16 %v1993
      %v2683 = vunpack.c.l.b16 %v1994
      %v2684 = vunpack.c.h.b16 %v1994
      %v2685 = vunpack.c.l.b16 %v1995
      %v2686 = vunpack.c.h.b16 %v1995
      %v2687 = vunpack.c.l.b16 %v1996
      %v2688 = vunpack.c.h.b16 %v1996
      %v2689 = vunpack.c.l.b16 %v1997
      %v2690 = vunpack.c.h.b16 %v1997
      %v2691 = vunpack.c.l.b16 %v1998
      %v2692 = vunpack.c.h.b16 %v1998
      %v2693 = vunpack.c.l.b16 %v1999
      %v2694 = vunpack.c.h.b16 %v1999
      %v2695 = vunpack.c.l.b16 %v2000
      %v2696 = vunpack.c.h.b16 %v2000
      %v2697 = vunpack.c.l.b16 %v2001
      %v2698 = vunpack.c.h.b16 %v2001
      %v2699 = vunpack.c.l.b16 %v2002
      %v2700 = vunpack.c.h.b16 %v2002
      %v2701 = vunpack.c.l.b16 %v2003
      %v2702 = vunpack.c.h.b16 %v2003
      %v2703 = vunpack.c.l.b16 %v2004
      %v2704 = vunpack.c.h.b16 %v2004
      %v2705 = vunpack.c.l.b16 %v2005
      %v2706 = vunpack.c.h.b16 %v2005
      %v2707 = vunpack.c.l.b16 %v2006
      %v2708 = vunpack.c.h.b16 %v2006
      %v2709 = vunpack.c.l.b16 %v2007
      %v2710 = vunpack.c.h.b16 %v2007
      %v2711 = vunpack.c.l.b16 %v2008
      %v2712 = vunpack.c.h.b16 %v2008
      %v2713 = vunpack.c.l.b16 %v2009
      %v2714 = vunpack.c.h.b16 %v2009
      %v2715 = vunpack.c.l.b16 %v2010
      %v2716 = vunpack.c.h.b16 %v2010
      %v2717 = vunpack.c.l.b16 %v2011
      %v2718 = vunpack.c.h.b16 %v2011
      %v2719 = vunpack.c.l.b16 %v2012
      %v2720 = vunpack.c.h.b16 %v2012
      %v2721 = vunpack.c.l.b16 %v2013
      %v2722 = vunpack.c.h.b16 %v2013
      %v2723 = vunpack.c.l.b16 %v2014
      %v2724 = vunpack.c.h.b16 %v2014
      %v2725 = vunpack.c.l.b16 %v2015
      %v2726 = vunpack.c.h.b16 %v2015
      %v2727 = vunpack.c.l.b16 %v2016
      %v2728 = vunpack.c.h.b16 %v2016
      %v2729 = vunpack.c.l.b16 %v2017
      %v2730 = vunpack.c.h.b16 %v2017
      %v2731 = vunpack.c.l.b16 %v2018
      %v2732 = vunpack.c.h.b16 %v2018
      %v2733 = vunpack.c.l.b16 %v2019
      %v2734 = vunpack.c.h.b16 %v2019
      %v2735 = vunpack.c.l.b16 %v2020
      %v2736 = vunpack.c.h.b16 %v2020
      %v2737 = vunpack.c.l.b16 %v2021
      %v2738 = vunpack.c.h.b16 %v2021
      %v2739 = vunpack.c.l.b16 %v2022
      %v2740 = vunpack.c.h.b16 %v2022
      %v2741 = vunpack.c.l.b16 %v2023
      %v2742 = vunpack.c.h.b16 %v2023
      %v2743 = vunpack.c.l.b16 %v2024
      %v2744 = vunpack.c.h.b16 %v2024
      %v2745 = vunpack.c.l.b16 %v2025
      %v2746 = vunpack.c.h.b16 %v2025
      %v2747 = vunpack.c.l.b16 %v2026
      %v2748 = vunpack.c.h.b16 %v2026
      %v2749 = vunpack.c.l.b16 %v2027
      %v2750 = vunpack.c.h.b16 %v2027
      %v2751 = vunpack.c.l.b16 %v2028
      %v2752 = vunpack.c.h.b16 %v2028
      %v2753 = vunpack.c.l.b16 %v2029
      %v2754 = vunpack.c.h.b16 %v2029
      %v2755 = vunpack.c.l.b16 %v2030
      %v2756 = vunpack.c.h.b16 %v2030
      %v2757 = vunpack.c.l.b16 %v2031
      %v2758 = vunpack.c.h.b16 %v2031
      %v2759 = vunpack.c.l.b16 %v2032
      %v2760 = vunpack.c.h.b16 %v2032
      %v2761 = vunpack.c.l.b16 %v2033
      %v2762 = vunpack.c.h.b16 %v2033
      %v2763 = vunpack.c.l.b16 %v2034
      %v2764 = vunpack.c.h.b16 %v2034
      %v2765 = vunpack.c.l.b16 %v2035
      %v2766 = vunpack.c.h.b16 %v2035
      %v2767 = vunpack.c.l.b16 %v2036
      %v2768 = vunpack.c.h.b16 %v2036
      %v2769 = vunpack.c.l.b16 %v2037
      %v2770 = vunpack.c.h.b16 %v2037
      %v2771 = vunpack.c.l.b16 %v2038
      %v2772 = vunpack.c.h.b16 %v2038
      %v2773 = vunpack.c.l.b16 %v2039
      %v2774 = vunpack.c.h.b16 %v2039
      %v2775 = vunpack.c.l.b16 %v2040
      %v2776 = vunpack.c.h.b16 %v2040
      %v2777 = vunpack.c.l.b16 %v2041
      %v2778 = vunpack.c.h.b16 %v2041
      %v2779 = vunpack.c.l.b16 %v2042
      %v2780 = vunpack.c.h.b16 %v2042
      %v2781 = vunpack.c.l.b16 %v2043
      %v2782 = vunpack.c.h.b16 %v2043
      %v2783 = vunpack.c.l.b16 %v2044
      %v2784 = vunpack.c.h.b16 %v2044
      %v2785 = vunpack.c.l.b16 %v2045
      %v2786 = vunpack.c.h.b16 %v2045
      %v2787 = vunpack.c.l.b16 %v2046
      %v2788 = vunpack.c.h.b16 %v2046
      %v2789 = vunpack.c.l.b16 %v2047
      %v2790 = vunpack.c.h.b16 %v2047
      %v2791 = vunpack.c.l.b16 %v2048
      %v2792 = vunpack.c.h.b16 %v2048
      %v2793 = vunpack.c.l.b16 %v2049
      %v2794 = vunpack.c.h.b16 %v2049
      %v2795 = vunpack.c.l.b16 %v2050
      %v2796 = vunpack.c.h.b16 %v2050
      %v2797 = vunpack.c.l.b16 %v2051
      %v2798 = vunpack.c.h.b16 %v2051
      %v2799 = vunpack.c.l.b16 %v2052
      %v2800 = vunpack.c.h.b16 %v2052
      %v2801 = vunpack.c.l.b16 %v2053
      %v2802 = vunpack.c.h.b16 %v2053
      %v2803 = vunpack.c.l.b16 %v2054
      %v2804 = vunpack.c.h.b16 %v2054
      %v2805 = vunpack.c.l.b16 %v2055
      %v2806 = vunpack.c.h.b16 %v2055
      %v2807 = vunpack.c.l.b16 %v2056
      %v2808 = vunpack.c.h.b16 %v2056
      %v2809 = vunpack.c.l.b16 %v2057
      %v2810 = vunpack.c.h.b16 %v2057
      %v2811 = vunpack.c.l.b16 %v2058
      %v2812 = vunpack.c.h.b16 %v2058
      %v2813 = vunpack.c.l.b16 %v2059
      %v2814 = vunpack.c.h.b16 %v2059
      %v2815 = vunpack.c.l.b16 %v2060
      %v2816 = vunpack.c.h.b16 %v2060
      %v2817 = vunpack.c.l.b16 %v2061
      %v2818 = vunpack.c.h.b16 %v2061
      %v2819 = vunpack.c.l.b16 %v2062
      %v2820 = vunpack.c.h.b16 %v2062
      %v2821 = vunpack.c.l.b16 %v2063
      %v2822 = vunpack.c.h.b16 %v2063
      %v2823 = vunpack.c.l.b16 %v2064
      %v2824 = vunpack.c.h.b16 %v2064
      %v2825 = vunpack.c.l.b16 %v2065
      %v2826 = vunpack.c.h.b16 %v2065
      %v2827 = vunpack.c.l.b16 %v2066
      %v2828 = vunpack.c.h.b16 %v2066
      %v2829 = vunpack.c.l.b16 %v2067
      %v2830 = vunpack.c.h.b16 %v2067
      %v2831 = vunpack.c.l.b16 %v2068
      %v2832 = vunpack.c.h.b16 %v2068
      %v2833 = vunpack.c.l.b16 %v2069
      %v2834 = vunpack.c.h.b16 %v2069
      %v2835 = vunpack.c.l.b16 %v2070
      %v2836 = vunpack.c.h.b16 %v2070
      %v2837 = vunpack.c.l.b16 %v2071
      %v2838 = vunpack.c.h.b16 %v2071
      %v2839 = vunpack.c.l.b16 %v2072
      %v2840 = vunpack.c.h.b16 %v2072
      %v2841 = vunpack.c.l.b16 %v2073
      %v2842 = vunpack.c.h.b16 %v2073
      %v2843 = vunpack.c.l.b16 %v2074
      %v2844 = vunpack.c.h.b16 %v2074
      %v2845 = vunpack.c.l.b16 %v2075
      %v2846 = vunpack.c.h.b16 %v2075
      %v2847 = vunpack.c.l.b16 %v2076
      %v2848 = vunpack.c.h.b16 %v2076
      %v2849 = vunpack.c.l.b16 %v2077
      %v2850 = vunpack.c.h.b16 %v2077
      %v2851 = vunpack.c.l.b16 %v2078
      %v2852 = vunpack.c.h.b16 %v2078
      %v2853 = vunpack.c.l.b16 %v2079
      %v2854 = vunpack.c.h.b16 %v2079
      %v2855 = vunpack.c.l.b16 %v2080
      %v2856 = vunpack.c.h.b16 %v2080
      %v2857 = vunpack.c.l.b16 %v2081
      %v2858 = vunpack.c.h.b16 %v2081
      %v2859 = vunpack.c.l.b16 %v2082
      %v2860 = vunpack.c.h.b16 %v2082
      %v2861 = vunpack.c.l.b16 %v2083
      %v2862 = vunpack.c.h.b16 %v2083
      %v2863 = vunpack.c.l.b16 %v2084
      %v2864 = vunpack.c.h.b16 %v2084
      %v2865 = vunpack.c.l.b16 %v2085
      %v2866 = vunpack.c.h.b16 %v2085
      %v2867 = vunpack.c.l.b16 %v2086
      %v2868 = vunpack.c.h.b16 %v2086
      %v2869 = vunpack.c.l.b16 %v2087
      %v2870 = vunpack.c.h.b16 %v2087
      %v2871 = vunpack.c.l.b16 %v2088
      %v2872 = vunpack.c.h.b16 %v2088
      %v2873 = vunpack.c.l.b16 %v2089
      %v2874 = vunpack.c.h.b16 %v2089
      %v2875 = vunpack.c.l.b16 %v2090
      %v2876 = vunpack.c.h.b16 %v2090
      %v2877 = vunpack.c.l.b16 %v2091
      %v2878 = vunpack.c.h.b16 %v2091
      %v2879 = vunpack.c.l.b16 %v2092
      %v2880 = vunpack.c.h.b16 %v2092
      %v2881 = vunpack.c.l.b16 %v2093
      %v2882 = vunpack.c.h.b16 %v2093
      %v2883 = vunpack.c.l.b16 %v2094
      %v2884 = vunpack.c.h.b16 %v2094
      %v2885 = vunpack.c.l.b16 %v2095
      %v2886 = vunpack.c.h.b16 %v2095
      %v2887 = vunpack.c.l.b16 %v2096
      %v2888 = vunpack.c.h.b16 %v2096
      %v2889 = vunpack.c.l.b16 %v2097
      %v2890 = vunpack.c.h.b16 %v2097
      %v2891 = vunpack.c.l.b16 %v2098
      %v2892 = vunpack.c.h.b16 %v2098
      %v2893 = vunpack.c.l.b16 %v2099
      %v2894 = vunpack.c.h.b16 %v2099
      %v2895 = vunpack.c.l.b16 %v2100
      %v2896 = vunpack.c.h.b16 %v2100
      %v2897 = vunpack.c.l.b16 %v2101
      %v2898 = vunpack.c.h.b16 %v2101
      %v2899 = vunpack.c.l.b16 %v2102
      %v2900 = vunpack.c.h.b16 %v2102
      %v2901 = vunpack.c.l.b16 %v2103
      %v2902 = vunpack.c.h.b16 %v2103
      %v2903 = vunpack.c.l.b16 %v2104
      %v2904 = vunpack.c.h.b16 %v2104
      %v2905 = vunpack.c.l.b16 %v2105
      %v2906 = vunpack.c.h.b16 %v2105
      %v2907 = vunpack.c.l.b16 %v2106
      %v2908 = vunpack.c.h.b16 %v2106
      %v2909 = vunpack.c.l.b16 %v2107
      %v2910 = vunpack.c.h.b16 %v2107
      %v2911 = vunpack.c.l.b16 %v2108
      %v2912 = vunpack.c.h.b16 %v2108
      %v2913 = vunpack.c.l.b16 %v2109
      %v2914 = vunpack.c.h.b16 %v2109
      %v2915 = vunpack.c.l.b16 %v2110
      %v2916 = vunpack.c.h.b16 %v2110
      %v2917 = vunpack.c.l.b16 %v2111
      %v2918 = vunpack.c.h.b16 %v2111
      %v2919 = vunpack.c.l.b16 %v2112
      %v2920 = vunpack.c.h.b16 %v2112
      %v2921 = vunpack.c.l.b16 %v2113
      %v2922 = vunpack.c.h.b16 %v2113
      %v2923 = vunpack.c.l.b16 %v2114
      %v2924 = vunpack.c.h.b16 %v2114
      %v2925 = vunpack.c.l.b16 %v2115
      %v2926 = vunpack.c.h.b16 %v2115
      %v2927 = vunpack.c.l.b16 %v2116
      %v2928 = vunpack.c.h.b16 %v2116
      %v2929 = vunpack.c.l.b16 %v2117
      %v2930 = vunpack.c.h.b16 %v2117
      %v2931 = vunpack.c.l.b16 %v2118
      %v2932 = vunpack.c.h.b16 %v2118
      %v2933 = vunpack.c.l.b16 %v2119
      %v2934 = vunpack.c.h.b16 %v2119
      %v2935 = vunpack.c.l.b16 %v2120
      %v2936 = vunpack.c.h.b16 %v2120
      %v2937 = vunpack.c.l.b16 %v2121
      %v2938 = vunpack.c.h.b16 %v2121
      %v2939 = vunpack.c.l.b16 %v2122
      %v2940 = vunpack.c.h.b16 %v2122
      %v2941 = vunpack.c.l.b16 %v2123
      %v2942 = vunpack.c.h.b16 %v2123
      %v2943 = vunpack.c.l.b16 %v2124
      %v2944 = vunpack.c.h.b16 %v2124
      %v2945 = vunpack.c.l.b16 %v2125
      %v2946 = vunpack.c.h.b16 %v2125
      %v2947 = vunpack.c.l.b16 %v2126
      %v2948 = vunpack.c.h.b16 %v2126
      %v2949 = vunpack.c.l.b16 %v2127
      %v2950 = vunpack.c.h.b16 %v2127
      %v2951 = vunpack.c.l.b16 %v2128
      %v2952 = vunpack.c.h.b16 %v2128
      %v2953 = vpack.c.b16 %v2443, %v2441
      %v2954 = vpack.c.b16 %v2444, %v2442
      %v2955 = vpack.c.b16 %v2447, %v2445
      %v2956 = vpack.c.b16 %v2448, %v2446
      %v2957 = vpack.c.b16 %v2451, %v2449
      %v2958 = vpack.c.b16 %v2452, %v2450
      %v2959 = vpack.c.b16 %v2455, %v2453
      %v2960 = vpack.c.b16 %v2456, %v2454
      %v2961 = vpack.c.b16 %v2459, %v2457
      %v2962 = vpack.c.b16 %v2460, %v2458
      %v2963 = vpack.c.b16 %v2463, %v2461
      %v2964 = vpack.c.b16 %v2464, %v2462
      %v2965 = vpack.c.b16 %v2467, %v2465
      %v2966 = vpack.c.b16 %v2468, %v2466
      %v2967 = vpack.c.b16 %v2471, %v2469
      %v2968 = vpack.c.b16 %v2472, %v2470
      %v2969 = vpack.c.b16 %v2475, %v2473
      %v2970 = vpack.c.b16 %v2476, %v2474
      %v2971 = vpack.c.b16 %v2479, %v2477
      %v2972 = vpack.c.b16 %v2480, %v2478
      %v2973 = vpack.c.b16 %v2483, %v2481
      %v2974 = vpack.c.b16 %v2484, %v2482
      %v2975 = vpack.c.b16 %v2487, %v2485
      %v2976 = vpack.c.b16 %v2488, %v2486
      %v2977 = vpack.c.b16 %v2491, %v2489
      %v2978 = vpack.c.b16 %v2492, %v2490
      %v2979 = vpack.c.b16 %v2495, %v2493
      %v2980 = vpack.c.b16 %v2496, %v2494
      %v2981 = vpack.c.b16 %v2499, %v2497
      %v2982 = vpack.c.b16 %v2500, %v2498
      %v2983 = vpack.c.b16 %v2503, %v2501
      %v2984 = vpack.c.b16 %v2504, %v2502
      %v2985 = vpack.c.b16 %v2507, %v2505
      %v2986 = vpack.c.b16 %v2508, %v2506
      %v2987 = vpack.c.b16 %v2511, %v2509
      %v2988 = vpack.c.b16 %v2512, %v2510
      %v2989 = vpack.c.b16 %v2515, %v2513
      %v2990 = vpack.c.b16 %v2516, %v2514
      %v2991 = vpack.c.b16 %v2519, %v2517
      %v2992 = vpack.c.b16 %v2520, %v2518
      %v2993 = vpack.c.b16 %v2523, %v2521
      %v2994 = vpack.c.b16 %v2524, %v2522
      %v2995 = vpack.c.b16 %v2527, %v2525
      %v2996 = vpack.c.b16 %v2528, %v2526
      %v2997 = vpack.c.b16 %v2531, %v2529
      %v2998 = vpack.c.b16 %v2532, %v2530
      %v2999 = vpack.c.b16 %v2535, %v2533
      %v3000 = vpack.c.b16 %v2536, %v2534
      %v3001 = vpack.c.b16 %v2539, %v2537
      %v3002 = vpack.c.b16 %v2540, %v2538
      %v3003 = vpack.c.b16 %v2543, %v2541
      %v3004 = vpack.c.b16 %v2544, %v2542
      %v3005 = vpack.c.b16 %v2547, %v2545
      %v3006 = vpack.c.b16 %v2548, %v2546
      %v3007 = vpack.c.b16 %v2551, %v2549
      %v3008 = vpack.c.b16 %v2552, %v2550
      %v3009 = vpack.c.b16 %v2555, %v2553
      %v3010 = vpack.c.b16 %v2556, %v2554
      %v3011 = vpack.c.b16 %v2559, %v2557
      %v3012 = vpack.c.b16 %v2560, %v2558
      %v3013 = vpack.c.b16 %v2563, %v2561
      %v3014 = vpack.c.b16 %v2564, %v2562
      %v3015 = vpack.c.b16 %v2567, %v2565
      %v3016 = vpack.c.b16 %v2568, %v2566
      %v3017 = vpack.c.b16 %v2571, %v2569
      %v3018 = vpack.c.b16 %v2572, %v2570
      %v3019 = vpack.c.b16 %v2575, %v2573
      %v3020 = vpack.c.b16 %v2576, %v2574
      %v3021 = vpack.c.b16 %v2579, %v2577
      %v3022 = vpack.c.b16 %v2580, %v2578
      %v3023 = vpack.c.b16 %v2583, %v2581
      %v3024 = vpack.c.b16 %v2584, %v2582
      %v3025 = vpack.c.b16 %v2587, %v2585
      %v3026 = vpack.c.b16 %v2588, %v2586
      %v3027 = vpack.c.b16 %v2591, %v2589
      %v3028 = vpack.c.b16 %v2592, %v2590
      %v3029 = vpack.c.b16 %v2595, %v2593
      %v3030 = vpack.c.b16 %v2596, %v2594
      %v3031 = vpack.c.b16 %v2599, %v2597
      %v3032 = vpack.c.b16 %v2600, %v2598
      %v3033 = vpack.c.b16 %v2603, %v2601
      %v3034 = vpack.c.b16 %v2604, %v2602
      %v3035 = vpack.c.b16 %v2607, %v2605
      %v3036 = vpack.c.b16 %v2608, %v2606
      %v3037 = vpack.c.b16 %v2611, %v2609
      %v3038 = vpack.c.b16 %v2612, %v2610
      %v3039 = vpack.c.b16 %v2615, %v2613
      %v3040 = vpack.c.b16 %v2616, %v2614
      %v3041 = vpack.c.b16 %v2619, %v2617
      %v3042 = vpack.c.b16 %v2620, %v2618
      %v3043 = vpack.c.b16 %v2623, %v2621
      %v3044 = vpack.c.b16 %v2624, %v2622
      %v3045 = vpack.c.b16 %v2627, %v2625
      %v3046 = vpack.c.b16 %v2628, %v2626
      %v3047 = vpack.c.b16 %v2631, %v2629
      %v3048 = vpack.c.b16 %v2632, %v2630
      %v3049 = vpack.c.b16 %v2635, %v2633
      %v3050 = vpack.c.b16 %v2636, %v2634
      %v3051 = vpack.c.b16 %v2639, %v2637
      %v3052 = vpack.c.b16 %v2640, %v2638
      %v3053 = vpack.c.b16 %v2643, %v2641
      %v3054 = vpack.c.b16 %v2644, %v2642
      %v3055 = vpack.c.b16 %v2647, %v2645
      %v3056 = vpack.c.b16 %v2648, %v2646
      %v3057 = vpack.c.b16 %v2651, %v2649
      %v3058 = vpack.c.b16 %v2652, %v2650
      %v3059 = vpack.c.b16 %v2655, %v2653
      %v3060 = vpack.c.b16 %v2656, %v2654
      %v3061 = vpack.c.b16 %v2659, %v2657
      %v3062 = vpack.c.b16 %v2660, %v2658
      %v3063 = vpack.c.b16 %v2663, %v2661
      %v3064 = vpack.c.b16 %v2664, %v2662
      %v3065 = vpack.c.b16 %v2667, %v2665
      %v3066 = vpack.c.b16 %v2668, %v2666
      %v3067 = vpack.c.b16 %v2671, %v2669
      %v3068 = vpack.c.b16 %v2672, %v2670
      %v3069 = vpack.c.b16 %v2675, %v2673
      %v3070 = vpack.c.b16 %v2676, %v2674
      %v3071 = vpack.c.b16 %v2679, %v2677
      %v3072 = vpack.c.b16 %v2680, %v2678
      %v3073 = vpack.c.b16 %v2683, %v2681
      %v3074 = vpack.c.b16 %v2684, %v2682
      %v3075 = vpack.c.b16 %v2687, %v2685
      %v3076 = vpack.c.b16 %v2688, %v2686
      %v3077 = vpack.c.b16 %v2691, %v2689
      %v3078 = vpack.c.b16 %v2692, %v2690
      %v3079 = vpack.c.b16 %v2695, %v2693
      %v3080 = vpack.c.b16 %v2696, %v2694
      %v3081 = vpack.c.b16 %v2699, %v2697
      %v3082 = vpack.c.b16 %v2700, %v2698
      %v3083 = vpack.c.b16 %v2703, %v2701
      %v3084 = vpack.c.b16 %v2704, %v2702
      %v3085 = vpack.c.b16 %v2707, %v2705
      %v3086 = vpack.c.b16 %v2708, %v2706
      %v3087 = vpack.c.b16 %v2711, %v2709
      %v3088 = vpack.c.b16 %v2712, %v2710
      %v3089 = vpack.c.b16 %v2715, %v2713
      %v3090 = vpack.c.b16 %v2716, %v2714
      %v3091 = vpack.c.b16 %v2719, %v2717
      %v3092 = vpack.c.b16 %v2720, %v2718
      %v3093 = vpack.c.b16 %v2723, %v2721
      %v3094 = vpack.c.b16 %v2724, %v2722
      %v3095 = vpack.c.b16 %v2727, %v2725
      %v3096 = vpack.c.b16 %v2728, %v2726
      %v3097 = vpack.c.b16 %v2731, %v2729
      %v3098 = vpack.c.b16 %v2732, %v2730
      %v3099 = vpack.c.b16 %v2735, %v2733
      %v3100 = vpack.c.b16 %v2736, %v2734
      %v3101 = vpack.c.b16 %v2739, %v2737
      %v3102 = vpack.c.b16 %v2740, %v2738
      %v3103 = vpack.c.b16 %v2743, %v2741
      %v3104 = vpack.c.b16 %v2744, %v2742
      %v3105 = vpack.c.b16 %v2747, %v2745
      %v3106 = vpack.c.b16 %v2748, %v2746
      %v3107 = vpack.c.b16 %v2751, %v2749
      %v3108 = vpack.c.b16 %v2752, %v2750
      %v3109 = vpack.c.b16 %v2755, %v2753
      %v3110 = vpack.c.b16 %v2756, %v2754
      %v3111 = vpack.c.b16 %v2759, %v2757
      %v3112 = vpack.c.b16 %v2760, %v2758
      %v3113 = vpack.c.b16 %v2763, %v2761
      %v3114 = vpack.c.b16 %v2764, %v2762
      %v3115 = vpack.c.b16 %v2767, %v2765
      %v3116 = vpack.c.b16 %v2768, %v2766
      %v3117 = vpack.c.b16 %v2771, %v2769
      %v3118 = vpack.c.b16 %v2772, %v2770
      %v3119 = vpack.c.b16 %v2775, %v2773
      %v3120 = vpack.c.b16 %v2776, %v2774
      %v3121 = vpack.c.b16 %v2779, %v2777
      %v3122 = vpack.c.b16 %v2780, %v2778
      %v3123 = vpack.c.b16 %v2783, %v2781
      %v3124 = vpack.c.b16 %v2784, %v2782
      %v3125 = vpack.c.b16 %v2787, %v2785
      %v3126 = vpack.c.b16 %v2788, %v2786
      %v3127 = vpack.c.b16 %v2791, %v2789
      %v3128 = vpack.c.b16 %v2792, %v2790
      %v3129 = vpack.c.b16 %v2795, %v2793
      %v3130 = vpack.c.b16 %v2796, %v2794
      %v3131 = vpack.c.b16 %v2799, %v2797
      %v3132 = vpack.c.b16 %v2800, %v2798
      %v3133 = vpack.c.b16 %v2803, %v2801
      %v3134 = vpack.c.b16 %v2804, %v2802
      %v3135 = vpack.c.b16 %v2807, %v2805
      %v3136 = vpack.c.b16 %v2808, %v2806
      %v3137 = vpack.c.b16 %v2811, %v2809
      %v3138 = vpack.c.b16 %v2812, %v2810
      %v3139 = vpack.c.b16 %v2815, %v2813
      %v3140 = vpack.c.b16 %v2816, %v2814
      %v3141 = vpack.c.b16 %v2819, %v2817
      %v3142 = vpack.c.b16 %v2820, %v2818
      %v3143 = vpack.c.b16 %v2823, %v2821
      %v3144 = vpack.c.b16 %v2824, %v2822
      %v3145 = vpack.c.b16 %v2827, %v2825
      %v3146 = vpack.c.b16 %v2828, %v2826
      %v3147 = vpack.c.b16 %v2831, %v2829
      %v3148 = vpack.c.b16 %v2832, %v2830
      %v3149 = vpack.c.b16 %v2835, %v2833
      %v3150 = vpack.c.b16 %v2836, %v2834
      %v3151 = vpack.c.b16 %v2839, %v2837
      %v3152 = vpack.c.b16 %v2840, %v2838
      %v3153 = vpack.c.b16 %v2843, %v2841
      %v3154 = vpack.c.b16 %v2844, %v2842
      %v3155 = vpack.c.b16 %v2847, %v2845
      %v3156 = vpack.c.b16 %v2848, %v2846
      %v3157 = vpack.c.b16 %v2851, %v2849
      %v3158 = vpack.c.b16 %v2852, %v2850
      %v3159 = vpack.c.b16 %v2855, %v2853
      %v3160 = vpack.c.b16 %v2856, %v2854
      %v3161 = vpack.c.b16 %v2859, %v2857
      %v3162 = vpack.c.b16 %v2860, %v2858
      %v3163 = vpack.c.b16 %v2863, %v2861
      %v3164 = vpack.c.b16 %v2864, %v2862
      %v3165 = vpack.c.b16 %v2867, %v2865
      %v3166 = vpack.c.b16 %v2868, %v2866
      %v3167 = vpack.c.b16 %v2871, %v2869
      %v3168 = vpack.c.b16 %v2872, %v2870
      %v3169 = vpack.c.b16 %v2875, %v2873
      %v3170 = vpack.c.b16 %v2876, %v2874
      %v3171 = vpack.c.b16 %v2879, %v2877
      %v3172 = vpack.c.b16 %v2880, %v2878
      %v3173 = vpack.c.b16 %v2883, %v2881
      %v3174 = vpack.c.b16 %v2884, %v2882
      %v3175 = vpack.c.b16 %v2887, %v2885
      %v3176 = vpack.c.b16 %v2888, %v2886
      %v3177 = vpack.c.b16 %v2891, %v2889
      %v3178 = vpack.c.b16 %v2892, %v2890
      %v3179 = vpack.c.b16 %v2895, %v2893
      %v3180 = vpack.c.b16 %v2896, %v2894
      %v3181 = vpack.c.b16 %v2899, %v2897
      %v3182 = vpack.c.b16 %v2900, %v2898
      %v3183 = vpack.c.b16 %v2903, %v2901
      %v3184 = vpack.c.b16 %v2904, %v2902
      %v3185 = vpack.c.b16 %v2907, %v2905
      %v3186 = vpack.c.b16 %v2908, %v2906
      %v3187 = vpack.c.b16 %v2911, %v2909
      %v3188 = vpack.c.b16 %v2912, %v2910
      %v3189 = vpack.c.b16 %v2915, %v2913
      %v3190 = vpack.c.b16 %v2916, %v2914
      %v3191 = vpack.c.b16 %v2919, %v2917
      %v3192 = vpack.c.b16 %v2920, %v2918
      %v3193 = vpack.c.b16 %v2923, %v2921
      %v3194 = vpack.c.b16 %v2924, %v2922
      %v3195 = vpack.c.b16 %v2927, %v2925
      %v3196 = vpack.c.b16 %v2928, %v2926
      %v3197 = vpack.c.b16 %v2931, %v2929
      %v3198 = vpack.c.b16 %v2932, %v2930
      %v3199 = vpack.c.b16 %v2935, %v2933
      %v3200 = vpack.c.b16 %v2936, %v2934
      %v3201 = vpack.c.b16 %v2939, %v2937
      %v3202 = vpack.c.b16 %v2940, %v2938
      %v3203 = vpack.c.b16 %v2943, %v2941
      %v3204 = vpack.c.b16 %v2944, %v2942
      %v3205 = vpack.c.b16 %v2947, %v2945
      %v3206 = vpack.c.b16 %v2948, %v2946
      %v3207 = vpack.c.b16 %v2951, %v2949
      %v3208 = vpack.c.b16 %v2952, %v2950
      %3465 = vmatpush.bf16.msra.mxu0 %v2967
      %3466 = vmatpush.bf16.msra.mxu0 %v2965
      %3467 = vmatpush.bf16.msra.mxu0 %v2963
      %3468 = vmatpush.bf16.msra.mxu0 %v2961
      %3469 = vmatpush.bf16.msra.mxu0 %v2959
      %3470 = vmatpush.bf16.msra.mxu0 %v2957
      %3471 = vmatpush.bf16.msra.mxu0 %v2955
      %3472 = vmatpush.bf16.msra.mxu0 %v2953
      %3473 = vmatmul.bf16.gmra.mxu0 %v2153
      %v3474 = vpop.f32.mrf.mxu0
      %v3475 = vadd.f32 0.0, %v3474
      %v3476 = vpop.f32.mrf.mxu0
      %3477 = vdwg.mxu0
      %3478 = vmatpush.bf16.msra.mxu0 %v2983
      %3479 = vmatpush.bf16.msra.mxu0 %v2981
      %3480 = vmatpush.bf16.msra.mxu0 %v2979
      %3481 = vmatpush.bf16.msra.mxu0 %v2977
      %3482 = vmatpush.bf16.msra.mxu0 %v2975
      %3483 = vmatpush.bf16.msra.mxu0 %v2973
      %3484 = vmatpush.bf16.msra.mxu0 %v2971
      %3485 = vmatpush.bf16.msra.mxu0 %v2969
      %3486 = vmatmul.bf16.gmra.mxu0 %v2154
      %v3487 = vpop.f32.mrf.mxu0
      %v3488 = vadd.f32 %v3475, %v3487
      %v3489 = vpop.f32.mrf.mxu0
      %3490 = vdwg.mxu0
      %3491 = vmatpush.bf16.msra.mxu0 %v2999
      %3492 = vmatpush.bf16.msra.mxu0 %v2997
      %3493 = vmatpush.bf16.msra.mxu0 %v2995
      %3494 = vmatpush.bf16.msra.mxu0 %v2993
      %3495 = vmatpush.bf16.msra.mxu0 %v2991
      %3496 = vmatpush.bf16.msra.mxu0 %v2989
      %3497 = vmatpush.bf16.msra.mxu0 %v2987
      %3498 = vmatpush.bf16.msra.mxu0 %v2985
      %3499 = vmatmul.bf16.gmra.mxu0 %v2155
      %v3500 = vpop.f32.mrf.mxu0
      %v3501 = vadd.f32 %v3488, %v3500
      %v3502 = vpop.f32.mrf.mxu0
      %3503 = vdwg.mxu0
      %3504 = vmatpush.bf16.msra.mxu0 %v3015
      %3505 = vmatpush.bf16.msra.mxu0 %v3013
      %3506 = vmatpush.bf16.msra.mxu0 %v3011
      %3507 = vmatpush.bf16.msra.mxu0 %v3009
      %3508 = vmatpush.bf16.msra.mxu0 %v3007
      %3509 = vmatpush.bf16.msra.mxu0 %v3005
      %3510 = vmatpush.bf16.msra.mxu0 %v3003
      %3511 = vmatpush.bf16.msra.mxu0 %v3001
      %3512 = vmatmul.bf16.gmra.mxu0 %v2156
      %v3513 = vpop.f32.mrf.mxu0
      %v3514 = vadd.f32 %v3501, %v3513
      %v3515 = vpop.f32.mrf.mxu0
      %3516 = vdwg.mxu0
      %3517 = vmatpush.bf16.msra.mxu0 %v3031
      %3518 = vmatpush.bf16.msra.mxu0 %v3029
      %3519 = vmatpush.bf16.msra.mxu0 %v3027
      %3520 = vmatpush.bf16.msra.mxu0 %v3025
      %3521 = vmatpush.bf16.msra.mxu0 %v3023
      %3522 = vmatpush.bf16.msra.mxu0 %v3021
      %3523 = vmatpush.bf16.msra.mxu0 %v3019
      %3524 = vmatpush.bf16.msra.mxu0 %v3017
      %3525 = vmatmul.bf16.gmra.mxu0 %v2157
      %v3526 = vpop.f32.mrf.mxu0
      %v3527 = vadd.f32 %v3514, %v3526
      %v3528 = vpop.f32.mrf.mxu0
      %3529 = vdwg.mxu0
      %3530 = vmatpush.bf16.msra.mxu0 %v3047
      %3531 = vmatpush.bf16.msra.mxu0 %v3045
      %3532 = vmatpush.bf16.msra.mxu0 %v3043
      %3533 = vmatpush.bf16.msra.mxu0 %v3041
      %3534 = vmatpush.bf16.msra.mxu0 %v3039
      %3535 = vmatpush.bf16.msra.mxu0 %v3037
      %3536 = vmatpush.bf16.msra.mxu0 %v3035
      %3537 = vmatpush.bf16.msra.mxu0 %v3033
      %3538 = vmatmul.bf16.gmra.mxu0 %v2158
      %v3539 = vpop.f32.mrf.mxu0
      %v3540 = vadd.f32 %v3527, %v3539
      %v3541 = vpop.f32.mrf.mxu0
      %3542 = vdwg.mxu0
      %3543 = vmatpush.bf16.msra.mxu0 %v3063
      %3544 = vmatpush.bf16.msra.mxu0 %v3061
      %3545 = vmatpush.bf16.msra.mxu0 %v3059
      %3546 = vmatpush.bf16.msra.mxu0 %v3057
      %3547 = vmatpush.bf16.msra.mxu0 %v3055
      %3548 = vmatpush.bf16.msra.mxu0 %v3053
      %3549 = vmatpush.bf16.msra.mxu0 %v3051
      %3550 = vmatpush.bf16.msra.mxu0 %v3049
      %3551 = vmatmul.bf16.gmra.mxu0 %v2159
      %v3552 = vpop.f32.mrf.mxu0
      %v3553 = vadd.f32 %v3540, %v3552
      %v3554 = vpop.f32.mrf.mxu0
      %3555 = vdwg.mxu0
      %3556 = vmatpush.bf16.msra.mxu0 %v3079
      %3557 = vmatpush.bf16.msra.mxu0 %v3077
      %3558 = vmatpush.bf16.msra.mxu0 %v3075
      %3559 = vmatpush.bf16.msra.mxu0 %v3073
      %3560 = vmatpush.bf16.msra.mxu0 %v3071
      %3561 = vmatpush.bf16.msra.mxu0 %v3069
      %3562 = vmatpush.bf16.msra.mxu0 %v3067
      %3563 = vmatpush.bf16.msra.mxu0 %v3065
      %3564 = vmatmul.bf16.gmra.mxu0 %v2160
      %v3565 = vpop.f32.mrf.mxu0
      %v3566 = vadd.f32 %v3553, %v3565
      %v3567 = vpop.f32.mrf.mxu0
      %3568 = vdwg.mxu0
      %3569 = vmatpush.bf16.msra.mxu0 %v3095
      %3570 = vmatpush.bf16.msra.mxu0 %v3093
      %3571 = vmatpush.bf16.msra.mxu0 %v3091
      %3572 = vmatpush.bf16.msra.mxu0 %v3089
      %3573 = vmatpush.bf16.msra.mxu0 %v3087
      %3574 = vmatpush.bf16.msra.mxu0 %v3085
      %3575 = vmatpush.bf16.msra.mxu0 %v3083
      %3576 = vmatpush.bf16.msra.mxu0 %v3081
      %3577 = vmatmul.bf16.gmra.mxu0 %v2161
      %v3578 = vpop.f32.mrf.mxu0
      %v3579 = vadd.f32 %v3566, %v3578
      %v3580 = vpop.f32.mrf.mxu0
      %3581 = vdwg.mxu0
      %3582 = vmatpush.bf16.msra.mxu0 %v3111
      %3583 = vmatpush.bf16.msra.mxu0 %v3109
      %3584 = vmatpush.bf16.msra.mxu0 %v3107
      %3585 = vmatpush.bf16.msra.mxu0 %v3105
      %3586 = vmatpush.bf16.msra.mxu0 %v3103
      %3587 = vmatpush.bf16.msra.mxu0 %v3101
      %3588 = vmatpush.bf16.msra.mxu0 %v3099
      %3589 = vmatpush.bf16.msra.mxu0 %v3097
      %3590 = vmatmul.bf16.gmra.mxu0 %v2162
      %v3591 = vpop.f32.mrf.mxu0
      %v3592 = vadd.f32 %v3579, %v3591
      %v3593 = vpop.f32.mrf.mxu0
      %3594 = vdwg.mxu0
      %3595 = vmatpush.bf16.msra.mxu0 %v3127
      %3596 = vmatpush.bf16.msra.mxu0 %v3125
      %3597 = vmatpush.bf16.msra.mxu0 %v3123
      %3598 = vmatpush.bf16.msra.mxu0 %v3121
      %3599 = vmatpush.bf16.msra.mxu0 %v3119
      %3600 = vmatpush.bf16.msra.mxu0 %v3117
      %3601 = vmatpush.bf16.msra.mxu0 %v3115
      %3602 = vmatpush.bf16.msra.mxu0 %v3113
      %3603 = vmatmul.bf16.gmra.mxu0 %v2163
      %v3604 = vpop.f32.mrf.mxu0
      %v3605 = vadd.f32 %v3592, %v3604
      %v3606 = vpop.f32.mrf.mxu0
      %3607 = vdwg.mxu0
      %3608 = vmatpush.bf16.msra.mxu0 %v3143
      %3609 = vmatpush.bf16.msra.mxu0 %v3141
      %3610 = vmatpush.bf16.msra.mxu0 %v3139
      %3611 = vmatpush.bf16.msra.mxu0 %v3137
      %3612 = vmatpush.bf16.msra.mxu0 %v3135
      %3613 = vmatpush.bf16.msra.mxu0 %v3133
      %3614 = vmatpush.bf16.msra.mxu0 %v3131
      %3615 = vmatpush.bf16.msra.mxu0 %v3129
      %3616 = vmatmul.bf16.gmra.mxu0 %v2164
      %v3617 = vpop.f32.mrf.mxu0
      %v3618 = vadd.f32 %v3605, %v3617
      %v3619 = vpop.f32.mrf.mxu0
      %3620 = vdwg.mxu0
      %3621 = vmatpush.bf16.msra.mxu0 %v3159
      %3622 = vmatpush.bf16.msra.mxu0 %v3157
      %3623 = vmatpush.bf16.msra.mxu0 %v3155
      %3624 = vmatpush.bf16.msra.mxu0 %v3153
      %3625 = vmatpush.bf16.msra.mxu0 %v3151
      %3626 = vmatpush.bf16.msra.mxu0 %v3149
      %3627 = vmatpush.bf16.msra.mxu0 %v3147
      %3628 = vmatpush.bf16.msra.mxu0 %v3145
      %3629 = vmatmul.bf16.gmra.mxu0 %v2165
      %v3630 = vpop.f32.mrf.mxu0
      %v3631 = vadd.f32 %v3618, %v3630
      %v3632 = vpop.f32.mrf.mxu0
      %3633 = vdwg.mxu0
      %3634 = vmatpush.bf16.msra.mxu0 %v3175
      %3635 = vmatpush.bf16.msra.mxu0 %v3173
      %3636 = vmatpush.bf16.msra.mxu0 %v3171
      %3637 = vmatpush.bf16.msra.mxu0 %v3169
      %3638 = vmatpush.bf16.msra.mxu0 %v3167
      %3639 = vmatpush.bf16.msra.mxu0 %v3165
      %3640 = vmatpush.bf16.msra.mxu0 %v3163
      %3641 = vmatpush.bf16.msra.mxu0 %v3161
      %3642 = vmatmul.bf16.gmra.mxu0 %v2166
      %v3643 = vpop.f32.mrf.mxu0
      %v3644 = vadd.f32 %v3631, %v3643
      %v3645 = vpop.f32.mrf.mxu0
      %3646 = vdwg.mxu0
      %3647 = vmatpush.bf16.msra.mxu0 %v3191
      %3648 = vmatpush.bf16.msra.mxu0 %v3189
      %3649 = vmatpush.bf16.msra.mxu0 %v3187
      %3650 = vmatpush.bf16.msra.mxu0 %v3185
      %3651 = vmatpush.bf16.msra.mxu0 %v3183
      %3652 = vmatpush.bf16.msra.mxu0 %v3181
      %3653 = vmatpush.bf16.msra.mxu0 %v3179
      %3654 = vmatpush.bf16.msra.mxu0 %v3177
      %3655 = vmatmul.bf16.gmra.mxu0 %v2167
      %v3656 = vpop.f32.mrf.mxu0
      %v3657 = vadd.f32 %v3644, %v3656
      %v3658 = vpop.f32.mrf.mxu0
      %3659 = vdwg.mxu0
      %3660 = vmatpush.bf16.msra.mxu0 %v3207
      %3661 = vmatpush.bf16.msra.mxu0 %v3205
      %3662 = vmatpush.bf16.msra.mxu0 %v3203
      %3663 = vmatpush.bf16.msra.mxu0 %v3201
      %3664 = vmatpush.bf16.msra.mxu0 %v3199
      %3665 = vmatpush.bf16.msra.mxu0 %v3197
      %3666 = vmatpush.bf16.msra.mxu0 %v3195
      %3667 = vmatpush.bf16.msra.mxu0 %v3193
      %3668 = vmatmul.bf16.gmra.mxu0 %v2168
      %v3669 = vpop.f32.mrf.mxu0
      %v3670 = vadd.f32 %v3657, %v3669
      %v3671 = vpop.f32.mrf.mxu0
      %3672 = vdwg.mxu0
      %3673 = vmatpush.bf16.msra.mxu0 %v2968
      %3674 = vmatpush.bf16.msra.mxu0 %v2966
      %3675 = vmatpush.bf16.msra.mxu0 %v2964
      %3676 = vmatpush.bf16.msra.mxu0 %v2962
      %3677 = vmatpush.bf16.msra.mxu0 %v2960
      %3678 = vmatpush.bf16.msra.mxu0 %v2958
      %3679 = vmatpush.bf16.msra.mxu0 %v2956
      %3680 = vmatpush.bf16.msra.mxu0 %v2954
      %3681 = vmatmul.bf16.gmra.mxu0 %v2153
      %v3682 = vpop.f32.mrf.mxu0
      %v3683 = vadd.f32 0.0, %v3682
      %v3684 = vpop.f32.mrf.mxu0
      %3685 = vdwg.mxu0
      %3686 = vmatpush.bf16.msra.mxu0 %v2984
      %3687 = vmatpush.bf16.msra.mxu0 %v2982
      %3688 = vmatpush.bf16.msra.mxu0 %v2980
      %3689 = vmatpush.bf16.msra.mxu0 %v2978
      %3690 = vmatpush.bf16.msra.mxu0 %v2976
      %3691 = vmatpush.bf16.msra.mxu0 %v2974
      %3692 = vmatpush.bf16.msra.mxu0 %v2972
      %3693 = vmatpush.bf16.msra.mxu0 %v2970
      %3694 = vmatmul.bf16.gmra.mxu0 %v2154
      %v3695 = vpop.f32.mrf.mxu0
      %v3696 = vadd.f32 %v3683, %v3695
      %v3697 = vpop.f32.mrf.mxu0
      %3698 = vdwg.mxu0
      %3699 = vmatpush.bf16.msra.mxu0 %v3000
      %3700 = vmatpush.bf16.msra.mxu0 %v2998
      %3701 = vmatpush.bf16.msra.mxu0 %v2996
      %3702 = vmatpush.bf16.msra.mxu0 %v2994
      %3703 = vmatpush.bf16.msra.mxu0 %v2992
      %3704 = vmatpush.bf16.msra.mxu0 %v2990
      %3705 = vmatpush.bf16.msra.mxu0 %v2988
      %3706 = vmatpush.bf16.msra.mxu0 %v2986
      %3707 = vmatmul.bf16.gmra.mxu0 %v2155
      %v3708 = vpop.f32.mrf.mxu0
      %v3709 = vadd.f32 %v3696, %v3708
      %v3710 = vpop.f32.mrf.mxu0
      %3711 = vdwg.mxu0
      %3712 = vmatpush.bf16.msra.mxu0 %v3016
      %3713 = vmatpush.bf16.msra.mxu0 %v3014
      %3714 = vmatpush.bf16.msra.mxu0 %v3012
      %3715 = vmatpush.bf16.msra.mxu0 %v3010
      %3716 = vmatpush.bf16.msra.mxu0 %v3008
      %3717 = vmatpush.bf16.msra.mxu0 %v3006
      %3718 = vmatpush.bf16.msra.mxu0 %v3004
      %3719 = vmatpush.bf16.msra.mxu0 %v3002
      %3720 = vmatmul.bf16.gmra.mxu0 %v2156
      %v3721 = vpop.f32.mrf.mxu0
      %v3722 = vadd.f32 %v3709, %v3721
      %v3723 = vpop.f32.mrf.mxu0
      %3724 = vdwg.mxu0
      %3725 = vmatpush.bf16.msra.mxu0 %v3032
      %3726 = vmatpush.bf16.msra.mxu0 %v3030
      %3727 = vmatpush.bf16.msra.mxu0 %v3028
      %3728 = vmatpush.bf16.msra.mxu0 %v3026
      %3729 = vmatpush.bf16.msra.mxu0 %v3024
      %3730 = vmatpush.bf16.msra.mxu0 %v3022
      %3731 = vmatpush.bf16.msra.mxu0 %v3020
      %3732 = vmatpush.bf16.msra.mxu0 %v3018
      %3733 = vmatmul.bf16.gmra.mxu0 %v2157
      %v3734 = vpop.f32.mrf.mxu0
      %v3735 = vadd.f32 %v3722, %v3734
      %v3736 = vpop.f32.mrf.mxu0
      %3737 = vdwg.mxu0
      %3738 = vmatpush.bf16.msra.mxu0 %v3048
      %3739 = vmatpush.bf16.msra.mxu0 %v3046
      %3740 = vmatpush.bf16.msra.mxu0 %v3044
      %3741 = vmatpush.bf16.msra.mxu0 %v3042
      %3742 = vmatpush.bf16.msra.mxu0 %v3040
      %3743 = vmatpush.bf16.msra.mxu0 %v3038
      %3744 = vmatpush.bf16.msra.mxu0 %v3036
      %3745 = vmatpush.bf16.msra.mxu0 %v3034
      %3746 = vmatmul.bf16.gmra.mxu0 %v2158
      %v3747 = vpop.f32.mrf.mxu0
      %v3748 = vadd.f32 %v3735, %v3747
      %v3749 = vpop.f32.mrf.mxu0
      %3750 = vdwg.mxu0
      %3751 = vmatpush.bf16.msra.mxu0 %v3064
      %3752 = vmatpush.bf16.msra.mxu0 %v3062
      %3753 = vmatpush.bf16.msra.mxu0 %v3060
      %3754 = vmatpush.bf16.msra.mxu0 %v3058
      %3755 = vmatpush.bf16.msra.mxu0 %v3056
      %3756 = vmatpush.bf16.msra.mxu0 %v3054
      %3757 = vmatpush.bf16.msra.mxu0 %v3052
      %3758 = vmatpush.bf16.msra.mxu0 %v3050
      %3759 = vmatmul.bf16.gmra.mxu0 %v2159
      %v3760 = vpop.f32.mrf.mxu0
      %v3761 = vadd.f32 %v3748, %v3760
      %v3762 = vpop.f32.mrf.mxu0
      %3763 = vdwg.mxu0
      %3764 = vmatpush.bf16.msra.mxu0 %v3080
      %3765 = vmatpush.bf16.msra.mxu0 %v3078
      %3766 = vmatpush.bf16.msra.mxu0 %v3076
      %3767 = vmatpush.bf16.msra.mxu0 %v3074
      %3768 = vmatpush.bf16.msra.mxu0 %v3072
      %3769 = vmatpush.bf16.msra.mxu0 %v3070
      %3770 = vmatpush.bf16.msra.mxu0 %v3068
      %3771 = vmatpush.bf16.msra.mxu0 %v3066
      %3772 = vmatmul.bf16.gmra.mxu0 %v2160
      %v3773 = vpop.f32.mrf.mxu0
      %v3774 = vadd.f32 %v3761, %v3773
      %v3775 = vpop.f32.mrf.mxu0
      %3776 = vdwg.mxu0
      %3777 = vmatpush.bf16.msra.mxu0 %v3096
      %3778 = vmatpush.bf16.msra.mxu0 %v3094
      %3779 = vmatpush.bf16.msra.mxu0 %v3092
      %3780 = vmatpush.bf16.msra.mxu0 %v3090
      %3781 = vmatpush.bf16.msra.mxu0 %v3088
      %3782 = vmatpush.bf16.msra.mxu0 %v3086
      %3783 = vmatpush.bf16.msra.mxu0 %v3084
      %3784 = vmatpush.bf16.msra.mxu0 %v3082
      %3785 = vmatmul.bf16.gmra.mxu0 %v2161
      %v3786 = vpop.f32.mrf.mxu0
      %v3787 = vadd.f32 %v3774, %v3786
      %v3788 = vpop.f32.mrf.mxu0
      %3789 = vdwg.mxu0
      %3790 = vmatpush.bf16.msra.mxu0 %v3112
      %3791 = vmatpush.bf16.msra.mxu0 %v3110
      %3792 = vmatpush.bf16.msra.mxu0 %v3108
      %3793 = vmatpush.bf16.msra.mxu0 %v3106
      %3794 = vmatpush.bf16.msra.mxu0 %v3104
      %3795 = vmatpush.bf16.msra.mxu0 %v3102
      %3796 = vmatpush.bf16.msra.mxu0 %v3100
      %3797 = vmatpush.bf16.msra.mxu0 %v3098
      %3798 = vmatmul.bf16.gmra.mxu0 %v2162
      %v3799 = vpop.f32.mrf.mxu0
      %v3800 = vadd.f32 %v3787, %v3799
      %v3801 = vpop.f32.mrf.mxu0
      %3802 = vdwg.mxu0
      %3803 = vmatpush.bf16.msra.mxu0 %v3128
      %3804 = vmatpush.bf16.msra.mxu0 %v3126
      %3805 = vmatpush.bf16.msra.mxu0 %v3124
      %3806 = vmatpush.bf16.msra.mxu0 %v3122
      %3807 = vmatpush.bf16.msra.mxu0 %v3120
      %3808 = vmatpush.bf16.msra.mxu0 %v3118
      %3809 = vmatpush.bf16.msra.mxu0 %v3116
      %3810 = vmatpush.bf16.msra.mxu0 %v3114
      %3811 = vmatmul.bf16.gmra.mxu0 %v2163
      %v3812 = vpop.f32.mrf.mxu0
      %v3813 = vadd.f32 %v3800, %v3812
      %v3814 = vpop.f32.mrf.mxu0
      %3815 = vdwg.mxu0
      %3816 = vmatpush.bf16.msra.mxu0 %v3144
      %3817 = vmatpush.bf16.msra.mxu0 %v3142
      %3818 = vmatpush.bf16.msra.mxu0 %v3140
      %3819 = vmatpush.bf16.msra.mxu0 %v3138
      %3820 = vmatpush.bf16.msra.mxu0 %v3136
      %3821 = vmatpush.bf16.msra.mxu0 %v3134
      %3822 = vmatpush.bf16.msra.mxu0 %v3132
      %3823 = vmatpush.bf16.msra.mxu0 %v3130
      %3824 = vmatmul.bf16.gmra.mxu0 %v2164
      %v3825 = vpop.f32.mrf.mxu0
      %v3826 = vadd.f32 %v3813, %v3825
      %v3827 = vpop.f32.mrf.mxu0
      %3828 = vdwg.mxu0
      %3829 = vmatpush.bf16.msra.mxu0 %v3160
      %3830 = vmatpush.bf16.msra.mxu0 %v3158
      %3831 = vmatpush.bf16.msra.mxu0 %v3156
      %3832 = vmatpush.bf16.msra.mxu0 %v3154
      %3833 = vmatpush.bf16.msra.mxu0 %v3152
      %3834 = vmatpush.bf16.msra.mxu0 %v3150
      %3835 = vmatpush.bf16.msra.mxu0 %v3148
      %3836 = vmatpush.bf16.msra.mxu0 %v3146
      %3837 = vmatmul.bf16.gmra.mxu0 %v2165
      %v3838 = vpop.f32.mrf.mxu0
      %v3839 = vadd.f32 %v3826, %v3838
      %v3840 = vpop.f32.mrf.mxu0
      %3841 = vdwg.mxu0
      %3842 = vmatpush.bf16.msra.mxu0 %v3176
      %3843 = vmatpush.bf16.msra.mxu0 %v3174
      %3844 = vmatpush.bf16.msra.mxu0 %v3172
      %3845 = vmatpush.bf16.msra.mxu0 %v3170
      %3846 = vmatpush.bf16.msra.mxu0 %v3168
      %3847 = vmatpush.bf16.msra.mxu0 %v3166
      %3848 = vmatpush.bf16.msra.mxu0 %v3164
      %3849 = vmatpush.bf16.msra.mxu0 %v3162
      %3850 = vmatmul.bf16.gmra.mxu0 %v2166
      %v3851 = vpop.f32.mrf.mxu0
      %v3852 = vadd.f32 %v3839, %v3851
      %v3853 = vpop.f32.mrf.mxu0
      %3854 = vdwg.mxu0
      %3855 = vmatpush.bf16.msra.mxu0 %v3192
      %3856 = vmatpush.bf16.msra.mxu0 %v3190
      %3857 = vmatpush.bf16.msra.mxu0 %v3188
      %3858 = vmatpush.bf16.msra.mxu0 %v3186
      %3859 = vmatpush.bf16.msra.mxu0 %v3184
      %3860 = vmatpush.bf16.msra.mxu0 %v3182
      %3861 = vmatpush.bf16.msra.mxu0 %v3180
      %3862 = vmatpush.bf16.msra.mxu0 %v3178
      %3863 = vmatmul.bf16.gmra.mxu0 %v2167
      %v3864 = vpop.f32.mrf.mxu0
      %v3865 = vadd.f32 %v3852, %v3864
      %v3866 = vpop.f32.mrf.mxu0
      %3867 = vdwg.mxu0
      %3868 = vmatpush.bf16.msra.mxu0 %v3208
      %3869 = vmatpush.bf16.msra.mxu0 %v3206
      %3870 = vmatpush.bf16.msra.mxu0 %v3204
      %3871 = vmatpush.bf16.msra.mxu0 %v3202
      %3872 = vmatpush.bf16.msra.mxu0 %v3200
      %3873 = vmatpush.bf16.msra.mxu0 %v3198
      %3874 = vmatpush.bf16.msra.mxu0 %v3196
      %3875 = vmatpush.bf16.msra.mxu0 %v3194
      %3876 = vmatmul.bf16.gmra.mxu0 %v2168
      %v3877 = vpop.f32.mrf.mxu0
      %v3878 = vadd.f32 %v3865, %v3877
      %v3879 = vpop.f32.mrf.mxu0
      %3880 = vdwg.mxu0
      %3881 = vst [vmem:[%s165] sm:$0xff] %v3670
      %3882 = vst [vmem:[%s165 + $0x8] sm:$0xff] %v3878
      %s3883 = smul.u32 2, %s18
      %p3884 = scmp.lt.s32.totalorder %s17, 1
      %s3885 = scalar_select %p3884, %s17, 1
      %p3886 = scmp.lt.s32.totalorder %s3883, 1
      %s3887 = scalar_select %p3886, %s3883, 1
      %s3888 = smul.addr %s3885, 2
      %s3889 = sadd.s32 %s3887, %s3888
      %s3890 = smul.addr %s3889, 8
      %s3891 = scalar_lea.vmem %s2, %s3890
      // Predicated region
      $region29: #{_lambda_.1} parent=27 // pred_check
        %p3892 = pneg %p92
      $region30: #{_lambda_.1} parent=27 // pred_check_branch
        %3894 = sbr.rel (%p3892) target = $region32
      $region31: #{_lambda_.1} parent=27 // pred_region
        %s3895 = smul.u32 2, %s18
      $region32: #{_lambda_.1} parent=27 // pred_fallthru
        _
    $region28: #{_lambda_.1} parent=5 // pred_fallthru
      _
    %p3896 = scmp.le.s32.totalorder 2, %s8
    // Predicated region
    $region33: #{_lambda_.1} parent=5 // pred_check
      %p3897 = pneg %p3896
    $region34: #{_lambda_.1} parent=5 // pred_check_branch
      %3899 = sbr.rel (%p3897) target = $region36
    $region35: #{_lambda_.1} parent=5 // pred_region
      %s3900 = ssub.s32 %s8, 2
      // Predicated region
      $region37: #{_lambda_.1} parent=35 // pred_check
        %p3901 = pneg %p98
      $region38: #{_lambda_.1} parent=35 // pred_check_branch
        %3903 = sbr.rel (%p3901) target = $region40
      $region39: #{_lambda_.1} parent=35 // pred_region
        %s3904 = smul.u32 2, %s20
        %p3905 = scmp.lt.s32.totalorder %s19, 1
        %s3906 = scalar_select %p3905, %s19, 1
        %p3907 = scmp.lt.s32.totalorder %s3904, 1
        %s3908 = scalar_select %p3907, %s3904, 1
        %s3909 = smul.addr %s3906, 2
        %s3910 = sadd.s32 %s3908, %s3909
        %s3911 = smul.addr %s3910, 8
        %s3912 = scalar_lea.vmem %s2, %s3911
      $region40: #{_lambda_.1} parent=35 // pred_fallthru
        _
    $region36: #{_lambda_.1} parent=5 // pred_fallthru
      _
  $region6: #{_lambda_.1} parent=0 // loop_footer
    %s12 = sadd.s32 1, %s8
  $region7: #{_lambda_.1} parent=0 // loop_footer_branch
    %7 = sbr.rel target = $region3
  $region8: #{_lambda_.1} parent=0 // loop_exit
    _

</llo_original>
